<compile_context>
chip_gen: v5e
topology: v5e:2x2
jax: 0.10.0
libtpu: 0.0.40
codegen_flags: <defaults>
</compile_context>

<pallas_src>
import math

import numpy as np
import jax
import jax.numpy as jnp
from jax.experimental import pallas as pl
from jax.experimental.pallas import tpu as pltpu

OC, KH, KW = 6, 5, 5  # Conv2d(in_channels=1, out_channels=6, kernel_size=5, stride=1)


# ----------------------------------------------------------------------------- kernel
def _conv_gemm_kernel(x_ref, w_ref, b_ref, o_ref):
    """One batch tile of the conv-as-GEMM.

    x_ref: (NB, H*W)          VMEM  flattened input images (lane-dense)
    w_ref: (H*W, OC*OH*OW)    VMEM  Toeplitz conv-weight matrix (grid-invariant)
    b_ref: (1,  OC*OH*OW)     VMEM  bias per flat output position
    o_ref: (NB, OC*OH*OW)     VMEM  flattened NCHW output (lane-dense stores)
    """
    acc = jnp.dot(
        x_ref[...], w_ref[...],
        preferred_element_type=jnp.float32,
        precision=jax.lax.Precision.HIGHEST,   # full-f32 MXU passes; free (HBM-bound)
    )
    o_ref[...] = (acc + b_ref[...]).astype(o_ref.dtype)


# --------------------------------------------------------------- one-time weight prep
def prepare_gemm_params(w, b, H, W):
    """Weight-only preprocessing, done ONCE (hoisted out of the forward path).

    Builds B (H*W, OC*OH*OW) with a single gather from the flat weight vector,
    using a static numpy index map (no on-device scatter), plus the broadcast
    bias row.  out = x_flat @ B + bias reproduces the VALID stride-1 conv.
    """
    OH, OW = H - KH + 1, W - KW + 1
    HW, OUT = H * W, OC * OH * OW

    q = np.arange(HW)
    qh, qw = q // W, q % W                               # input pixel coords (HW,)
    c = np.arange(OUT)
    oc = c // (OH * OW)
    rem = c % (OH * OW)
    oh, ow = rem // OW, rem % OW                         # output coords (OUT,)

    kh = qh[:, None] - oh[None, :]                       # (HW, OUT)
    kw = qw[:, None] - ow[None, :]
    valid = (kh >= 0) & (kh < KH) & (kw >= 0) & (kw < KW)
    widx = oc[None, :] * (KH * KW) + np.clip(kh, 0, KH - 1) * KW + np.clip(kw, 0, KW - 1)
    idx = np.where(valid, widx, OC * KH * KW)            # sentinel -> zero entry

    w_flat = jnp.concatenate([w.reshape(-1), jnp.zeros((1,), w.dtype)])
    Bmat = w_flat[jnp.asarray(idx)]                      # (HW, OUT), single gather
    b_row = jnp.repeat(b, OH * OW).reshape(1, OUT)       # (1, OUT)
    return Bmat, b_row


# ------------------------------------------------------------------------- forward
def layer_c1_forward(x, Bmat, b_row, *, max_batch_tile=1024):
    """x: (N, 1, H, W) f32 -> (N, 6, H-4, W-4) f32.  Bmat/b_row from prepare_gemm_params."""
    N, C, H, W = x.shape
    assert C == 1
    OH, OW = H - KH + 1, W - KW + 1
    HW, OUT = H * W, OC * OH * OW
    assert Bmat.shape == (HW, OUT) and b_row.shape == (1, OUT)

    # --- batch-tile sizing (VMEM-aware, no forced multi-step grid) ----------------
    VMEM_BUDGET = 44 * 1024 * 1024                 # safe on v7x's 64 MiB VMEM / TC
    resident = 2 * (HW * OUT + OUT) * 4            # Bmat + bias (double-buffered)
    per_row = 2 * (HW + OUT) * 4                   # double-buffered in/out bytes / row
    vmem_cap = max(8, (((VMEM_BUDGET - resident) // per_row) // 8) * 8)
    tile_cap = min(max_batch_tile, vmem_cap)

    n8 = -(-N // 8) * 8                            # sublane-align the batch
    if n8 <= tile_cap:
        nb, steps = n8, 1                          # single grid step: no per-step waste
    else:
        steps = -(-n8 // tile_cap)
        per = -(-n8 // steps)                      # balanced tiles across steps / TCs
        nb = -(-per // 128) * 128                  # MXU-aligned (multiple of 128)
    n_pad = steps * nb

    xf = x.reshape(N, HW)                          # free reshape (contiguous)
    if n_pad != N:                                 # only pad when actually ragged
        xf = jnp.pad(xf, ((0, n_pad - N), (0, 0)))

    cp = dict(dimension_semantics=("parallel",))
    vmem_est = nb * per_row + resident
    if vmem_est > 12 * 1024 * 1024:                # above small scoped-VMEM defaults
        cp["vmem_limit_bytes"] = int(min(vmem_est + 4 * 1024 * 1024, 48 * 1024 * 1024))

    out_flat = pl.pallas_call(
        _conv_gemm_kernel,
        out_shape=jax.ShapeDtypeStruct((n_pad, OUT), x.dtype),
        grid_spec=pltpu.PrefetchScalarGridSpec(
            num_scalar_prefetch=0,
            grid=(steps,),
            in_specs=[
                pl.BlockSpec((nb, HW), lambda i: (i, 0)),
                pl.BlockSpec((HW, OUT), lambda i: (0, 0)),  # grid-invariant: DMA'd once
                pl.BlockSpec((1, OUT), lambda i: (0, 0)),
            ],
            out_specs=pl.BlockSpec((nb, OUT), lambda i: (i, 0)),
        ),
        compiler_params=pltpu.CompilerParams(**cp),
    )(xf, Bmat, b_row)

    out = out_flat if n_pad == N else out_flat[:N]
    return out.reshape(N, OC, OH, OW)              # free reshape back to NCHW


# ------------------------------------------------------------------------- init
def init_params(key):
    """Deterministic init matching Layer_C1.reset_parameters semantics."""
    # kaiming_uniform_(a=sqrt(2)): gain = sqrt(2/(1+a^2)) = sqrt(2/3),
    # fan_in = 1*5*5 = 25, bound = gain * sqrt(3/fan_in) = sqrt(2)/5
    bound = math.sqrt(2.0 / 3.0) * math.sqrt(3.0 / (1 * KH * KW))
    w = jax.random.uniform(key, (OC, 1, KH, KW), jnp.float32, -bound, bound)
    b = jnp.full((OC,), 0.01, jnp.float32)
    return w, b


if __name__ == "__main__":
    key = jax.random.PRNGKey(0)
    k_w, k_x = jax.random.split(key)

    w, b = init_params(k_w)
    x = jax.random.normal(k_x, (2, 1, 16, 16), jnp.float32)  # (N, C, H, W)

    # One-time weight preprocessing (out of the hot path).
    Bmat, b_row = prepare_gemm_params(w, b, 16, 16)
    Bmat, b_row = jax.block_until_ready((Bmat, b_row))

    fwd = jax.jit(layer_c1_forward)
    out = fwd(x, Bmat, b_row)
    out = jax.block_until_ready(out)

    # Reference: XLA conv with the same semantics as nn.Conv2d(1, 6, 5, stride=1).
    ref = jax.lax.conv_general_dilated(
        x, w, window_strides=(1, 1), padding="VALID",
        dimension_numbers=("NCHW", "OIHW", "NCHW"),
        precision=jax.lax.Precision.HIGHEST,
    ) + b[None, :, None, None]

    assert out.shape == (2, OC, 12, 12), out.shape
    assert jnp.allclose(out, ref, atol=1e-4, rtol=1e-4), float(jnp.max(jnp.abs(out - ref)))

    print("KERNEL_OK")
</pallas_src>

<mosaic_0001>
module attributes {stable_mosaic.version = 11 : i64} {
  func.func @_conv_gemm_kernel(%arg0: i32, %arg1: memref<8x256xf32, #tpu.memory_space<vmem>>, %arg2: memref<256x864xf32, #tpu.memory_space<vmem>>, %arg3: memref<1x864xf32, #tpu.memory_space<vmem>>, %arg4: memref<8x864xf32, #tpu.memory_space<vmem>>) attributes {dimension_semantics = [#tpu.dimension_semantics<parallel>], iteration_bounds = array<i64: 1>, scalar_prefetch = 0 : i64, scratch_operands = 0 : i64, tpu.core_type = #tpu.core_type<tc>, window_params = [{transform_indices = @transform_0, window_bounds = array<i64: 8, 256>}, {pipeline_mode = #tpu.pipeline_mode<synchronous>, transform_indices = @transform_1, window_bounds = array<i64: 256, 864>}, {pipeline_mode = #tpu.pipeline_mode<synchronous>, transform_indices = @transform_2, window_bounds = array<i64: 1, 864>}, {transform_indices = @transform_3, window_bounds = array<i64: 8, 864>}]} {
    %c0 = arith.constant 0 : index
    %c0_0 = arith.constant 0 : index
    %0 = vector.load %arg1[%c0, %c0_0] : memref<8x256xf32, #tpu.memory_space<vmem>>, vector<8x256xf32>
    %c0_1 = arith.constant 0 : index
    %c0_2 = arith.constant 0 : index
    %1 = vector.load %arg2[%c0_1, %c0_2] : memref<256x864xf32, #tpu.memory_space<vmem>>, vector<256x864xf32>
    %cst = arith.constant dense<0.000000e+00> : vector<8x864xf32>
    %2 = tpu.matmul %0, %1, %cst {dimension_numbers = #tpu.dot_dimension_numbers<[1], [0], [0], [1], [0, 0, 1, 1], [], []>, precision = #tpu.contract_precision<fp32>} : vector<8x256xf32>, vector<256x864xf32>, vector<8x864xf32> -> vector<8x864xf32>
    %c0_3 = arith.constant 0 : index
    %c0_4 = arith.constant 0 : index
    %3 = vector.load %arg3[%c0_3, %c0_4] : memref<1x864xf32, #tpu.memory_space<vmem>>, vector<1x864xf32>
    %4 = vector.broadcast %3 : vector<1x864xf32> to vector<8x864xf32>
    %5 = arith.addf %2, %4 : vector<8x864xf32>
    %c0_5 = arith.constant 0 : index
    %c0_6 = arith.constant 0 : index
    %6 = vector.load %arg4[%c0_5, %c0_6] : memref<8x864xf32, #tpu.memory_space<vmem>>, vector<8x864xf32>
    tpu.vector_store %arg4[%c0_5, %c0_6], %5 {strides = array<i32>} : memref<8x864xf32, #tpu.memory_space<vmem>>, vector<8x864xf32>,
    return
  }
  func.func @transform_0(%arg0: i32) -> (i32, i32) {
    %c0_i32 = arith.constant 0 : i32
    %c0_i32_0 = arith.constant 0 : i32
    return %arg0, %c0_i32 : i32, i32
  }
  func.func @transform_1(%arg0: i32) -> (i32, i32) {
    %c0_i32 = arith.constant 0 : i32
    %c0_i32_0 = arith.constant 0 : i32
    %c0_i32_1 = arith.constant 0 : i32
    return %c0_i32, %c0_i32_0 : i32, i32
  }
  func.func @transform_2(%arg0: i32) -> (i32, i32) {
    %c0_i32 = arith.constant 0 : i32
    %c0_i32_0 = arith.constant 0 : i32
    %c0_i32_1 = arith.constant 0 : i32
    return %c0_i32, %c0_i32_0 : i32, i32
  }
  func.func @transform_3(%arg0: i32) -> (i32, i32) {
    %c0_i32 = arith.constant 0 : i32
    %c0_i32_0 = arith.constant 0 : i32
    return %arg0, %c0_i32 : i32, i32
  }
}

</mosaic_0001>

<llo_original>
// kernel: layer_c1_forward.1
$region0: #{layer_c1_forward.1}
  #allocation0 [shape = 'u32[]', space=smem, size = 0x4, offset = 0x4, fixed_abs, tag = 'smem constant byte address 0x4 - core index']
  #allocation1 [shape = 'u32[72,128]{1,0:T(1,128)}', space=vmem, size = 0x9000, scoped, tag = 'internal scratch']
  %s0 = inlined_call_operand.vmem [shape: f32[8,256], index: 0, kind: input, shape index: {}]
  %s1 = inlined_call_operand.vmem [shape: f32[256,864], index: 1, kind: input, shape index: {}]
  %s2 = inlined_call_operand.vmem [shape: f32[1,864], index: 2, kind: input, shape index: {}]
  %s3 = inlined_call_operand.vmem [shape: f32[8,864], index: 3, kind: output, shape index: {}]
  %s4 = sld [smem:[#allocation0]]
  $region22: #{layer_c1_forward.1} parent=0
    _
  %s6 = ssub.s32 1, %s4
  %s7 = scalar_select 0, %s6, %s4
  // Predicated region
  $region2: #{layer_c1_forward.1} parent=0 // pred_check
    _
  $region3: #{layer_c1_forward.1} parent=0 // pred_check_branch
    %9 = sbr.rel (0) target = $region5
  $region4: #{layer_c1_forward.1} parent=0 // pred_region
    _
  $region5: #{layer_c1_forward.1} parent=0 // pred_fallthru
    _
  // Predicated region
  $region6: #{layer_c1_forward.1} parent=0 // pred_check
    _
  $region7: #{layer_c1_forward.1} parent=0 // pred_check_branch
    %11 = sbr.rel (0) target = $region9
  $region8: #{layer_c1_forward.1} parent=0 // pred_region
    _
  $region9: #{layer_c1_forward.1} parent=0 // pred_fallthru
    _
  // Predicated region
  $region10: #{layer_c1_forward.1} parent=0 // pred_check
    _
  $region11: #{layer_c1_forward.1} parent=0 // pred_check_branch
    %13 = sbr.rel (0) target = $region13
  $region12: #{layer_c1_forward.1} parent=0 // pred_region
    _
  $region13: #{layer_c1_forward.1} parent=0 // pred_fallthru
    _
  %v14 = vld [vmem:[%s0] sm:$0xff]
  %v15 = vld [vmem:[%s0 + $0x8] sm:$0xff]
  %v16 = vld [vmem:[%s1] sm:$0xff]
  %v17 = vld [vmem:[%s1 + $0x8] sm:$0xff]
  %v18 = vld [vmem:[%s1 + $0x10] sm:$0xff]
  %v19 = vld [vmem:[%s1 + $0x18] sm:$0xff]
  %v20 = vld [vmem:[%s1 + $0x20] sm:$0xff]
  %v21 = vld [vmem:[%s1 + $0x28] sm:$0xff]
  %v22 = vld [vmem:[%s1 + $0x30] sm:$0xff]
  %v23 = vld [vmem:[%s1 + $0x38] sm:$0xff]
  %v24 = vld [vmem:[%s1 + $0x40] sm:$0xff]
  %v25 = vld [vmem:[%s1 + $0x48] sm:$0xff]
  %v26 = vld [vmem:[%s1 + $0x50] sm:$0xff]
  %v27 = vld [vmem:[%s1 + $0x58] sm:$0xff]
  %v28 = vld [vmem:[%s1 + $0x60] sm:$0xff]
  %v29 = vld [vmem:[%s1 + $0x68] sm:$0xff]
  %v30 = vld [vmem:[%s1 + $0x70] sm:$0xff]
  %v31 = vld [vmem:[%s1 + $0x78] sm:$0xff]
  %v32 = vld [vmem:[%s1 + $0x80] sm:$0xff]
  %v33 = vld [vmem:[%s1 + $0x88] sm:$0xff]
  %v34 = vld [vmem:[%s1 + $0x90] sm:$0xff]
  %v35 = vld [vmem:[%s1 + $0x98] sm:$0xff]
  %v36 = vld [vmem:[%s1 + $0xa0] sm:$0xff]
  %v37 = vld [vmem:[%s1 + $0xa8] sm:$0xff]
  %v38 = vld [vmem:[%s1 + $0xb0] sm:$0xff]
  %v39 = vld [vmem:[%s1 + $0xb8] sm:$0xff]
  %v40 = vld [vmem:[%s1 + $0xc0] sm:$0xff]
  %v41 = vld [vmem:[%s1 + $0xc8] sm:$0xff]
  %v42 = vld [vmem:[%s1 + $0xd0] sm:$0xff]
  %v43 = vld [vmem:[%s1 + $0xd8] sm:$0xff]
  %v44 = vld [vmem:[%s1 + $0xe0] sm:$0xff]
  %v45 = vld [vmem:[%s1 + $0xe8] sm:$0xff]
  %v46 = vld [vmem:[%s1 + $0xf0] sm:$0xff]
  %v47 = vld [vmem:[%s1 + $0xf8] sm:$0xff]
  %v48 = vld [vmem:[%s1 + $0x100] sm:$0xff]
  %v49 = vld [vmem:[%s1 + $0x108] sm:$0xff]
  %v50 = vld [vmem:[%s1 + $0x110] sm:$0xff]
  %v51 = vld [vmem:[%s1 + $0x118] sm:$0xff]
  %v52 = vld [vmem:[%s1 + $0x120] sm:$0xff]
  %v53 = vld [vmem:[%s1 + $0x128] sm:$0xff]
  %v54 = vld [vmem:[%s1 + $0x130] sm:$0xff]
  %v55 = vld [vmem:[%s1 + $0x138] sm:$0xff]
  %v56 = vld [vmem:[%s1 + $0x140] sm:$0xff]
  %v57 = vld [vmem:[%s1 + $0x148] sm:$0xff]
  %v58 = vld [vmem:[%s1 + $0x150] sm:$0xff]
  %v59 = vld [vmem:[%s1 + $0x158] sm:$0xff]
  %v60 = vld [vmem:[%s1 + $0x160] sm:$0xff]
  %v61 = vld [vmem:[%s1 + $0x168] sm:$0xff]
  %v62 = vld [vmem:[%s1 + $0x170] sm:$0xff]
  %v63 = vld [vmem:[%s1 + $0x178] sm:$0xff]
  %v64 = vld [vmem:[%s1 + $0x180] sm:$0xff]
  %v65 = vld [vmem:[%s1 + $0x188] sm:$0xff]
  %v66 = vld [vmem:[%s1 + $0x190] sm:$0xff]
  %v67 = vld [vmem:[%s1 + $0x198] sm:$0xff]
  %v68 = vld [vmem:[%s1 + $0x1a0] sm:$0xff]
  %v69 = vld [vmem:[%s1 + $0x1a8] sm:$0xff]
  %v70 = vld [vmem:[%s1 + $0x1b0] sm:$0xff]
  %v71 = vld [vmem:[%s1 + $0x1b8] sm:$0xff]
  %v72 = vld [vmem:[%s1 + $0x1c0] sm:$0xff]
  %v73 = vld [vmem:[%s1 + $0x1c8] sm:$0xff]
  %v74 = vld [vmem:[%s1 + $0x1d0] sm:$0xff]
  %v75 = vld [vmem:[%s1 + $0x1d8] sm:$0xff]
  %v76 = vld [vmem:[%s1 + $0x1e0] sm:$0xff]
  %v77 = vld [vmem:[%s1 + $0x1e8] sm:$0xff]
  %v78 = vld [vmem:[%s1 + $0x1f0] sm:$0xff]
  %v79 = vld [vmem:[%s1 + $0x1f8] sm:$0xff]
  %v80 = vld [vmem:[%s1 + $0x200] sm:$0xff]
  %v81 = vld [vmem:[%s1 + $0x208] sm:$0xff]
  %v82 = vld [vmem:[%s1 + $0x210] sm:$0xff]
  %v83 = vld [vmem:[%s1 + $0x218] sm:$0xff]
  %v84 = vld [vmem:[%s1 + $0x220] sm:$0xff]
  %v85 = vld [vmem:[%s1 + $0x228] sm:$0xff]
  %v86 = vld [vmem:[%s1 + $0x230] sm:$0xff]
  %v87 = vld [vmem:[%s1 + $0x238] sm:$0xff]
  %v88 = vld [vmem:[%s1 + $0x240] sm:$0xff]
  %v89 = vld [vmem:[%s1 + $0x248] sm:$0xff]
  %v90 = vld [vmem:[%s1 + $0x250] sm:$0xff]
  %v91 = vld [vmem:[%s1 + $0x258] sm:$0xff]
  %v92 = vld [vmem:[%s1 + $0x260] sm:$0xff]
  %v93 = vld [vmem:[%s1 + $0x268] sm:$0xff]
  %v94 = vld [vmem:[%s1 + $0x270] sm:$0xff]
  %v95 = vld [vmem:[%s1 + $0x278] sm:$0xff]
  %v96 = vld [vmem:[%s1 + $0x280] sm:$0xff]
  %v97 = vld [vmem:[%s1 + $0x288] sm:$0xff]
  %v98 = vld [vmem:[%s1 + $0x290] sm:$0xff]
  %v99 = vld [vmem:[%s1 + $0x298] sm:$0xff]
  %v100 = vld [vmem:[%s1 + $0x2a0] sm:$0xff]
  %v101 = vld [vmem:[%s1 + $0x2a8] sm:$0xff]
  %v102 = vld [vmem:[%s1 + $0x2b0] sm:$0xff]
  %v103 = vld [vmem:[%s1 + $0x2b8] sm:$0xff]
  %v104 = vld [vmem:[%s1 + $0x2c0] sm:$0xff]
  %v105 = vld [vmem:[%s1 + $0x2c8] sm:$0xff]
  %v106 = vld [vmem:[%s1 + $0x2d0] sm:$0xff]
  %v107 = vld [vmem:[%s1 + $0x2d8] sm:$0xff]
  %v108 = vld [vmem:[%s1 + $0x2e0] sm:$0xff]
  %v109 = vld [vmem:[%s1 + $0x2e8] sm:$0xff]
  %v110 = vld [vmem:[%s1 + $0x2f0] sm:$0xff]
  %v111 = vld [vmem:[%s1 + $0x2f8] sm:$0xff]
  %v112 = vld [vmem:[%s1 + $0x300] sm:$0xff]
  %v113 = vld [vmem:[%s1 + $0x308] sm:$0xff]
  %v114 = vld [vmem:[%s1 + $0x310] sm:$0xff]
  %v115 = vld [vmem:[%s1 + $0x318] sm:$0xff]
  %v116 = vld [vmem:[%s1 + $0x320] sm:$0xff]
  %v117 = vld [vmem:[%s1 + $0x328] sm:$0xff]
  %v118 = vld [vmem:[%s1 + $0x330] sm:$0xff]
  %v119 = vld [vmem:[%s1 + $0x338] sm:$0xff]
  %v120 = vld [vmem:[%s1 + $0x340] sm:$0xff]
  %v121 = vld [vmem:[%s1 + $0x348] sm:$0xff]
  %v122 = vld [vmem:[%s1 + $0x350] sm:$0xff]
  %v123 = vld [vmem:[%s1 + $0x358] sm:$0xff]
  %v124 = vld [vmem:[%s1 + $0x360] sm:$0xff]
  %v125 = vld [vmem:[%s1 + $0x368] sm:$0xff]
  %v126 = vld [vmem:[%s1 + $0x370] sm:$0xff]
  %v127 = vld [vmem:[%s1 + $0x378] sm:$0xff]
  %v128 = vld [vmem:[%s1 + $0x380] sm:$0xff]
  %v129 = vld [vmem:[%s1 + $0x388] sm:$0xff]
  %v130 = vld [vmem:[%s1 + $0x390] sm:$0xff]
  %v131 = vld [vmem:[%s1 + $0x398] sm:$0xff]
  %v132 = vld [vmem:[%s1 + $0x3a0] sm:$0xff]
  %v133 = vld [vmem:[%s1 + $0x3a8] sm:$0xff]
  %v134 = vld [vmem:[%s1 + $0x3b0] sm:$0xff]
  %v135 = vld [vmem:[%s1 + $0x3b8] sm:$0xff]
  %v136 = vld [vmem:[%s1 + $0x3c0] sm:$0xff]
  %v137 = vld [vmem:[%s1 + $0x3c8] sm:$0xff]
  %v138 = vld [vmem:[%s1 + $0x3d0] sm:$0xff]
  %v139 = vld [vmem:[%s1 + $0x3d8] sm:$0xff]
  %v140 = vld [vmem:[%s1 + $0x3e0] sm:$0xff]
  %v141 = vld [vmem:[%s1 + $0x3e8] sm:$0xff]
  %v142 = vld [vmem:[%s1 + $0x3f0] sm:$0xff]
  %v143 = vld [vmem:[%s1 + $0x3f8] sm:$0xff]
  %v144 = vld [vmem:[%s1 + $0x400] sm:$0xff]
  %v145 = vld [vmem:[%s1 + $0x408] sm:$0xff]
  %v146 = vld [vmem:[%s1 + $0x410] sm:$0xff]
  %v147 = vld [vmem:[%s1 + $0x418] sm:$0xff]
  %v148 = vld [vmem:[%s1 + $0x420] sm:$0xff]
  %v149 = vld [vmem:[%s1 + $0x428] sm:$0xff]
  %v150 = vld [vmem:[%s1 + $0x430] sm:$0xff]
  %v151 = vld [vmem:[%s1 + $0x438] sm:$0xff]
  %v152 = vld [vmem:[%s1 + $0x440] sm:$0xff]
  %v153 = vld [vmem:[%s1 + $0x448] sm:$0xff]
  %v154 = vld [vmem:[%s1 + $0x450] sm:$0xff]
  %v155 = vld [vmem:[%s1 + $0x458] sm:$0xff]
  %v156 = vld [vmem:[%s1 + $0x460] sm:$0xff]
  %v157 = vld [vmem:[%s1 + $0x468] sm:$0xff]
  %v158 = vld [vmem:[%s1 + $0x470] sm:$0xff]
  %v159 = vld [vmem:[%s1 + $0x478] sm:$0xff]
  %v160 = vld [vmem:[%s1 + $0x480] sm:$0xff]
  %v161 = vld [vmem:[%s1 + $0x488] sm:$0xff]
  %v162 = vld [vmem:[%s1 + $0x490] sm:$0xff]
  %v163 = vld [vmem:[%s1 + $0x498] sm:$0xff]
  %v164 = vld [vmem:[%s1 + $0x4a0] sm:$0xff]
  %v165 = vld [vmem:[%s1 + $0x4a8] sm:$0xff]
  %v166 = vld [vmem:[%s1 + $0x4b0] sm:$0xff]
  %v167 = vld [vmem:[%s1 + $0x4b8] sm:$0xff]
  %v168 = vld [vmem:[%s1 + $0x4c0] sm:$0xff]
  %v169 = vld [vmem:[%s1 + $0x4c8] sm:$0xff]
  %v170 = vld [vmem:[%s1 + $0x4d0] sm:$0xff]
  %v171 = vld [vmem:[%s1 + $0x4d8] sm:$0xff]
  %v172 = vld [vmem:[%s1 + $0x4e0] sm:$0xff]
  %v173 = vld [vmem:[%s1 + $0x4e8] sm:$0xff]
  %v174 = vld [vmem:[%s1 + $0x4f0] sm:$0xff]
  %v175 = vld [vmem:[%s1 + $0x4f8] sm:$0xff]
  %v176 = vld [vmem:[%s1 + $0x500] sm:$0xff]
  %v177 = vld [vmem:[%s1 + $0x508] sm:$0xff]
  %v178 = vld [vmem:[%s1 + $0x510] sm:$0xff]
  %v179 = vld [vmem:[%s1 + $0x518] sm:$0xff]
  %v180 = vld [vmem:[%s1 + $0x520] sm:$0xff]
  %v181 = vld [vmem:[%s1 + $0x528] sm:$0xff]
  %v182 = vld [vmem:[%s1 + $0x530] sm:$0xff]
  %v183 = vld [vmem:[%s1 + $0x538] sm:$0xff]
  %v184 = vld [vmem:[%s1 + $0x540] sm:$0xff]
  %v185 = vld [vmem:[%s1 + $0x548] sm:$0xff]
  %v186 = vld [vmem:[%s1 + $0x550] sm:$0xff]
  %v187 = vld [vmem:[%s1 + $0x558] sm:$0xff]
  %v188 = vld [vmem:[%s1 + $0x560] sm:$0xff]
  %v189 = vld [vmem:[%s1 + $0x568] sm:$0xff]
  %v190 = vld [vmem:[%s1 + $0x570] sm:$0xff]
  %v191 = vld [vmem:[%s1 + $0x578] sm:$0xff]
  %v192 = vld [vmem:[%s1 + $0x580] sm:$0xff]
  %v193 = vld [vmem:[%s1 + $0x588] sm:$0xff]
  %v194 = vld [vmem:[%s1 + $0x590] sm:$0xff]
  %v195 = vld [vmem:[%s1 + $0x598] sm:$0xff]
  %v196 = vld [vmem:[%s1 + $0x5a0] sm:$0xff]
  %v197 = vld [vmem:[%s1 + $0x5a8] sm:$0xff]
  %v198 = vld [vmem:[%s1 + $0x5b0] sm:$0xff]
  %v199 = vld [vmem:[%s1 + $0x5b8] sm:$0xff]
  %v200 = vld [vmem:[%s1 + $0x5c0] sm:$0xff]
  %v201 = vld [vmem:[%s1 + $0x5c8] sm:$0xff]
  %v202 = vld [vmem:[%s1 + $0x5d0] sm:$0xff]
  %v203 = vld [vmem:[%s1 + $0x5d8] sm:$0xff]
  %v204 = vld [vmem:[%s1 + $0x5e0] sm:$0xff]
  %v205 = vld [vmem:[%s1 + $0x5e8] sm:$0xff]
  %v206 = vld [vmem:[%s1 + $0x5f0] sm:$0xff]
  %v207 = vld [vmem:[%s1 + $0x5f8] sm:$0xff]
  %v208 = vld [vmem:[%s1 + $0x600] sm:$0xff]
  %v209 = vld [vmem:[%s1 + $0x608] sm:$0xff]
  %v210 = vld [vmem:[%s1 + $0x610] sm:$0xff]
  %v211 = vld [vmem:[%s1 + $0x618] sm:$0xff]
  %v212 = vld [vmem:[%s1 + $0x620] sm:$0xff]
  %v213 = vld [vmem:[%s1 + $0x628] sm:$0xff]
  %v214 = vld [vmem:[%s1 + $0x630] sm:$0xff]
  %v215 = vld [vmem:[%s1 + $0x638] sm:$0xff]
  %v216 = vld [vmem:[%s1 + $0x640] sm:$0xff]
  %v217 = vld [vmem:[%s1 + $0x648] sm:$0xff]
  %v218 = vld [vmem:[%s1 + $0x650] sm:$0xff]
  %v219 = vld [vmem:[%s1 + $0x658] sm:$0xff]
  %v220 = vld [vmem:[%s1 + $0x660] sm:$0xff]
  %v221 = vld [vmem:[%s1 + $0x668] sm:$0xff]
  %v222 = vld [vmem:[%s1 + $0x670] sm:$0xff]
  %v223 = vld [vmem:[%s1 + $0x678] sm:$0xff]
  %v224 = vld [vmem:[%s1 + $0x680] sm:$0xff]
  %v225 = vld [vmem:[%s1 + $0x688] sm:$0xff]
  %v226 = vld [vmem:[%s1 + $0x690] sm:$0xff]
  %v227 = vld [vmem:[%s1 + $0x698] sm:$0xff]
  %v228 = vld [vmem:[%s1 + $0x6a0] sm:$0xff]
  %v229 = vld [vmem:[%s1 + $0x6a8] sm:$0xff]
  %v230 = vld [vmem:[%s1 + $0x6b0] sm:$0xff]
  %v231 = vld [vmem:[%s1 + $0x6b8] sm:$0xff]
  %v232 = vld [vmem:[%s1 + $0x6c0] sm:$0xff]
  %v233 = vld [vmem:[%s1 + $0x6c8] sm:$0xff]
  %v234 = vld [vmem:[%s1 + $0x6d0] sm:$0xff]
  %v235 = vld [vmem:[%s1 + $0x6d8] sm:$0xff]
  %v236 = vld [vmem:[%s1 + $0x6e0] sm:$0xff]
  %v237 = vld [vmem:[%s1 + $0x6e8] sm:$0xff]
  %v238 = vld [vmem:[%s1 + $0x6f0] sm:$0xff]
  %v239 = vld [vmem:[%s1 + $0x6f8] sm:$0xff]
  %v240 = vld [vmem:[%s2] sm:$0x7f]
  %v242 = vperm.slane %v240, 0
  %v243 = vperm.slane %v240, 1
  %v244 = vperm.slane %v240, 2
  %v245 = vperm.slane %v240, 3
  %v246 = vperm.slane %v240, 4
  %v247 = vperm.slane %v240, 5
  %v248 = vperm.slane %v240, 6
  %v256 = vand.u32 %v121, 4294901760
  %257 = vmatpush.msra.mxu0 %v256
  %v258 = vand.u32 %v114, 4294901760
  %259 = vmatpush.msra.mxu0 %v258
  %v260 = vand.u32 %v107, 4294901760
  %261 = vmatpush.msra.mxu0 %v260
  %v262 = vand.u32 %v100, 4294901760
  %263 = vmatpush.msra.mxu0 %v262
  %v264 = vand.u32 %v93, 4294901760
  %265 = vmatpush.msra.mxu0 %v264
  %v266 = vand.u32 %v86, 4294901760
  %267 = vmatpush.msra.mxu0 %v266
  %v268 = vand.u32 %v79, 4294901760
  %269 = vmatpush.msra.mxu0 %v268
  %v270 = vand.u32 %v72, 4294901760
  %271 = vmatpush.msra.mxu0 %v270
  %v272 = vand.u32 %v65, 4294901760
  %273 = vmatpush.msra.mxu0 %v272
  %v274 = vand.u32 %v58, 4294901760
  %275 = vmatpush.msra.mxu0 %v274
  %v276 = vand.u32 %v51, 4294901760
  %277 = vmatpush.msra.mxu0 %v276
  %v278 = vand.u32 %v44, 4294901760
  %279 = vmatpush.msra.mxu0 %v278
  %v280 = vand.u32 %v37, 4294901760
  %281 = vmatpush.msra.mxu0 %v280
  %v282 = vand.u32 %v30, 4294901760
  %283 = vmatpush.msra.mxu0 %v282
  %v284 = vand.u32 %v23, 4294901760
  %285 = vmatpush.msra.mxu0 %v284
  %v286 = vand.u32 %v16, 4294901760
  %287 = vmatpush.msra.mxu0 %v286
  %v288 = vand.u32 %v14, 4294901760
  %v289 = vsub.f32 %v14, %v288
  %v290 = vand.u32 %v289, 4294901760
  %v291 = vsub.f32 %v289, %v290
  %v292 = vand.u32 %v291, 4294901760
  %293 = vmatmul.f32.gmra.mxu0 %v292
  %v294 = vpop.f32.mrf.mxu0
  %v295 = vadd.f32 %v242, %v294
  %296 = vdwg.mxu0
  %v297 = vand.u32 %v121, 4294901760
  %v298 = vsub.f32 %v121, %v297
  %v299 = vand.u32 %v298, 4294901760
  %v300 = vsub.f32 %v298, %v299
  %v301 = vand.u32 %v300, 4294901760
  %302 = vmatpush.msra.mxu0 %v301
  %v303 = vand.u32 %v114, 4294901760
  %v304 = vsub.f32 %v114, %v303
  %v305 = vand.u32 %v304, 4294901760
  %v306 = vsub.f32 %v304, %v305
  %v307 = vand.u32 %v306, 4294901760
  %308 = vmatpush.msra.mxu0 %v307
  %v309 = vand.u32 %v107, 4294901760
  %v310 = vsub.f32 %v107, %v309
  %v311 = vand.u32 %v310, 4294901760
  %v312 = vsub.f32 %v310, %v311
  %v313 = vand.u32 %v312, 4294901760
  %314 = vmatpush.msra.mxu0 %v313
  %v315 = vand.u32 %v100, 4294901760
  %v316 = vsub.f32 %v100, %v315
  %v317 = vand.u32 %v316, 4294901760
  %v318 = vsub.f32 %v316, %v317
  %v319 = vand.u32 %v318, 4294901760
  %320 = vmatpush.msra.mxu0 %v319
  %v321 = vand.u32 %v93, 4294901760
  %v322 = vsub.f32 %v93, %v321
  %v323 = vand.u32 %v322, 4294901760
  %v324 = vsub.f32 %v322, %v323
  %v325 = vand.u32 %v324, 4294901760
  %326 = vmatpush.msra.mxu0 %v325
  %v327 = vand.u32 %v86, 4294901760
  %v328 = vsub.f32 %v86, %v327
  %v329 = vand.u32 %v328, 4294901760
  %v330 = vsub.f32 %v328, %v329
  %v331 = vand.u32 %v330, 4294901760
  %332 = vmatpush.msra.mxu0 %v331
  %v333 = vand.u32 %v79, 4294901760
  %v334 = vsub.f32 %v79, %v333
  %v335 = vand.u32 %v334, 4294901760
  %v336 = vsub.f32 %v334, %v335
  %v337 = vand.u32 %v336, 4294901760
  %338 = vmatpush.msra.mxu0 %v337
  %v339 = vand.u32 %v72, 4294901760
  %v340 = vsub.f32 %v72, %v339
  %v341 = vand.u32 %v340, 4294901760
  %v342 = vsub.f32 %v340, %v341
  %v343 = vand.u32 %v342, 4294901760
  %344 = vmatpush.msra.mxu0 %v343
  %v345 = vand.u32 %v65, 4294901760
  %v346 = vsub.f32 %v65, %v345
  %v347 = vand.u32 %v346, 4294901760
  %v348 = vsub.f32 %v346, %v347
  %v349 = vand.u32 %v348, 4294901760
  %350 = vmatpush.msra.mxu0 %v349
  %v351 = vand.u32 %v58, 4294901760
  %v352 = vsub.f32 %v58, %v351
  %v353 = vand.u32 %v352, 4294901760
  %v354 = vsub.f32 %v352, %v353
  %v355 = vand.u32 %v354, 4294901760
  %356 = vmatpush.msra.mxu0 %v355
  %v357 = vand.u32 %v51, 4294901760
  %v358 = vsub.f32 %v51, %v357
  %v359 = vand.u32 %v358, 4294901760
  %v360 = vsub.f32 %v358, %v359
  %v361 = vand.u32 %v360, 4294901760
  %362 = vmatpush.msra.mxu0 %v361
  %v363 = vand.u32 %v44, 4294901760
  %v364 = vsub.f32 %v44, %v363
  %v365 = vand.u32 %v364, 4294901760
  %v366 = vsub.f32 %v364, %v365
  %v367 = vand.u32 %v366, 4294901760
  %368 = vmatpush.msra.mxu0 %v367
  %v369 = vand.u32 %v37, 4294901760
  %v370 = vsub.f32 %v37, %v369
  %v371 = vand.u32 %v370, 4294901760
  %v372 = vsub.f32 %v370, %v371
  %v373 = vand.u32 %v372, 4294901760
  %374 = vmatpush.msra.mxu0 %v373
  %v375 = vand.u32 %v30, 4294901760
  %v376 = vsub.f32 %v30, %v375
  %v377 = vand.u32 %v376, 4294901760
  %v378 = vsub.f32 %v376, %v377
  %v379 = vand.u32 %v378, 4294901760
  %380 = vmatpush.msra.mxu0 %v379
  %v381 = vand.u32 %v23, 4294901760
  %v382 = vsub.f32 %v23, %v381
  %v383 = vand.u32 %v382, 4294901760
  %v384 = vsub.f32 %v382, %v383
  %v385 = vand.u32 %v384, 4294901760
  %386 = vmatpush.msra.mxu0 %v385
  %v387 = vand.u32 %v16, 4294901760
  %v388 = vsub.f32 %v16, %v387
  %v389 = vand.u32 %v388, 4294901760
  %v390 = vsub.f32 %v388, %v389
  %v391 = vand.u32 %v390, 4294901760
  %392 = vmatpush.msra.mxu0 %v391
  %v393 = vand.u32 %v14, 4294901760
  %394 = vmatmul.f32.gmra.mxu0 %v393
  %v395 = vpop.f32.mrf.mxu0
  %v396 = vadd.f32 %v295, %v395
  %397 = vdwg.mxu0
  %v398 = vand.u32 %v121, 4294901760
  %v399 = vsub.f32 %v121, %v398
  %400 = vmatpush.msra.mxu0 %v399
  %v401 = vand.u32 %v114, 4294901760
  %v402 = vsub.f32 %v114, %v401
  %403 = vmatpush.msra.mxu0 %v402
  %v404 = vand.u32 %v107, 4294901760
  %v405 = vsub.f32 %v107, %v404
  %406 = vmatpush.msra.mxu0 %v405
  %v407 = vand.u32 %v100, 4294901760
  %v408 = vsub.f32 %v100, %v407
  %409 = vmatpush.msra.mxu0 %v408
  %v410 = vand.u32 %v93, 4294901760
  %v411 = vsub.f32 %v93, %v410
  %412 = vmatpush.msra.mxu0 %v411
  %v413 = vand.u32 %v86, 4294901760
  %v414 = vsub.f32 %v86, %v413
  %415 = vmatpush.msra.mxu0 %v414
  %v416 = vand.u32 %v79, 4294901760
  %v417 = vsub.f32 %v79, %v416
  %418 = vmatpush.msra.mxu0 %v417
  %v419 = vand.u32 %v72, 4294901760
  %v420 = vsub.f32 %v72, %v419
  %421 = vmatpush.msra.mxu0 %v420
  %v422 = vand.u32 %v65, 4294901760
  %v423 = vsub.f32 %v65, %v422
  %424 = vmatpush.msra.mxu0 %v423
  %v425 = vand.u32 %v58, 4294901760
  %v426 = vsub.f32 %v58, %v425
  %427 = vmatpush.msra.mxu0 %v426
  %v428 = vand.u32 %v51, 4294901760
  %v429 = vsub.f32 %v51, %v428
  %430 = vmatpush.msra.mxu0 %v429
  %v431 = vand.u32 %v44, 4294901760
  %v432 = vsub.f32 %v44, %v431
  %433 = vmatpush.msra.mxu0 %v432
  %v434 = vand.u32 %v37, 4294901760
  %v435 = vsub.f32 %v37, %v434
  %436 = vmatpush.msra.mxu0 %v435
  %v437 = vand.u32 %v30, 4294901760
  %v438 = vsub.f32 %v30, %v437
  %439 = vmatpush.msra.mxu0 %v438
  %v440 = vand.u32 %v23, 4294901760
  %v441 = vsub.f32 %v23, %v440
  %442 = vmatpush.msra.mxu0 %v441
  %v443 = vand.u32 %v16, 4294901760
  %v444 = vsub.f32 %v16, %v443
  %445 = vmatpush.msra.mxu0 %v444
  %v446 = vand.u32 %v14, 4294901760
  %v447 = vsub.f32 %v14, %v446
  %448 = vmatmul.f32.gmra.mxu0 %v447
  %v449 = vpop.f32.mrf.mxu0
  %v450 = vadd.f32 %v396, %v449
  %451 = vdwg.mxu0
  %v452 = vand.u32 %v121, 4294901760
  %453 = vmatpush.msra.mxu0 %v452
  %v454 = vand.u32 %v114, 4294901760
  %455 = vmatpush.msra.mxu0 %v454
  %v456 = vand.u32 %v107, 4294901760
  %457 = vmatpush.msra.mxu0 %v456
  %v458 = vand.u32 %v100, 4294901760
  %459 = vmatpush.msra.mxu0 %v458
  %v460 = vand.u32 %v93, 4294901760
  %461 = vmatpush.msra.mxu0 %v460
  %v462 = vand.u32 %v86, 4294901760
  %463 = vmatpush.msra.mxu0 %v462
  %v464 = vand.u32 %v79, 4294901760
  %465 = vmatpush.msra.mxu0 %v464
  %v466 = vand.u32 %v72, 4294901760
  %467 = vmatpush.msra.mxu0 %v466
  %v468 = vand.u32 %v65, 4294901760
  %469 = vmatpush.msra.mxu0 %v468
  %v470 = vand.u32 %v58, 4294901760
  %471 = vmatpush.msra.mxu0 %v470
  %v472 = vand.u32 %v51, 4294901760
  %473 = vmatpush.msra.mxu0 %v472
  %v474 = vand.u32 %v44, 4294901760
  %475 = vmatpush.msra.mxu0 %v474
  %v476 = vand.u32 %v37, 4294901760
  %477 = vmatpush.msra.mxu0 %v476
  %v478 = vand.u32 %v30, 4294901760
  %479 = vmatpush.msra.mxu0 %v478
  %v480 = vand.u32 %v23, 4294901760
  %481 = vmatpush.msra.mxu0 %v480
  %v482 = vand.u32 %v16, 4294901760
  %483 = vmatpush.msra.mxu0 %v482
  %v484 = vand.u32 %v14, 4294901760
  %v485 = vsub.f32 %v14, %v484
  %v486 = vand.u32 %v485, 4294901760
  %487 = vmatmul.f32.gmra.mxu0 %v486
  %v488 = vpop.f32.mrf.mxu0
  %v489 = vadd.f32 %v450, %v488
  %490 = vdwg.mxu0
  %v491 = vand.u32 %v121, 4294901760
  %v492 = vsub.f32 %v121, %v491
  %v493 = vand.u32 %v492, 4294901760
  %494 = vmatpush.msra.mxu0 %v493
  %v495 = vand.u32 %v114, 4294901760
  %v496 = vsub.f32 %v114, %v495
  %v497 = vand.u32 %v496, 4294901760
  %498 = vmatpush.msra.mxu0 %v497
  %v499 = vand.u32 %v107, 4294901760
  %v500 = vsub.f32 %v107, %v499
  %v501 = vand.u32 %v500, 4294901760
  %502 = vmatpush.msra.mxu0 %v501
  %v503 = vand.u32 %v100, 4294901760
  %v504 = vsub.f32 %v100, %v503
  %v505 = vand.u32 %v504, 4294901760
  %506 = vmatpush.msra.mxu0 %v505
  %v507 = vand.u32 %v93, 4294901760
  %v508 = vsub.f32 %v93, %v507
  %v509 = vand.u32 %v508, 4294901760
  %510 = vmatpush.msra.mxu0 %v509
  %v511 = vand.u32 %v86, 4294901760
  %v512 = vsub.f32 %v86, %v511
  %v513 = vand.u32 %v512, 4294901760
  %514 = vmatpush.msra.mxu0 %v513
  %v515 = vand.u32 %v79, 4294901760
  %v516 = vsub.f32 %v79, %v515
  %v517 = vand.u32 %v516, 4294901760
  %518 = vmatpush.msra.mxu0 %v517
  %v519 = vand.u32 %v72, 4294901760
  %v520 = vsub.f32 %v72, %v519
  %v521 = vand.u32 %v520, 4294901760
  %522 = vmatpush.msra.mxu0 %v521
  %v523 = vand.u32 %v65, 4294901760
  %v524 = vsub.f32 %v65, %v523
  %v525 = vand.u32 %v524, 4294901760
  %526 = vmatpush.msra.mxu0 %v525
  %v527 = vand.u32 %v58, 4294901760
  %v528 = vsub.f32 %v58, %v527
  %v529 = vand.u32 %v528, 4294901760
  %530 = vmatpush.msra.mxu0 %v529
  %v531 = vand.u32 %v51, 4294901760
  %v532 = vsub.f32 %v51, %v531
  %v533 = vand.u32 %v532, 4294901760
  %534 = vmatpush.msra.mxu0 %v533
  %v535 = vand.u32 %v44, 4294901760
  %v536 = vsub.f32 %v44, %v535
  %v537 = vand.u32 %v536, 4294901760
  %538 = vmatpush.msra.mxu0 %v537
  %v539 = vand.u32 %v37, 4294901760
  %v540 = vsub.f32 %v37, %v539
  %v541 = vand.u32 %v540, 4294901760
  %542 = vmatpush.msra.mxu0 %v541
  %v543 = vand.u32 %v30, 4294901760
  %v544 = vsub.f32 %v30, %v543
  %v545 = vand.u32 %v544, 4294901760
  %546 = vmatpush.msra.mxu0 %v545
  %v547 = vand.u32 %v23, 4294901760
  %v548 = vsub.f32 %v23, %v547
  %v549 = vand.u32 %v548, 4294901760
  %550 = vmatpush.msra.mxu0 %v549
  %v551 = vand.u32 %v16, 4294901760
  %v552 = vsub.f32 %v16, %v551
  %v553 = vand.u32 %v552, 4294901760
  %554 = vmatpush.msra.mxu0 %v553
  %v555 = vand.u32 %v14, 4294901760
  %556 = vmatmul.f32.gmra.mxu0 %v555
  %v557 = vpop.f32.mrf.mxu0
  %v558 = vadd.f32 %v489, %v557
  %559 = vdwg.mxu0
  %v560 = vand.u32 %v121, 4294901760
  %561 = vmatpush.msra.mxu0 %v560
  %v562 = vand.u32 %v114, 4294901760
  %563 = vmatpush.msra.mxu0 %v562
  %v564 = vand.u32 %v107, 4294901760
  %565 = vmatpush.msra.mxu0 %v564
  %v566 = vand.u32 %v100, 4294901760
  %567 = vmatpush.msra.mxu0 %v566
  %v568 = vand.u32 %v93, 4294901760
  %569 = vmatpush.msra.mxu0 %v568
  %v570 = vand.u32 %v86, 4294901760
  %571 = vmatpush.msra.mxu0 %v570
  %v572 = vand.u32 %v79, 4294901760
  %573 = vmatpush.msra.mxu0 %v572
  %v574 = vand.u32 %v72, 4294901760
  %575 = vmatpush.msra.mxu0 %v574
  %v576 = vand.u32 %v65, 4294901760
  %577 = vmatpush.msra.mxu0 %v576
  %v578 = vand.u32 %v58, 4294901760
  %579 = vmatpush.msra.mxu0 %v578
  %v580 = vand.u32 %v51, 4294901760
  %581 = vmatpush.msra.mxu0 %v580
  %v582 = vand.u32 %v44, 4294901760
  %583 = vmatpush.msra.mxu0 %v582
  %v584 = vand.u32 %v37, 4294901760
  %585 = vmatpush.msra.mxu0 %v584
  %v586 = vand.u32 %v30, 4294901760
  %587 = vmatpush.msra.mxu0 %v586
  %v588 = vand.u32 %v23, 4294901760
  %589 = vmatpush.msra.mxu0 %v588
  %v590 = vand.u32 %v16, 4294901760
  %591 = vmatpush.msra.mxu0 %v590
  %v592 = vand.u32 %v14, 4294901760
  %593 = vmatmul.f32.gmra.mxu0 %v592
  %v594 = vpop.f32.mrf.mxu0
  %v595 = vadd.f32 %v558, %v594
  %596 = vdwg.mxu0
  %v597 = vand.u32 %v233, 4294901760
  %598 = vmatpush.msra.mxu0 %v597
  %v599 = vand.u32 %v226, 4294901760
  %600 = vmatpush.msra.mxu0 %v599
  %v601 = vand.u32 %v219, 4294901760
  %602 = vmatpush.msra.mxu0 %v601
  %v603 = vand.u32 %v212, 4294901760
  %604 = vmatpush.msra.mxu0 %v603
  %v605 = vand.u32 %v205, 4294901760
  %606 = vmatpush.msra.mxu0 %v605
  %v607 = vand.u32 %v198, 4294901760
  %608 = vmatpush.msra.mxu0 %v607
  %v609 = vand.u32 %v191, 4294901760
  %610 = vmatpush.msra.mxu0 %v609
  %v611 = vand.u32 %v184, 4294901760
  %612 = vmatpush.msra.mxu0 %v611
  %v613 = vand.u32 %v177, 4294901760
  %614 = vmatpush.msra.mxu0 %v613
  %v615 = vand.u32 %v170, 4294901760
  %616 = vmatpush.msra.mxu0 %v615
  %v617 = vand.u32 %v163, 4294901760
  %618 = vmatpush.msra.mxu0 %v617
  %v619 = vand.u32 %v156, 4294901760
  %620 = vmatpush.msra.mxu0 %v619
  %v621 = vand.u32 %v149, 4294901760
  %622 = vmatpush.msra.mxu0 %v621
  %v623 = vand.u32 %v142, 4294901760
  %624 = vmatpush.msra.mxu0 %v623
  %v625 = vand.u32 %v135, 4294901760
  %626 = vmatpush.msra.mxu0 %v625
  %v627 = vand.u32 %v128, 4294901760
  %628 = vmatpush.msra.mxu0 %v627
  %v629 = vand.u32 %v15, 4294901760
  %v630 = vsub.f32 %v15, %v629
  %v631 = vand.u32 %v630, 4294901760
  %v632 = vsub.f32 %v630, %v631
  %v633 = vand.u32 %v632, 4294901760
  %634 = vmatmul.f32.gmra.mxu0 %v633
  %v635 = vpop.f32.mrf.mxu0
  %v636 = vadd.f32 %v595, %v635
  %637 = vdwg.mxu0
  %v638 = vand.u32 %v233, 4294901760
  %v639 = vsub.f32 %v233, %v638
  %v640 = vand.u32 %v639, 4294901760
  %v641 = vsub.f32 %v639, %v640
  %v642 = vand.u32 %v641, 4294901760
  %643 = vmatpush.msra.mxu0 %v642
  %v644 = vand.u32 %v226, 4294901760
  %v645 = vsub.f32 %v226, %v644
  %v646 = vand.u32 %v645, 4294901760
  %v647 = vsub.f32 %v645, %v646
  %v648 = vand.u32 %v647, 4294901760
  %649 = vmatpush.msra.mxu0 %v648
  %v650 = vand.u32 %v219, 4294901760
  %v651 = vsub.f32 %v219, %v650
  %v652 = vand.u32 %v651, 4294901760
  %v653 = vsub.f32 %v651, %v652
  %v654 = vand.u32 %v653, 4294901760
  %655 = vmatpush.msra.mxu0 %v654
  %v656 = vand.u32 %v212, 4294901760
  %v657 = vsub.f32 %v212, %v656
  %v658 = vand.u32 %v657, 4294901760
  %v659 = vsub.f32 %v657, %v658
  %v660 = vand.u32 %v659, 4294901760
  %661 = vmatpush.msra.mxu0 %v660
  %v662 = vand.u32 %v205, 4294901760
  %v663 = vsub.f32 %v205, %v662
  %v664 = vand.u32 %v663, 4294901760
  %v665 = vsub.f32 %v663, %v664
  %v666 = vand.u32 %v665, 4294901760
  %667 = vmatpush.msra.mxu0 %v666
  %v668 = vand.u32 %v198, 4294901760
  %v669 = vsub.f32 %v198, %v668
  %v670 = vand.u32 %v669, 4294901760
  %v671 = vsub.f32 %v669, %v670
  %v672 = vand.u32 %v671, 4294901760
  %673 = vmatpush.msra.mxu0 %v672
  %v674 = vand.u32 %v191, 4294901760
  %v675 = vsub.f32 %v191, %v674
  %v676 = vand.u32 %v675, 4294901760
  %v677 = vsub.f32 %v675, %v676
  %v678 = vand.u32 %v677, 4294901760
  %679 = vmatpush.msra.mxu0 %v678
  %v680 = vand.u32 %v184, 4294901760
  %v681 = vsub.f32 %v184, %v680
  %v682 = vand.u32 %v681, 4294901760
  %v683 = vsub.f32 %v681, %v682
  %v684 = vand.u32 %v683, 4294901760
  %685 = vmatpush.msra.mxu0 %v684
  %v686 = vand.u32 %v177, 4294901760
  %v687 = vsub.f32 %v177, %v686
  %v688 = vand.u32 %v687, 4294901760
  %v689 = vsub.f32 %v687, %v688
  %v690 = vand.u32 %v689, 4294901760
  %691 = vmatpush.msra.mxu0 %v690
  %v692 = vand.u32 %v170, 4294901760
  %v693 = vsub.f32 %v170, %v692
  %v694 = vand.u32 %v693, 4294901760
  %v695 = vsub.f32 %v693, %v694
  %v696 = vand.u32 %v695, 4294901760
  %697 = vmatpush.msra.mxu0 %v696
  %v698 = vand.u32 %v163, 4294901760
  %v699 = vsub.f32 %v163, %v698
  %v700 = vand.u32 %v699, 4294901760
  %v701 = vsub.f32 %v699, %v700
  %v702 = vand.u32 %v701, 4294901760
  %703 = vmatpush.msra.mxu0 %v702
  %v704 = vand.u32 %v156, 4294901760
  %v705 = vsub.f32 %v156, %v704
  %v706 = vand.u32 %v705, 4294901760
  %v707 = vsub.f32 %v705, %v706
  %v708 = vand.u32 %v707, 4294901760
  %709 = vmatpush.msra.mxu0 %v708
  %v710 = vand.u32 %v149, 4294901760
  %v711 = vsub.f32 %v149, %v710
  %v712 = vand.u32 %v711, 4294901760
  %v713 = vsub.f32 %v711, %v712
  %v714 = vand.u32 %v713, 4294901760
  %715 = vmatpush.msra.mxu0 %v714
  %v716 = vand.u32 %v142, 4294901760
  %v717 = vsub.f32 %v142, %v716
  %v718 = vand.u32 %v717, 4294901760
  %v719 = vsub.f32 %v717, %v718
  %v720 = vand.u32 %v719, 4294901760
  %721 = vmatpush.msra.mxu0 %v720
  %v722 = vand.u32 %v135, 4294901760
  %v723 = vsub.f32 %v135, %v722
  %v724 = vand.u32 %v723, 4294901760
  %v725 = vsub.f32 %v723, %v724
  %v726 = vand.u32 %v725, 4294901760
  %727 = vmatpush.msra.mxu0 %v726
  %v728 = vand.u32 %v128, 4294901760
  %v729 = vsub.f32 %v128, %v728
  %v730 = vand.u32 %v729, 4294901760
  %v731 = vsub.f32 %v729, %v730
  %v732 = vand.u32 %v731, 4294901760
  %733 = vmatpush.msra.mxu0 %v732
  %v734 = vand.u32 %v15, 4294901760
  %735 = vmatmul.f32.gmra.mxu0 %v734
  %v736 = vpop.f32.mrf.mxu0
  %v737 = vadd.f32 %v636, %v736
  %738 = vdwg.mxu0
  %v739 = vand.u32 %v233, 4294901760
  %v740 = vsub.f32 %v233, %v739
  %741 = vmatpush.msra.mxu0 %v740
  %v742 = vand.u32 %v226, 4294901760
  %v743 = vsub.f32 %v226, %v742
  %744 = vmatpush.msra.mxu0 %v743
  %v745 = vand.u32 %v219, 4294901760
  %v746 = vsub.f32 %v219, %v745
  %747 = vmatpush.msra.mxu0 %v746
  %v748 = vand.u32 %v212, 4294901760
  %v749 = vsub.f32 %v212, %v748
  %750 = vmatpush.msra.mxu0 %v749
  %v751 = vand.u32 %v205, 4294901760
  %v752 = vsub.f32 %v205, %v751
  %753 = vmatpush.msra.mxu0 %v752
  %v754 = vand.u32 %v198, 4294901760
  %v755 = vsub.f32 %v198, %v754
  %756 = vmatpush.msra.mxu0 %v755
  %v757 = vand.u32 %v191, 4294901760
  %v758 = vsub.f32 %v191, %v757
  %759 = vmatpush.msra.mxu0 %v758
  %v760 = vand.u32 %v184, 4294901760
  %v761 = vsub.f32 %v184, %v760
  %762 = vmatpush.msra.mxu0 %v761
  %v763 = vand.u32 %v177, 4294901760
  %v764 = vsub.f32 %v177, %v763
  %765 = vmatpush.msra.mxu0 %v764
  %v766 = vand.u32 %v170, 4294901760
  %v767 = vsub.f32 %v170, %v766
  %768 = vmatpush.msra.mxu0 %v767
  %v769 = vand.u32 %v163, 4294901760
  %v770 = vsub.f32 %v163, %v769
  %771 = vmatpush.msra.mxu0 %v770
  %v772 = vand.u32 %v156, 4294901760
  %v773 = vsub.f32 %v156, %v772
  %774 = vmatpush.msra.mxu0 %v773
  %v775 = vand.u32 %v149, 4294901760
  %v776 = vsub.f32 %v149, %v775
  %777 = vmatpush.msra.mxu0 %v776
  %v778 = vand.u32 %v142, 4294901760
  %v779 = vsub.f32 %v142, %v778
  %780 = vmatpush.msra.mxu0 %v779
  %v781 = vand.u32 %v135, 4294901760
  %v782 = vsub.f32 %v135, %v781
  %783 = vmatpush.msra.mxu0 %v782
  %v784 = vand.u32 %v128, 4294901760
  %v785 = vsub.f32 %v128, %v784
  %786 = vmatpush.msra.mxu0 %v785
  %v787 = vand.u32 %v15, 4294901760
  %v788 = vsub.f32 %v15, %v787
  %789 = vmatmul.f32.gmra.mxu0 %v788
  %v790 = vpop.f32.mrf.mxu0
  %v791 = vadd.f32 %v737, %v790
  %792 = vdwg.mxu0
  %v793 = vand.u32 %v233, 4294901760
  %794 = vmatpush.msra.mxu0 %v793
  %v795 = vand.u32 %v226, 4294901760
  %796 = vmatpush.msra.mxu0 %v795
  %v797 = vand.u32 %v219, 4294901760
  %798 = vmatpush.msra.mxu0 %v797
  %v799 = vand.u32 %v212, 4294901760
  %800 = vmatpush.msra.mxu0 %v799
  %v801 = vand.u32 %v205, 4294901760
  %802 = vmatpush.msra.mxu0 %v801
  %v803 = vand.u32 %v198, 4294901760
  %804 = vmatpush.msra.mxu0 %v803
  %v805 = vand.u32 %v191, 4294901760
  %806 = vmatpush.msra.mxu0 %v805
  %v807 = vand.u32 %v184, 4294901760
  %808 = vmatpush.msra.mxu0 %v807
  %v809 = vand.u32 %v177, 4294901760
  %810 = vmatpush.msra.mxu0 %v809
  %v811 = vand.u32 %v170, 4294901760
  %812 = vmatpush.msra.mxu0 %v811
  %v813 = vand.u32 %v163, 4294901760
  %814 = vmatpush.msra.mxu0 %v813
  %v815 = vand.u32 %v156, 4294901760
  %816 = vmatpush.msra.mxu0 %v815
  %v817 = vand.u32 %v149, 4294901760
  %818 = vmatpush.msra.mxu0 %v817
  %v819 = vand.u32 %v142, 4294901760
  %820 = vmatpush.msra.mxu0 %v819
  %v821 = vand.u32 %v135, 4294901760
  %822 = vmatpush.msra.mxu0 %v821
  %v823 = vand.u32 %v128, 4294901760
  %824 = vmatpush.msra.mxu0 %v823
  %v825 = vand.u32 %v15, 4294901760
  %v826 = vsub.f32 %v15, %v825
  %v827 = vand.u32 %v826, 4294901760
  %828 = vmatmul.f32.gmra.mxu0 %v827
  %v829 = vpop.f32.mrf.mxu0
  %v830 = vadd.f32 %v791, %v829
  %831 = vdwg.mxu0
  %v832 = vand.u32 %v233, 4294901760
  %v833 = vsub.f32 %v233, %v832
  %v834 = vand.u32 %v833, 4294901760
  %835 = vmatpush.msra.mxu0 %v834
  %v836 = vand.u32 %v226, 4294901760
  %v837 = vsub.f32 %v226, %v836
  %v838 = vand.u32 %v837, 4294901760
  %839 = vmatpush.msra.mxu0 %v838
  %v840 = vand.u32 %v219, 4294901760
  %v841 = vsub.f32 %v219, %v840
  %v842 = vand.u32 %v841, 4294901760
  %843 = vmatpush.msra.mxu0 %v842
  %v844 = vand.u32 %v212, 4294901760
  %v845 = vsub.f32 %v212, %v844
  %v846 = vand.u32 %v845, 4294901760
  %847 = vmatpush.msra.mxu0 %v846
  %v848 = vand.u32 %v205, 4294901760
  %v849 = vsub.f32 %v205, %v848
  %v850 = vand.u32 %v849, 4294901760
  %851 = vmatpush.msra.mxu0 %v850
  %v852 = vand.u32 %v198, 4294901760
  %v853 = vsub.f32 %v198, %v852
  %v854 = vand.u32 %v853, 4294901760
  %855 = vmatpush.msra.mxu0 %v854
  %v856 = vand.u32 %v191, 4294901760
  %v857 = vsub.f32 %v191, %v856
  %v858 = vand.u32 %v857, 4294901760
  %859 = vmatpush.msra.mxu0 %v858
  %v860 = vand.u32 %v184, 4294901760
  %v861 = vsub.f32 %v184, %v860
  %v862 = vand.u32 %v861, 4294901760
  %863 = vmatpush.msra.mxu0 %v862
  %v864 = vand.u32 %v177, 4294901760
  %v865 = vsub.f32 %v177, %v864
  %v866 = vand.u32 %v865, 4294901760
  %867 = vmatpush.msra.mxu0 %v866
  %v868 = vand.u32 %v170, 4294901760
  %v869 = vsub.f32 %v170, %v868
  %v870 = vand.u32 %v869, 4294901760
  %871 = vmatpush.msra.mxu0 %v870
  %v872 = vand.u32 %v163, 4294901760
  %v873 = vsub.f32 %v163, %v872
  %v874 = vand.u32 %v873, 4294901760
  %875 = vmatpush.msra.mxu0 %v874
  %v876 = vand.u32 %v156, 4294901760
  %v877 = vsub.f32 %v156, %v876
  %v878 = vand.u32 %v877, 4294901760
  %879 = vmatpush.msra.mxu0 %v878
  %v880 = vand.u32 %v149, 4294901760
  %v881 = vsub.f32 %v149, %v880
  %v882 = vand.u32 %v881, 4294901760
  %883 = vmatpush.msra.mxu0 %v882
  %v884 = vand.u32 %v142, 4294901760
  %v885 = vsub.f32 %v142, %v884
  %v886 = vand.u32 %v885, 4294901760
  %887 = vmatpush.msra.mxu0 %v886
  %v888 = vand.u32 %v135, 4294901760
  %v889 = vsub.f32 %v135, %v888
  %v890 = vand.u32 %v889, 4294901760
  %891 = vmatpush.msra.mxu0 %v890
  %v892 = vand.u32 %v128, 4294901760
  %v893 = vsub.f32 %v128, %v892
  %v894 = vand.u32 %v893, 4294901760
  %895 = vmatpush.msra.mxu0 %v894
  %v896 = vand.u32 %v15, 4294901760
  %897 = vmatmul.f32.gmra.mxu0 %v896
  %v898 = vpop.f32.mrf.mxu0
  %v899 = vadd.f32 %v830, %v898
  %900 = vdwg.mxu0
  %v901 = vand.u32 %v233, 4294901760
  %902 = vmatpush.msra.mxu0 %v901
  %v903 = vand.u32 %v226, 4294901760
  %904 = vmatpush.msra.mxu0 %v903
  %v905 = vand.u32 %v219, 4294901760
  %906 = vmatpush.msra.mxu0 %v905
  %v907 = vand.u32 %v212, 4294901760
  %908 = vmatpush.msra.mxu0 %v907
  %v909 = vand.u32 %v205, 4294901760
  %910 = vmatpush.msra.mxu0 %v909
  %v911 = vand.u32 %v198, 4294901760
  %912 = vmatpush.msra.mxu0 %v911
  %v913 = vand.u32 %v191, 4294901760
  %914 = vmatpush.msra.mxu0 %v913
  %v915 = vand.u32 %v184, 4294901760
  %916 = vmatpush.msra.mxu0 %v915
  %v917 = vand.u32 %v177, 4294901760
  %918 = vmatpush.msra.mxu0 %v917
  %v919 = vand.u32 %v170, 4294901760
  %920 = vmatpush.msra.mxu0 %v919
  %v921 = vand.u32 %v163, 4294901760
  %922 = vmatpush.msra.mxu0 %v921
  %v923 = vand.u32 %v156, 4294901760
  %924 = vmatpush.msra.mxu0 %v923
  %v925 = vand.u32 %v149, 4294901760
  %926 = vmatpush.msra.mxu0 %v925
  %v927 = vand.u32 %v142, 4294901760
  %928 = vmatpush.msra.mxu0 %v927
  %v929 = vand.u32 %v135, 4294901760
  %930 = vmatpush.msra.mxu0 %v929
  %v931 = vand.u32 %v128, 4294901760
  %932 = vmatpush.msra.mxu0 %v931
  %v933 = vand.u32 %v15, 4294901760
  %934 = vmatmul.f32.gmra.mxu0 %v933
  %v935 = vpop.f32.mrf.mxu0
  %v936 = vadd.f32 %v899, %v935
  %937 = vdwg.mxu0
  %v938 = vand.u32 %v122, 4294901760
  %939 = vmatpush.msra.mxu0 %v938
  %v940 = vand.u32 %v115, 4294901760
  %941 = vmatpush.msra.mxu0 %v940
  %v942 = vand.u32 %v108, 4294901760
  %943 = vmatpush.msra.mxu0 %v942
  %v944 = vand.u32 %v101, 4294901760
  %945 = vmatpush.msra.mxu0 %v944
  %v946 = vand.u32 %v94, 4294901760
  %947 = vmatpush.msra.mxu0 %v946
  %v948 = vand.u32 %v87, 4294901760
  %949 = vmatpush.msra.mxu0 %v948
  %v950 = vand.u32 %v80, 4294901760
  %951 = vmatpush.msra.mxu0 %v950
  %v952 = vand.u32 %v73, 4294901760
  %953 = vmatpush.msra.mxu0 %v952
  %v954 = vand.u32 %v66, 4294901760
  %955 = vmatpush.msra.mxu0 %v954
  %v956 = vand.u32 %v59, 4294901760
  %957 = vmatpush.msra.mxu0 %v956
  %v958 = vand.u32 %v52, 4294901760
  %959 = vmatpush.msra.mxu0 %v958
  %v960 = vand.u32 %v45, 4294901760
  %961 = vmatpush.msra.mxu0 %v960
  %v962 = vand.u32 %v38, 4294901760
  %963 = vmatpush.msra.mxu0 %v962
  %v964 = vand.u32 %v31, 4294901760
  %965 = vmatpush.msra.mxu0 %v964
  %v966 = vand.u32 %v24, 4294901760
  %967 = vmatpush.msra.mxu0 %v966
  %v968 = vand.u32 %v17, 4294901760
  %969 = vmatpush.msra.mxu0 %v968
  %v970 = vand.u32 %v14, 4294901760
  %v971 = vsub.f32 %v14, %v970
  %v972 = vand.u32 %v971, 4294901760
  %v973 = vsub.f32 %v971, %v972
  %v974 = vand.u32 %v973, 4294901760
  %975 = vmatmul.f32.gmra.mxu0 %v974
  %v976 = vpop.f32.mrf.mxu0
  %v977 = vadd.f32 %v243, %v976
  %978 = vdwg.mxu0
  %v979 = vand.u32 %v122, 4294901760
  %v980 = vsub.f32 %v122, %v979
  %v981 = vand.u32 %v980, 4294901760
  %v982 = vsub.f32 %v980, %v981
  %v983 = vand.u32 %v982, 4294901760
  %984 = vmatpush.msra.mxu0 %v983
  %v985 = vand.u32 %v115, 4294901760
  %v986 = vsub.f32 %v115, %v985
  %v987 = vand.u32 %v986, 4294901760
  %v988 = vsub.f32 %v986, %v987
  %v989 = vand.u32 %v988, 4294901760
  %990 = vmatpush.msra.mxu0 %v989
  %v991 = vand.u32 %v108, 4294901760
  %v992 = vsub.f32 %v108, %v991
  %v993 = vand.u32 %v992, 4294901760
  %v994 = vsub.f32 %v992, %v993
  %v995 = vand.u32 %v994, 4294901760
  %996 = vmatpush.msra.mxu0 %v995
  %v997 = vand.u32 %v101, 4294901760
  %v998 = vsub.f32 %v101, %v997
  %v999 = vand.u32 %v998, 4294901760
  %v1000 = vsub.f32 %v998, %v999
  %v1001 = vand.u32 %v1000, 4294901760
  %1002 = vmatpush.msra.mxu0 %v1001
  %v1003 = vand.u32 %v94, 4294901760
  %v1004 = vsub.f32 %v94, %v1003
  %v1005 = vand.u32 %v1004, 4294901760
  %v1006 = vsub.f32 %v1004, %v1005
  %v1007 = vand.u32 %v1006, 4294901760
  %1008 = vmatpush.msra.mxu0 %v1007
  %v1009 = vand.u32 %v87, 4294901760
  %v1010 = vsub.f32 %v87, %v1009
  %v1011 = vand.u32 %v1010, 4294901760
  %v1012 = vsub.f32 %v1010, %v1011
  %v1013 = vand.u32 %v1012, 4294901760
  %1014 = vmatpush.msra.mxu0 %v1013
  %v1015 = vand.u32 %v80, 4294901760
  %v1016 = vsub.f32 %v80, %v1015
  %v1017 = vand.u32 %v1016, 4294901760
  %v1018 = vsub.f32 %v1016, %v1017
  %v1019 = vand.u32 %v1018, 4294901760
  %1020 = vmatpush.msra.mxu0 %v1019
  %v1021 = vand.u32 %v73, 4294901760
  %v1022 = vsub.f32 %v73, %v1021
  %v1023 = vand.u32 %v1022, 4294901760
  %v1024 = vsub.f32 %v1022, %v1023
  %v1025 = vand.u32 %v1024, 4294901760
  %1026 = vmatpush.msra.mxu0 %v1025
  %v1027 = vand.u32 %v66, 4294901760
  %v1028 = vsub.f32 %v66, %v1027
  %v1029 = vand.u32 %v1028, 4294901760
  %v1030 = vsub.f32 %v1028, %v1029
  %v1031 = vand.u32 %v1030, 4294901760
  %1032 = vmatpush.msra.mxu0 %v1031
  %v1033 = vand.u32 %v59, 4294901760
  %v1034 = vsub.f32 %v59, %v1033
  %v1035 = vand.u32 %v1034, 4294901760
  %v1036 = vsub.f32 %v1034, %v1035
  %v1037 = vand.u32 %v1036, 4294901760
  %1038 = vmatpush.msra.mxu0 %v1037
  %v1039 = vand.u32 %v52, 4294901760
  %v1040 = vsub.f32 %v52, %v1039
  %v1041 = vand.u32 %v1040, 4294901760
  %v1042 = vsub.f32 %v1040, %v1041
  %v1043 = vand.u32 %v1042, 4294901760
  %1044 = vmatpush.msra.mxu0 %v1043
  %v1045 = vand.u32 %v45, 4294901760
  %v1046 = vsub.f32 %v45, %v1045
  %v1047 = vand.u32 %v1046, 4294901760
  %v1048 = vsub.f32 %v1046, %v1047
  %v1049 = vand.u32 %v1048, 4294901760
  %1050 = vmatpush.msra.mxu0 %v1049
  %v1051 = vand.u32 %v38, 4294901760
  %v1052 = vsub.f32 %v38, %v1051
  %v1053 = vand.u32 %v1052, 4294901760
  %v1054 = vsub.f32 %v1052, %v1053
  %v1055 = vand.u32 %v1054, 4294901760
  %1056 = vmatpush.msra.mxu0 %v1055
  %v1057 = vand.u32 %v31, 4294901760
  %v1058 = vsub.f32 %v31, %v1057
  %v1059 = vand.u32 %v1058, 4294901760
  %v1060 = vsub.f32 %v1058, %v1059
  %v1061 = vand.u32 %v1060, 4294901760
  %1062 = vmatpush.msra.mxu0 %v1061
  %v1063 = vand.u32 %v24, 4294901760
  %v1064 = vsub.f32 %v24, %v1063
  %v1065 = vand.u32 %v1064, 4294901760
  %v1066 = vsub.f32 %v1064, %v1065
  %v1067 = vand.u32 %v1066, 4294901760
  %1068 = vmatpush.msra.mxu0 %v1067
  %v1069 = vand.u32 %v17, 4294901760
  %v1070 = vsub.f32 %v17, %v1069
  %v1071 = vand.u32 %v1070, 4294901760
  %v1072 = vsub.f32 %v1070, %v1071
  %v1073 = vand.u32 %v1072, 4294901760
  %1074 = vmatpush.msra.mxu0 %v1073
  %v1075 = vand.u32 %v14, 4294901760
  %1076 = vmatmul.f32.gmra.mxu0 %v1075
  %v1077 = vpop.f32.mrf.mxu0
  %v1078 = vadd.f32 %v977, %v1077
  %1079 = vdwg.mxu0
  %v1080 = vand.u32 %v122, 4294901760
  %v1081 = vsub.f32 %v122, %v1080
  %1082 = vmatpush.msra.mxu0 %v1081
  %v1083 = vand.u32 %v115, 4294901760
  %v1084 = vsub.f32 %v115, %v1083
  %1085 = vmatpush.msra.mxu0 %v1084
  %v1086 = vand.u32 %v108, 4294901760
  %v1087 = vsub.f32 %v108, %v1086
  %1088 = vmatpush.msra.mxu0 %v1087
  %v1089 = vand.u32 %v101, 4294901760
  %v1090 = vsub.f32 %v101, %v1089
  %1091 = vmatpush.msra.mxu0 %v1090
  %v1092 = vand.u32 %v94, 4294901760
  %v1093 = vsub.f32 %v94, %v1092
  %1094 = vmatpush.msra.mxu0 %v1093
  %v1095 = vand.u32 %v87, 4294901760
  %v1096 = vsub.f32 %v87, %v1095
  %1097 = vmatpush.msra.mxu0 %v1096
  %v1098 = vand.u32 %v80, 4294901760
  %v1099 = vsub.f32 %v80, %v1098
  %1100 = vmatpush.msra.mxu0 %v1099
  %v1101 = vand.u32 %v73, 4294901760
  %v1102 = vsub.f32 %v73, %v1101
  %1103 = vmatpush.msra.mxu0 %v1102
  %v1104 = vand.u32 %v66, 4294901760
  %v1105 = vsub.f32 %v66, %v1104
  %1106 = vmatpush.msra.mxu0 %v1105
  %v1107 = vand.u32 %v59, 4294901760
  %v1108 = vsub.f32 %v59, %v1107
  %1109 = vmatpush.msra.mxu0 %v1108
  %v1110 = vand.u32 %v52, 4294901760
  %v1111 = vsub.f32 %v52, %v1110
  %1112 = vmatpush.msra.mxu0 %v1111
  %v1113 = vand.u32 %v45, 4294901760
  %v1114 = vsub.f32 %v45, %v1113
  %1115 = vmatpush.msra.mxu0 %v1114
  %v1116 = vand.u32 %v38, 4294901760
  %v1117 = vsub.f32 %v38, %v1116
  %1118 = vmatpush.msra.mxu0 %v1117
  %v1119 = vand.u32 %v31, 4294901760
  %v1120 = vsub.f32 %v31, %v1119
  %1121 = vmatpush.msra.mxu0 %v1120
  %v1122 = vand.u32 %v24, 4294901760
  %v1123 = vsub.f32 %v24, %v1122
  %1124 = vmatpush.msra.mxu0 %v1123
  %v1125 = vand.u32 %v17, 4294901760
  %v1126 = vsub.f32 %v17, %v1125
  %1127 = vmatpush.msra.mxu0 %v1126
  %v1128 = vand.u32 %v14, 4294901760
  %v1129 = vsub.f32 %v14, %v1128
  %1130 = vmatmul.f32.gmra.mxu0 %v1129
  %v1131 = vpop.f32.mrf.mxu0
  %v1132 = vadd.f32 %v1078, %v1131
  %1133 = vdwg.mxu0
  %v1134 = vand.u32 %v122, 4294901760
  %1135 = vmatpush.msra.mxu0 %v1134
  %v1136 = vand.u32 %v115, 4294901760
  %1137 = vmatpush.msra.mxu0 %v1136
  %v1138 = vand.u32 %v108, 4294901760
  %1139 = vmatpush.msra.mxu0 %v1138
  %v1140 = vand.u32 %v101, 4294901760
  %1141 = vmatpush.msra.mxu0 %v1140
  %v1142 = vand.u32 %v94, 4294901760
  %1143 = vmatpush.msra.mxu0 %v1142
  %v1144 = vand.u32 %v87, 4294901760
  %1145 = vmatpush.msra.mxu0 %v1144
  %v1146 = vand.u32 %v80, 4294901760
  %1147 = vmatpush.msra.mxu0 %v1146
  %v1148 = vand.u32 %v73, 4294901760
  %1149 = vmatpush.msra.mxu0 %v1148
  %v1150 = vand.u32 %v66, 4294901760
  %1151 = vmatpush.msra.mxu0 %v1150
  %v1152 = vand.u32 %v59, 4294901760
  %1153 = vmatpush.msra.mxu0 %v1152
  %v1154 = vand.u32 %v52, 4294901760
  %1155 = vmatpush.msra.mxu0 %v1154
  %v1156 = vand.u32 %v45, 4294901760
  %1157 = vmatpush.msra.mxu0 %v1156
  %v1158 = vand.u32 %v38, 4294901760
  %1159 = vmatpush.msra.mxu0 %v1158
  %v1160 = vand.u32 %v31, 4294901760
  %1161 = vmatpush.msra.mxu0 %v1160
  %v1162 = vand.u32 %v24, 4294901760
  %1163 = vmatpush.msra.mxu0 %v1162
  %v1164 = vand.u32 %v17, 4294901760
  %1165 = vmatpush.msra.mxu0 %v1164
  %v1166 = vand.u32 %v14, 4294901760
  %v1167 = vsub.f32 %v14, %v1166
  %v1168 = vand.u32 %v1167, 4294901760
  %1169 = vmatmul.f32.gmra.mxu0 %v1168
  %v1170 = vpop.f32.mrf.mxu0
  %v1171 = vadd.f32 %v1132, %v1170
  %1172 = vdwg.mxu0
  %v1173 = vand.u32 %v122, 4294901760
  %v1174 = vsub.f32 %v122, %v1173
  %v1175 = vand.u32 %v1174, 4294901760
  %1176 = vmatpush.msra.mxu0 %v1175
  %v1177 = vand.u32 %v115, 4294901760
  %v1178 = vsub.f32 %v115, %v1177
  %v1179 = vand.u32 %v1178, 4294901760
  %1180 = vmatpush.msra.mxu0 %v1179
  %v1181 = vand.u32 %v108, 4294901760
  %v1182 = vsub.f32 %v108, %v1181
  %v1183 = vand.u32 %v1182, 4294901760
  %1184 = vmatpush.msra.mxu0 %v1183
  %v1185 = vand.u32 %v101, 4294901760
  %v1186 = vsub.f32 %v101, %v1185
  %v1187 = vand.u32 %v1186, 4294901760
  %1188 = vmatpush.msra.mxu0 %v1187
  %v1189 = vand.u32 %v94, 4294901760
  %v1190 = vsub.f32 %v94, %v1189
  %v1191 = vand.u32 %v1190, 4294901760
  %1192 = vmatpush.msra.mxu0 %v1191
  %v1193 = vand.u32 %v87, 4294901760
  %v1194 = vsub.f32 %v87, %v1193
  %v1195 = vand.u32 %v1194, 4294901760
  %1196 = vmatpush.msra.mxu0 %v1195
  %v1197 = vand.u32 %v80, 4294901760
  %v1198 = vsub.f32 %v80, %v1197
  %v1199 = vand.u32 %v1198, 4294901760
  %1200 = vmatpush.msra.mxu0 %v1199
  %v1201 = vand.u32 %v73, 4294901760
  %v1202 = vsub.f32 %v73, %v1201
  %v1203 = vand.u32 %v1202, 4294901760
  %1204 = vmatpush.msra.mxu0 %v1203
  %v1205 = vand.u32 %v66, 4294901760
  %v1206 = vsub.f32 %v66, %v1205
  %v1207 = vand.u32 %v1206, 4294901760
  %1208 = vmatpush.msra.mxu0 %v1207
  %v1209 = vand.u32 %v59, 4294901760
  %v1210 = vsub.f32 %v59, %v1209
  %v1211 = vand.u32 %v1210, 4294901760
  %1212 = vmatpush.msra.mxu0 %v1211
  %v1213 = vand.u32 %v52, 4294901760
  %v1214 = vsub.f32 %v52, %v1213
  %v1215 = vand.u32 %v1214, 4294901760
  %1216 = vmatpush.msra.mxu0 %v1215
  %v1217 = vand.u32 %v45, 4294901760
  %v1218 = vsub.f32 %v45, %v1217
  %v1219 = vand.u32 %v1218, 4294901760
  %1220 = vmatpush.msra.mxu0 %v1219
  %v1221 = vand.u32 %v38, 4294901760
  %v1222 = vsub.f32 %v38, %v1221
  %v1223 = vand.u32 %v1222, 4294901760
  %1224 = vmatpush.msra.mxu0 %v1223
  %v1225 = vand.u32 %v31, 4294901760
  %v1226 = vsub.f32 %v31, %v1225
  %v1227 = vand.u32 %v1226, 4294901760
  %1228 = vmatpush.msra.mxu0 %v1227
  %v1229 = vand.u32 %v24, 4294901760
  %v1230 = vsub.f32 %v24, %v1229
  %v1231 = vand.u32 %v1230, 4294901760
  %1232 = vmatpush.msra.mxu0 %v1231
  %v1233 = vand.u32 %v17, 4294901760
  %v1234 = vsub.f32 %v17, %v1233
  %v1235 = vand.u32 %v1234, 4294901760
  %1236 = vmatpush.msra.mxu0 %v1235
  %v1237 = vand.u32 %v14, 4294901760
  %1238 = vmatmul.f32.gmra.mxu0 %v1237
  %v1239 = vpop.f32.mrf.mxu0
  %v1240 = vadd.f32 %v1171, %v1239
  %1241 = vdwg.mxu0
  %v1242 = vand.u32 %v122, 4294901760
  %1243 = vmatpush.msra.mxu0 %v1242
  %v1244 = vand.u32 %v115, 4294901760
  %1245 = vmatpush.msra.mxu0 %v1244
  %v1246 = vand.u32 %v108, 4294901760
  %1247 = vmatpush.msra.mxu0 %v1246
  %v1248 = vand.u32 %v101, 4294901760
  %1249 = vmatpush.msra.mxu0 %v1248
  %v1250 = vand.u32 %v94, 4294901760
  %1251 = vmatpush.msra.mxu0 %v1250
  %v1252 = vand.u32 %v87, 4294901760
  %1253 = vmatpush.msra.mxu0 %v1252
  %v1254 = vand.u32 %v80, 4294901760
  %1255 = vmatpush.msra.mxu0 %v1254
  %v1256 = vand.u32 %v73, 4294901760
  %1257 = vmatpush.msra.mxu0 %v1256
  %v1258 = vand.u32 %v66, 4294901760
  %1259 = vmatpush.msra.mxu0 %v1258
  %v1260 = vand.u32 %v59, 4294901760
  %1261 = vmatpush.msra.mxu0 %v1260
  %v1262 = vand.u32 %v52, 4294901760
  %1263 = vmatpush.msra.mxu0 %v1262
  %v1264 = vand.u32 %v45, 4294901760
  %1265 = vmatpush.msra.mxu0 %v1264
  %v1266 = vand.u32 %v38, 4294901760
  %1267 = vmatpush.msra.mxu0 %v1266
  %v1268 = vand.u32 %v31, 4294901760
  %1269 = vmatpush.msra.mxu0 %v1268
  %v1270 = vand.u32 %v24, 4294901760
  %1271 = vmatpush.msra.mxu0 %v1270
  %v1272 = vand.u32 %v17, 4294901760
  %1273 = vmatpush.msra.mxu0 %v1272
  %v1274 = vand.u32 %v14, 4294901760
  %1275 = vmatmul.f32.gmra.mxu0 %v1274
  %v1276 = vpop.f32.mrf.mxu0
  %v1277 = vadd.f32 %v1240, %v1276
  %1278 = vdwg.mxu0
  %v1279 = vand.u32 %v234, 4294901760
  %1280 = vmatpush.msra.mxu0 %v1279
  %v1281 = vand.u32 %v227, 4294901760
  %1282 = vmatpush.msra.mxu0 %v1281
  %v1283 = vand.u32 %v220, 4294901760
  %1284 = vmatpush.msra.mxu0 %v1283
  %v1285 = vand.u32 %v213, 4294901760
  %1286 = vmatpush.msra.mxu0 %v1285
  %v1287 = vand.u32 %v206, 4294901760
  %1288 = vmatpush.msra.mxu0 %v1287
  %v1289 = vand.u32 %v199, 4294901760
  %1290 = vmatpush.msra.mxu0 %v1289
  %v1291 = vand.u32 %v192, 4294901760
  %1292 = vmatpush.msra.mxu0 %v1291
  %v1293 = vand.u32 %v185, 4294901760
  %1294 = vmatpush.msra.mxu0 %v1293
  %v1295 = vand.u32 %v178, 4294901760
  %1296 = vmatpush.msra.mxu0 %v1295
  %v1297 = vand.u32 %v171, 4294901760
  %1298 = vmatpush.msra.mxu0 %v1297
  %v1299 = vand.u32 %v164, 4294901760
  %1300 = vmatpush.msra.mxu0 %v1299
  %v1301 = vand.u32 %v157, 4294901760
  %1302 = vmatpush.msra.mxu0 %v1301
  %v1303 = vand.u32 %v150, 4294901760
  %1304 = vmatpush.msra.mxu0 %v1303
  %v1305 = vand.u32 %v143, 4294901760
  %1306 = vmatpush.msra.mxu0 %v1305
  %v1307 = vand.u32 %v136, 4294901760
  %1308 = vmatpush.msra.mxu0 %v1307
  %v1309 = vand.u32 %v129, 4294901760
  %1310 = vmatpush.msra.mxu0 %v1309
  %v1311 = vand.u32 %v15, 4294901760
  %v1312 = vsub.f32 %v15, %v1311
  %v1313 = vand.u32 %v1312, 4294901760
  %v1314 = vsub.f32 %v1312, %v1313
  %v1315 = vand.u32 %v1314, 4294901760
  %1316 = vmatmul.f32.gmra.mxu0 %v1315
  %v1317 = vpop.f32.mrf.mxu0
  %v1318 = vadd.f32 %v1277, %v1317
  %1319 = vdwg.mxu0
  %v1320 = vand.u32 %v234, 4294901760
  %v1321 = vsub.f32 %v234, %v1320
  %v1322 = vand.u32 %v1321, 4294901760
  %v1323 = vsub.f32 %v1321, %v1322
  %v1324 = vand.u32 %v1323, 4294901760
  %1325 = vmatpush.msra.mxu0 %v1324
  %v1326 = vand.u32 %v227, 4294901760
  %v1327 = vsub.f32 %v227, %v1326
  %v1328 = vand.u32 %v1327, 4294901760
  %v1329 = vsub.f32 %v1327, %v1328
  %v1330 = vand.u32 %v1329, 4294901760
  %1331 = vmatpush.msra.mxu0 %v1330
  %v1332 = vand.u32 %v220, 4294901760
  %v1333 = vsub.f32 %v220, %v1332
  %v1334 = vand.u32 %v1333, 4294901760
  %v1335 = vsub.f32 %v1333, %v1334
  %v1336 = vand.u32 %v1335, 4294901760
  %1337 = vmatpush.msra.mxu0 %v1336
  %v1338 = vand.u32 %v213, 4294901760
  %v1339 = vsub.f32 %v213, %v1338
  %v1340 = vand.u32 %v1339, 4294901760
  %v1341 = vsub.f32 %v1339, %v1340
  %v1342 = vand.u32 %v1341, 4294901760
  %1343 = vmatpush.msra.mxu0 %v1342
  %v1344 = vand.u32 %v206, 4294901760
  %v1345 = vsub.f32 %v206, %v1344
  %v1346 = vand.u32 %v1345, 4294901760
  %v1347 = vsub.f32 %v1345, %v1346
  %v1348 = vand.u32 %v1347, 4294901760
  %1349 = vmatpush.msra.mxu0 %v1348
  %v1350 = vand.u32 %v199, 4294901760
  %v1351 = vsub.f32 %v199, %v1350
  %v1352 = vand.u32 %v1351, 4294901760
  %v1353 = vsub.f32 %v1351, %v1352
  %v1354 = vand.u32 %v1353, 4294901760
  %1355 = vmatpush.msra.mxu0 %v1354
  %v1356 = vand.u32 %v192, 4294901760
  %v1357 = vsub.f32 %v192, %v1356
  %v1358 = vand.u32 %v1357, 4294901760
  %v1359 = vsub.f32 %v1357, %v1358
  %v1360 = vand.u32 %v1359, 4294901760
  %1361 = vmatpush.msra.mxu0 %v1360
  %v1362 = vand.u32 %v185, 4294901760
  %v1363 = vsub.f32 %v185, %v1362
  %v1364 = vand.u32 %v1363, 4294901760
  %v1365 = vsub.f32 %v1363, %v1364
  %v1366 = vand.u32 %v1365, 4294901760
  %1367 = vmatpush.msra.mxu0 %v1366
  %v1368 = vand.u32 %v178, 4294901760
  %v1369 = vsub.f32 %v178, %v1368
  %v1370 = vand.u32 %v1369, 4294901760
  %v1371 = vsub.f32 %v1369, %v1370
  %v1372 = vand.u32 %v1371, 4294901760
  %1373 = vmatpush.msra.mxu0 %v1372
  %v1374 = vand.u32 %v171, 4294901760
  %v1375 = vsub.f32 %v171, %v1374
  %v1376 = vand.u32 %v1375, 4294901760
  %v1377 = vsub.f32 %v1375, %v1376
  %v1378 = vand.u32 %v1377, 4294901760
  %1379 = vmatpush.msra.mxu0 %v1378
  %v1380 = vand.u32 %v164, 4294901760
  %v1381 = vsub.f32 %v164, %v1380
  %v1382 = vand.u32 %v1381, 4294901760
  %v1383 = vsub.f32 %v1381, %v1382
  %v1384 = vand.u32 %v1383, 4294901760
  %1385 = vmatpush.msra.mxu0 %v1384
  %v1386 = vand.u32 %v157, 4294901760
  %v1387 = vsub.f32 %v157, %v1386
  %v1388 = vand.u32 %v1387, 4294901760
  %v1389 = vsub.f32 %v1387, %v1388
  %v1390 = vand.u32 %v1389, 4294901760
  %1391 = vmatpush.msra.mxu0 %v1390
  %v1392 = vand.u32 %v150, 4294901760
  %v1393 = vsub.f32 %v150, %v1392
  %v1394 = vand.u32 %v1393, 4294901760
  %v1395 = vsub.f32 %v1393, %v1394
  %v1396 = vand.u32 %v1395, 4294901760
  %1397 = vmatpush.msra.mxu0 %v1396
  %v1398 = vand.u32 %v143, 4294901760
  %v1399 = vsub.f32 %v143, %v1398
  %v1400 = vand.u32 %v1399, 4294901760
  %v1401 = vsub.f32 %v1399, %v1400
  %v1402 = vand.u32 %v1401, 4294901760
  %1403 = vmatpush.msra.mxu0 %v1402
  %v1404 = vand.u32 %v136, 4294901760
  %v1405 = vsub.f32 %v136, %v1404
  %v1406 = vand.u32 %v1405, 4294901760
  %v1407 = vsub.f32 %v1405, %v1406
  %v1408 = vand.u32 %v1407, 4294901760
  %1409 = vmatpush.msra.mxu0 %v1408
  %v1410 = vand.u32 %v129, 4294901760
  %v1411 = vsub.f32 %v129, %v1410
  %v1412 = vand.u32 %v1411, 4294901760
  %v1413 = vsub.f32 %v1411, %v1412
  %v1414 = vand.u32 %v1413, 4294901760
  %1415 = vmatpush.msra.mxu0 %v1414
  %v1416 = vand.u32 %v15, 4294901760
  %1417 = vmatmul.f32.gmra.mxu0 %v1416
  %v1418 = vpop.f32.mrf.mxu0
  %v1419 = vadd.f32 %v1318, %v1418
  %1420 = vdwg.mxu0
  %v1421 = vand.u32 %v234, 4294901760
  %v1422 = vsub.f32 %v234, %v1421
  %1423 = vmatpush.msra.mxu0 %v1422
  %v1424 = vand.u32 %v227, 4294901760
  %v1425 = vsub.f32 %v227, %v1424
  %1426 = vmatpush.msra.mxu0 %v1425
  %v1427 = vand.u32 %v220, 4294901760
  %v1428 = vsub.f32 %v220, %v1427
  %1429 = vmatpush.msra.mxu0 %v1428
  %v1430 = vand.u32 %v213, 4294901760
  %v1431 = vsub.f32 %v213, %v1430
  %1432 = vmatpush.msra.mxu0 %v1431
  %v1433 = vand.u32 %v206, 4294901760
  %v1434 = vsub.f32 %v206, %v1433
  %1435 = vmatpush.msra.mxu0 %v1434
  %v1436 = vand.u32 %v199, 4294901760
  %v1437 = vsub.f32 %v199, %v1436
  %1438 = vmatpush.msra.mxu0 %v1437
  %v1439 = vand.u32 %v192, 4294901760
  %v1440 = vsub.f32 %v192, %v1439
  %1441 = vmatpush.msra.mxu0 %v1440
  %v1442 = vand.u32 %v185, 4294901760
  %v1443 = vsub.f32 %v185, %v1442
  %1444 = vmatpush.msra.mxu0 %v1443
  %v1445 = vand.u32 %v178, 4294901760
  %v1446 = vsub.f32 %v178, %v1445
  %1447 = vmatpush.msra.mxu0 %v1446
  %v1448 = vand.u32 %v171, 4294901760
  %v1449 = vsub.f32 %v171, %v1448
  %1450 = vmatpush.msra.mxu0 %v1449
  %v1451 = vand.u32 %v164, 4294901760
  %v1452 = vsub.f32 %v164, %v1451
  %1453 = vmatpush.msra.mxu0 %v1452
  %v1454 = vand.u32 %v157, 4294901760
  %v1455 = vsub.f32 %v157, %v1454
  %1456 = vmatpush.msra.mxu0 %v1455
  %v1457 = vand.u32 %v150, 4294901760
  %v1458 = vsub.f32 %v150, %v1457
  %1459 = vmatpush.msra.mxu0 %v1458
  %v1460 = vand.u32 %v143, 4294901760
  %v1461 = vsub.f32 %v143, %v1460
  %1462 = vmatpush.msra.mxu0 %v1461
  %v1463 = vand.u32 %v136, 4294901760
  %v1464 = vsub.f32 %v136, %v1463
  %1465 = vmatpush.msra.mxu0 %v1464
  %v1466 = vand.u32 %v129, 4294901760
  %v1467 = vsub.f32 %v129, %v1466
  %1468 = vmatpush.msra.mxu0 %v1467
  %v1469 = vand.u32 %v15, 4294901760
  %v1470 = vsub.f32 %v15, %v1469
  %1471 = vmatmul.f32.gmra.mxu0 %v1470
  %v1472 = vpop.f32.mrf.mxu0
  %v1473 = vadd.f32 %v1419, %v1472
  %1474 = vdwg.mxu0
  %v1475 = vand.u32 %v234, 4294901760
  %1476 = vmatpush.msra.mxu0 %v1475
  %v1477 = vand.u32 %v227, 4294901760
  %1478 = vmatpush.msra.mxu0 %v1477
  %v1479 = vand.u32 %v220, 4294901760
  %1480 = vmatpush.msra.mxu0 %v1479
  %v1481 = vand.u32 %v213, 4294901760
  %1482 = vmatpush.msra.mxu0 %v1481
  %v1483 = vand.u32 %v206, 4294901760
  %1484 = vmatpush.msra.mxu0 %v1483
  %v1485 = vand.u32 %v199, 4294901760
  %1486 = vmatpush.msra.mxu0 %v1485
  %v1487 = vand.u32 %v192, 4294901760
  %1488 = vmatpush.msra.mxu0 %v1487
  %v1489 = vand.u32 %v185, 4294901760
  %1490 = vmatpush.msra.mxu0 %v1489
  %v1491 = vand.u32 %v178, 4294901760
  %1492 = vmatpush.msra.mxu0 %v1491
  %v1493 = vand.u32 %v171, 4294901760
  %1494 = vmatpush.msra.mxu0 %v1493
  %v1495 = vand.u32 %v164, 4294901760
  %1496 = vmatpush.msra.mxu0 %v1495
  %v1497 = vand.u32 %v157, 4294901760
  %1498 = vmatpush.msra.mxu0 %v1497
  %v1499 = vand.u32 %v150, 4294901760
  %1500 = vmatpush.msra.mxu0 %v1499
  %v1501 = vand.u32 %v143, 4294901760
  %1502 = vmatpush.msra.mxu0 %v1501
  %v1503 = vand.u32 %v136, 4294901760
  %1504 = vmatpush.msra.mxu0 %v1503
  %v1505 = vand.u32 %v129, 4294901760
  %1506 = vmatpush.msra.mxu0 %v1505
  %v1507 = vand.u32 %v15, 4294901760
  %v1508 = vsub.f32 %v15, %v1507
  %v1509 = vand.u32 %v1508, 4294901760
  %1510 = vmatmul.f32.gmra.mxu0 %v1509
  %v1511 = vpop.f32.mrf.mxu0
  %v1512 = vadd.f32 %v1473, %v1511
  %1513 = vdwg.mxu0
  %v1514 = vand.u32 %v234, 4294901760
  %v1515 = vsub.f32 %v234, %v1514
  %v1516 = vand.u32 %v1515, 4294901760
  %1517 = vmatpush.msra.mxu0 %v1516
  %v1518 = vand.u32 %v227, 4294901760
  %v1519 = vsub.f32 %v227, %v1518
  %v1520 = vand.u32 %v1519, 4294901760
  %1521 = vmatpush.msra.mxu0 %v1520
  %v1522 = vand.u32 %v220, 4294901760
  %v1523 = vsub.f32 %v220, %v1522
  %v1524 = vand.u32 %v1523, 4294901760
  %1525 = vmatpush.msra.mxu0 %v1524
  %v1526 = vand.u32 %v213, 4294901760
  %v1527 = vsub.f32 %v213, %v1526
  %v1528 = vand.u32 %v1527, 4294901760
  %1529 = vmatpush.msra.mxu0 %v1528
  %v1530 = vand.u32 %v206, 4294901760
  %v1531 = vsub.f32 %v206, %v1530
  %v1532 = vand.u32 %v1531, 4294901760
  %1533 = vmatpush.msra.mxu0 %v1532
  %v1534 = vand.u32 %v199, 4294901760
  %v1535 = vsub.f32 %v199, %v1534
  %v1536 = vand.u32 %v1535, 4294901760
  %1537 = vmatpush.msra.mxu0 %v1536
  %v1538 = vand.u32 %v192, 4294901760
  %v1539 = vsub.f32 %v192, %v1538
  %v1540 = vand.u32 %v1539, 4294901760
  %1541 = vmatpush.msra.mxu0 %v1540
  %v1542 = vand.u32 %v185, 4294901760
  %v1543 = vsub.f32 %v185, %v1542
  %v1544 = vand.u32 %v1543, 4294901760
  %1545 = vmatpush.msra.mxu0 %v1544
  %v1546 = vand.u32 %v178, 4294901760
  %v1547 = vsub.f32 %v178, %v1546
  %v1548 = vand.u32 %v1547, 4294901760
  %1549 = vmatpush.msra.mxu0 %v1548
  %v1550 = vand.u32 %v171, 4294901760
  %v1551 = vsub.f32 %v171, %v1550
  %v1552 = vand.u32 %v1551, 4294901760
  %1553 = vmatpush.msra.mxu0 %v1552
  %v1554 = vand.u32 %v164, 4294901760
  %v1555 = vsub.f32 %v164, %v1554
  %v1556 = vand.u32 %v1555, 4294901760
  %1557 = vmatpush.msra.mxu0 %v1556
  %v1558 = vand.u32 %v157, 4294901760
  %v1559 = vsub.f32 %v157, %v1558
  %v1560 = vand.u32 %v1559, 4294901760
  %1561 = vmatpush.msra.mxu0 %v1560
  %v1562 = vand.u32 %v150, 4294901760
  %v1563 = vsub.f32 %v150, %v1562
  %v1564 = vand.u32 %v1563, 4294901760
  %1565 = vmatpush.msra.mxu0 %v1564
  %v1566 = vand.u32 %v143, 4294901760
  %v1567 = vsub.f32 %v143, %v1566
  %v1568 = vand.u32 %v1567, 4294901760
  %1569 = vmatpush.msra.mxu0 %v1568
  %v1570 = vand.u32 %v136, 4294901760
  %v1571 = vsub.f32 %v136, %v1570
  %v1572 = vand.u32 %v1571, 4294901760
  %1573 = vmatpush.msra.mxu0 %v1572
  %v1574 = vand.u32 %v129, 4294901760
  %v1575 = vsub.f32 %v129, %v1574
  %v1576 = vand.u32 %v1575, 4294901760
  %1577 = vmatpush.msra.mxu0 %v1576
  %v1578 = vand.u32 %v15, 4294901760
  %1579 = vmatmul.f32.gmra.mxu0 %v1578
  %v1580 = vpop.f32.mrf.mxu0
  %v1581 = vadd.f32 %v1512, %v1580
  %1582 = vdwg.mxu0
  %v1583 = vand.u32 %v234, 4294901760
  %1584 = vmatpush.msra.mxu0 %v1583
  %v1585 = vand.u32 %v227, 4294901760
  %1586 = vmatpush.msra.mxu0 %v1585
  %v1587 = vand.u32 %v220, 4294901760
  %1588 = vmatpush.msra.mxu0 %v1587
  %v1589 = vand.u32 %v213, 4294901760
  %1590 = vmatpush.msra.mxu0 %v1589
  %v1591 = vand.u32 %v206, 4294901760
  %1592 = vmatpush.msra.mxu0 %v1591
  %v1593 = vand.u32 %v199, 4294901760
  %1594 = vmatpush.msra.mxu0 %v1593
  %v1595 = vand.u32 %v192, 4294901760
  %1596 = vmatpush.msra.mxu0 %v1595
  %v1597 = vand.u32 %v185, 4294901760
  %1598 = vmatpush.msra.mxu0 %v1597
  %v1599 = vand.u32 %v178, 4294901760
  %1600 = vmatpush.msra.mxu0 %v1599
  %v1601 = vand.u32 %v171, 4294901760
  %1602 = vmatpush.msra.mxu0 %v1601
  %v1603 = vand.u32 %v164, 4294901760
  %1604 = vmatpush.msra.mxu0 %v1603
  %v1605 = vand.u32 %v157, 4294901760
  %1606 = vmatpush.msra.mxu0 %v1605
  %v1607 = vand.u32 %v150, 4294901760
  %1608 = vmatpush.msra.mxu0 %v1607
  %v1609 = vand.u32 %v143, 4294901760
  %1610 = vmatpush.msra.mxu0 %v1609
  %v1611 = vand.u32 %v136, 4294901760
  %1612 = vmatpush.msra.mxu0 %v1611
  %v1613 = vand.u32 %v129, 4294901760
  %1614 = vmatpush.msra.mxu0 %v1613
  %v1615 = vand.u32 %v15, 4294901760
  %1616 = vmatmul.f32.gmra.mxu0 %v1615
  %v1617 = vpop.f32.mrf.mxu0
  %v1618 = vadd.f32 %v1581, %v1617
  %1619 = vdwg.mxu0
  %v1620 = vand.u32 %v123, 4294901760
  %1621 = vmatpush.msra.mxu0 %v1620
  %v1622 = vand.u32 %v116, 4294901760
  %1623 = vmatpush.msra.mxu0 %v1622
  %v1624 = vand.u32 %v109, 4294901760
  %1625 = vmatpush.msra.mxu0 %v1624
  %v1626 = vand.u32 %v102, 4294901760
  %1627 = vmatpush.msra.mxu0 %v1626
  %v1628 = vand.u32 %v95, 4294901760
  %1629 = vmatpush.msra.mxu0 %v1628
  %v1630 = vand.u32 %v88, 4294901760
  %1631 = vmatpush.msra.mxu0 %v1630
  %v1632 = vand.u32 %v81, 4294901760
  %1633 = vmatpush.msra.mxu0 %v1632
  %v1634 = vand.u32 %v74, 4294901760
  %1635 = vmatpush.msra.mxu0 %v1634
  %v1636 = vand.u32 %v67, 4294901760
  %1637 = vmatpush.msra.mxu0 %v1636
  %v1638 = vand.u32 %v60, 4294901760
  %1639 = vmatpush.msra.mxu0 %v1638
  %v1640 = vand.u32 %v53, 4294901760
  %1641 = vmatpush.msra.mxu0 %v1640
  %v1642 = vand.u32 %v46, 4294901760
  %1643 = vmatpush.msra.mxu0 %v1642
  %v1644 = vand.u32 %v39, 4294901760
  %1645 = vmatpush.msra.mxu0 %v1644
  %v1646 = vand.u32 %v32, 4294901760
  %1647 = vmatpush.msra.mxu0 %v1646
  %v1648 = vand.u32 %v25, 4294901760
  %1649 = vmatpush.msra.mxu0 %v1648
  %v1650 = vand.u32 %v18, 4294901760
  %1651 = vmatpush.msra.mxu0 %v1650
  %v1652 = vand.u32 %v14, 4294901760
  %v1653 = vsub.f32 %v14, %v1652
  %v1654 = vand.u32 %v1653, 4294901760
  %v1655 = vsub.f32 %v1653, %v1654
  %v1656 = vand.u32 %v1655, 4294901760
  %1657 = vmatmul.f32.gmra.mxu0 %v1656
  %v1658 = vpop.f32.mrf.mxu0
  %v1659 = vadd.f32 %v244, %v1658
  %1660 = vdwg.mxu0
  %v1661 = vand.u32 %v123, 4294901760
  %v1662 = vsub.f32 %v123, %v1661
  %v1663 = vand.u32 %v1662, 4294901760
  %v1664 = vsub.f32 %v1662, %v1663
  %v1665 = vand.u32 %v1664, 4294901760
  %1666 = vmatpush.msra.mxu0 %v1665
  %v1667 = vand.u32 %v116, 4294901760
  %v1668 = vsub.f32 %v116, %v1667
  %v1669 = vand.u32 %v1668, 4294901760
  %v1670 = vsub.f32 %v1668, %v1669
  %v1671 = vand.u32 %v1670, 4294901760
  %1672 = vmatpush.msra.mxu0 %v1671
  %v1673 = vand.u32 %v109, 4294901760
  %v1674 = vsub.f32 %v109, %v1673
  %v1675 = vand.u32 %v1674, 4294901760
  %v1676 = vsub.f32 %v1674, %v1675
  %v1677 = vand.u32 %v1676, 4294901760
  %1678 = vmatpush.msra.mxu0 %v1677
  %v1679 = vand.u32 %v102, 4294901760
  %v1680 = vsub.f32 %v102, %v1679
  %v1681 = vand.u32 %v1680, 4294901760
  %v1682 = vsub.f32 %v1680, %v1681
  %v1683 = vand.u32 %v1682, 4294901760
  %1684 = vmatpush.msra.mxu0 %v1683
  %v1685 = vand.u32 %v95, 4294901760
  %v1686 = vsub.f32 %v95, %v1685
  %v1687 = vand.u32 %v1686, 4294901760
  %v1688 = vsub.f32 %v1686, %v1687
  %v1689 = vand.u32 %v1688, 4294901760
  %1690 = vmatpush.msra.mxu0 %v1689
  %v1691 = vand.u32 %v88, 4294901760
  %v1692 = vsub.f32 %v88, %v1691
  %v1693 = vand.u32 %v1692, 4294901760
  %v1694 = vsub.f32 %v1692, %v1693
  %v1695 = vand.u32 %v1694, 4294901760
  %1696 = vmatpush.msra.mxu0 %v1695
  %v1697 = vand.u32 %v81, 4294901760
  %v1698 = vsub.f32 %v81, %v1697
  %v1699 = vand.u32 %v1698, 4294901760
  %v1700 = vsub.f32 %v1698, %v1699
  %v1701 = vand.u32 %v1700, 4294901760
  %1702 = vmatpush.msra.mxu0 %v1701
  %v1703 = vand.u32 %v74, 4294901760
  %v1704 = vsub.f32 %v74, %v1703
  %v1705 = vand.u32 %v1704, 4294901760
  %v1706 = vsub.f32 %v1704, %v1705
  %v1707 = vand.u32 %v1706, 4294901760
  %1708 = vmatpush.msra.mxu0 %v1707
  %v1709 = vand.u32 %v67, 4294901760
  %v1710 = vsub.f32 %v67, %v1709
  %v1711 = vand.u32 %v1710, 4294901760
  %v1712 = vsub.f32 %v1710, %v1711
  %v1713 = vand.u32 %v1712, 4294901760
  %1714 = vmatpush.msra.mxu0 %v1713
  %v1715 = vand.u32 %v60, 4294901760
  %v1716 = vsub.f32 %v60, %v1715
  %v1717 = vand.u32 %v1716, 4294901760
  %v1718 = vsub.f32 %v1716, %v1717
  %v1719 = vand.u32 %v1718, 4294901760
  %1720 = vmatpush.msra.mxu0 %v1719
  %v1721 = vand.u32 %v53, 4294901760
  %v1722 = vsub.f32 %v53, %v1721
  %v1723 = vand.u32 %v1722, 4294901760
  %v1724 = vsub.f32 %v1722, %v1723
  %v1725 = vand.u32 %v1724, 4294901760
  %1726 = vmatpush.msra.mxu0 %v1725
  %v1727 = vand.u32 %v46, 4294901760
  %v1728 = vsub.f32 %v46, %v1727
  %v1729 = vand.u32 %v1728, 4294901760
  %v1730 = vsub.f32 %v1728, %v1729
  %v1731 = vand.u32 %v1730, 4294901760
  %1732 = vmatpush.msra.mxu0 %v1731
  %v1733 = vand.u32 %v39, 4294901760
  %v1734 = vsub.f32 %v39, %v1733
  %v1735 = vand.u32 %v1734, 4294901760
  %v1736 = vsub.f32 %v1734, %v1735
  %v1737 = vand.u32 %v1736, 4294901760
  %1738 = vmatpush.msra.mxu0 %v1737
  %v1739 = vand.u32 %v32, 4294901760
  %v1740 = vsub.f32 %v32, %v1739
  %v1741 = vand.u32 %v1740, 4294901760
  %v1742 = vsub.f32 %v1740, %v1741
  %v1743 = vand.u32 %v1742, 4294901760
  %1744 = vmatpush.msra.mxu0 %v1743
  %v1745 = vand.u32 %v25, 4294901760
  %v1746 = vsub.f32 %v25, %v1745
  %v1747 = vand.u32 %v1746, 4294901760
  %v1748 = vsub.f32 %v1746, %v1747
  %v1749 = vand.u32 %v1748, 4294901760
  %1750 = vmatpush.msra.mxu0 %v1749
  %v1751 = vand.u32 %v18, 4294901760
  %v1752 = vsub.f32 %v18, %v1751
  %v1753 = vand.u32 %v1752, 4294901760
  %v1754 = vsub.f32 %v1752, %v1753
  %v1755 = vand.u32 %v1754, 4294901760
  %1756 = vmatpush.msra.mxu0 %v1755
  %v1757 = vand.u32 %v14, 4294901760
  %1758 = vmatmul.f32.gmra.mxu0 %v1757
  %v1759 = vpop.f32.mrf.mxu0
  %v1760 = vadd.f32 %v1659, %v1759
  %1761 = vdwg.mxu0
  %v1762 = vand.u32 %v123, 4294901760
  %v1763 = vsub.f32 %v123, %v1762
  %1764 = vmatpush.msra.mxu0 %v1763
  %v1765 = vand.u32 %v116, 4294901760
  %v1766 = vsub.f32 %v116, %v1765
  %1767 = vmatpush.msra.mxu0 %v1766
  %v1768 = vand.u32 %v109, 4294901760
  %v1769 = vsub.f32 %v109, %v1768
  %1770 = vmatpush.msra.mxu0 %v1769
  %v1771 = vand.u32 %v102, 4294901760
  %v1772 = vsub.f32 %v102, %v1771
  %1773 = vmatpush.msra.mxu0 %v1772
  %v1774 = vand.u32 %v95, 4294901760
  %v1775 = vsub.f32 %v95, %v1774
  %1776 = vmatpush.msra.mxu0 %v1775
  %v1777 = vand.u32 %v88, 4294901760
  %v1778 = vsub.f32 %v88, %v1777
  %1779 = vmatpush.msra.mxu0 %v1778
  %v1780 = vand.u32 %v81, 4294901760
  %v1781 = vsub.f32 %v81, %v1780
  %1782 = vmatpush.msra.mxu0 %v1781
  %v1783 = vand.u32 %v74, 4294901760
  %v1784 = vsub.f32 %v74, %v1783
  %1785 = vmatpush.msra.mxu0 %v1784
  %v1786 = vand.u32 %v67, 4294901760
  %v1787 = vsub.f32 %v67, %v1786
  %1788 = vmatpush.msra.mxu0 %v1787
  %v1789 = vand.u32 %v60, 4294901760
  %v1790 = vsub.f32 %v60, %v1789
  %1791 = vmatpush.msra.mxu0 %v1790
  %v1792 = vand.u32 %v53, 4294901760
  %v1793 = vsub.f32 %v53, %v1792
  %1794 = vmatpush.msra.mxu0 %v1793
  %v1795 = vand.u32 %v46, 4294901760
  %v1796 = vsub.f32 %v46, %v1795
  %1797 = vmatpush.msra.mxu0 %v1796
  %v1798 = vand.u32 %v39, 4294901760
  %v1799 = vsub.f32 %v39, %v1798
  %1800 = vmatpush.msra.mxu0 %v1799
  %v1801 = vand.u32 %v32, 4294901760
  %v1802 = vsub.f32 %v32, %v1801
  %1803 = vmatpush.msra.mxu0 %v1802
  %v1804 = vand.u32 %v25, 4294901760
  %v1805 = vsub.f32 %v25, %v1804
  %1806 = vmatpush.msra.mxu0 %v1805
  %v1807 = vand.u32 %v18, 4294901760
  %v1808 = vsub.f32 %v18, %v1807
  %1809 = vmatpush.msra.mxu0 %v1808
  %v1810 = vand.u32 %v14, 4294901760
  %v1811 = vsub.f32 %v14, %v1810
  %1812 = vmatmul.f32.gmra.mxu0 %v1811
  %v1813 = vpop.f32.mrf.mxu0
  %v1814 = vadd.f32 %v1760, %v1813
  %1815 = vdwg.mxu0
  %v1816 = vand.u32 %v123, 4294901760
  %1817 = vmatpush.msra.mxu0 %v1816
  %v1818 = vand.u32 %v116, 4294901760
  %1819 = vmatpush.msra.mxu0 %v1818
  %v1820 = vand.u32 %v109, 4294901760
  %1821 = vmatpush.msra.mxu0 %v1820
  %v1822 = vand.u32 %v102, 4294901760
  %1823 = vmatpush.msra.mxu0 %v1822
  %v1824 = vand.u32 %v95, 4294901760
  %1825 = vmatpush.msra.mxu0 %v1824
  %v1826 = vand.u32 %v88, 4294901760
  %1827 = vmatpush.msra.mxu0 %v1826
  %v1828 = vand.u32 %v81, 4294901760
  %1829 = vmatpush.msra.mxu0 %v1828
  %v1830 = vand.u32 %v74, 4294901760
  %1831 = vmatpush.msra.mxu0 %v1830
  %v1832 = vand.u32 %v67, 4294901760
  %1833 = vmatpush.msra.mxu0 %v1832
  %v1834 = vand.u32 %v60, 4294901760
  %1835 = vmatpush.msra.mxu0 %v1834
  %v1836 = vand.u32 %v53, 4294901760
  %1837 = vmatpush.msra.mxu0 %v1836
  %v1838 = vand.u32 %v46, 4294901760
  %1839 = vmatpush.msra.mxu0 %v1838
  %v1840 = vand.u32 %v39, 4294901760
  %1841 = vmatpush.msra.mxu0 %v1840
  %v1842 = vand.u32 %v32, 4294901760
  %1843 = vmatpush.msra.mxu0 %v1842
  %v1844 = vand.u32 %v25, 4294901760
  %1845 = vmatpush.msra.mxu0 %v1844
  %v1846 = vand.u32 %v18, 4294901760
  %1847 = vmatpush.msra.mxu0 %v1846
  %v1848 = vand.u32 %v14, 4294901760
  %v1849 = vsub.f32 %v14, %v1848
  %v1850 = vand.u32 %v1849, 4294901760
  %1851 = vmatmul.f32.gmra.mxu0 %v1850
  %v1852 = vpop.f32.mrf.mxu0
  %v1853 = vadd.f32 %v1814, %v1852
  %1854 = vdwg.mxu0
  %v1855 = vand.u32 %v123, 4294901760
  %v1856 = vsub.f32 %v123, %v1855
  %v1857 = vand.u32 %v1856, 4294901760
  %1858 = vmatpush.msra.mxu0 %v1857
  %v1859 = vand.u32 %v116, 4294901760
  %v1860 = vsub.f32 %v116, %v1859
  %v1861 = vand.u32 %v1860, 4294901760
  %1862 = vmatpush.msra.mxu0 %v1861
  %v1863 = vand.u32 %v109, 4294901760
  %v1864 = vsub.f32 %v109, %v1863
  %v1865 = vand.u32 %v1864, 4294901760
  %1866 = vmatpush.msra.mxu0 %v1865
  %v1867 = vand.u32 %v102, 4294901760
  %v1868 = vsub.f32 %v102, %v1867
  %v1869 = vand.u32 %v1868, 4294901760
  %1870 = vmatpush.msra.mxu0 %v1869
  %v1871 = vand.u32 %v95, 4294901760
  %v1872 = vsub.f32 %v95, %v1871
  %v1873 = vand.u32 %v1872, 4294901760
  %1874 = vmatpush.msra.mxu0 %v1873
  %v1875 = vand.u32 %v88, 4294901760
  %v1876 = vsub.f32 %v88, %v1875
  %v1877 = vand.u32 %v1876, 4294901760
  %1878 = vmatpush.msra.mxu0 %v1877
  %v1879 = vand.u32 %v81, 4294901760
  %v1880 = vsub.f32 %v81, %v1879
  %v1881 = vand.u32 %v1880, 4294901760
  %1882 = vmatpush.msra.mxu0 %v1881
  %v1883 = vand.u32 %v74, 4294901760
  %v1884 = vsub.f32 %v74, %v1883
  %v1885 = vand.u32 %v1884, 4294901760
  %1886 = vmatpush.msra.mxu0 %v1885
  %v1887 = vand.u32 %v67, 4294901760
  %v1888 = vsub.f32 %v67, %v1887
  %v1889 = vand.u32 %v1888, 4294901760
  %1890 = vmatpush.msra.mxu0 %v1889
  %v1891 = vand.u32 %v60, 4294901760
  %v1892 = vsub.f32 %v60, %v1891
  %v1893 = vand.u32 %v1892, 4294901760
  %1894 = vmatpush.msra.mxu0 %v1893
  %v1895 = vand.u32 %v53, 4294901760
  %v1896 = vsub.f32 %v53, %v1895
  %v1897 = vand.u32 %v1896, 4294901760
  %1898 = vmatpush.msra.mxu0 %v1897
  %v1899 = vand.u32 %v46, 4294901760
  %v1900 = vsub.f32 %v46, %v1899
  %v1901 = vand.u32 %v1900, 4294901760
  %1902 = vmatpush.msra.mxu0 %v1901
  %v1903 = vand.u32 %v39, 4294901760
  %v1904 = vsub.f32 %v39, %v1903
  %v1905 = vand.u32 %v1904, 4294901760
  %1906 = vmatpush.msra.mxu0 %v1905
  %v1907 = vand.u32 %v32, 4294901760
  %v1908 = vsub.f32 %v32, %v1907
  %v1909 = vand.u32 %v1908, 4294901760
  %1910 = vmatpush.msra.mxu0 %v1909
  %v1911 = vand.u32 %v25, 4294901760
  %v1912 = vsub.f32 %v25, %v1911
  %v1913 = vand.u32 %v1912, 4294901760
  %1914 = vmatpush.msra.mxu0 %v1913
  %v1915 = vand.u32 %v18, 4294901760
  %v1916 = vsub.f32 %v18, %v1915
  %v1917 = vand.u32 %v1916, 4294901760
  %1918 = vmatpush.msra.mxu0 %v1917
  %v1919 = vand.u32 %v14, 4294901760
  %1920 = vmatmul.f32.gmra.mxu0 %v1919
  %v1921 = vpop.f32.mrf.mxu0
  %v1922 = vadd.f32 %v1853, %v1921
  %1923 = vdwg.mxu0
  %v1924 = vand.u32 %v123, 4294901760
  %1925 = vmatpush.msra.mxu0 %v1924
  %v1926 = vand.u32 %v116, 4294901760
  %1927 = vmatpush.msra.mxu0 %v1926
  %v1928 = vand.u32 %v109, 4294901760
  %1929 = vmatpush.msra.mxu0 %v1928
  %v1930 = vand.u32 %v102, 4294901760
  %1931 = vmatpush.msra.mxu0 %v1930
  %v1932 = vand.u32 %v95, 4294901760
  %1933 = vmatpush.msra.mxu0 %v1932
  %v1934 = vand.u32 %v88, 4294901760
  %1935 = vmatpush.msra.mxu0 %v1934
  %v1936 = vand.u32 %v81, 4294901760
  %1937 = vmatpush.msra.mxu0 %v1936
  %v1938 = vand.u32 %v74, 4294901760
  %1939 = vmatpush.msra.mxu0 %v1938
  %v1940 = vand.u32 %v67, 4294901760
  %1941 = vmatpush.msra.mxu0 %v1940
  %v1942 = vand.u32 %v60, 4294901760
  %1943 = vmatpush.msra.mxu0 %v1942
  %v1944 = vand.u32 %v53, 4294901760
  %1945 = vmatpush.msra.mxu0 %v1944
  %v1946 = vand.u32 %v46, 4294901760
  %1947 = vmatpush.msra.mxu0 %v1946
  %v1948 = vand.u32 %v39, 4294901760
  %1949 = vmatpush.msra.mxu0 %v1948
  %v1950 = vand.u32 %v32, 4294901760
  %1951 = vmatpush.msra.mxu0 %v1950
  %v1952 = vand.u32 %v25, 4294901760
  %1953 = vmatpush.msra.mxu0 %v1952
  %v1954 = vand.u32 %v18, 4294901760
  %1955 = vmatpush.msra.mxu0 %v1954
  %v1956 = vand.u32 %v14, 4294901760
  %1957 = vmatmul.f32.gmra.mxu0 %v1956
  %v1958 = vpop.f32.mrf.mxu0
  %v1959 = vadd.f32 %v1922, %v1958
  %1960 = vdwg.mxu0
  %v1961 = vand.u32 %v235, 4294901760
  %1962 = vmatpush.msra.mxu0 %v1961
  %v1963 = vand.u32 %v228, 4294901760
  %1964 = vmatpush.msra.mxu0 %v1963
  %v1965 = vand.u32 %v221, 4294901760
  %1966 = vmatpush.msra.mxu0 %v1965
  %v1967 = vand.u32 %v214, 4294901760
  %1968 = vmatpush.msra.mxu0 %v1967
  %v1969 = vand.u32 %v207, 4294901760
  %1970 = vmatpush.msra.mxu0 %v1969
  %v1971 = vand.u32 %v200, 4294901760
  %1972 = vmatpush.msra.mxu0 %v1971
  %v1973 = vand.u32 %v193, 4294901760
  %1974 = vmatpush.msra.mxu0 %v1973
  %v1975 = vand.u32 %v186, 4294901760
  %1976 = vmatpush.msra.mxu0 %v1975
  %v1977 = vand.u32 %v179, 4294901760
  %1978 = vmatpush.msra.mxu0 %v1977
  %v1979 = vand.u32 %v172, 4294901760
  %1980 = vmatpush.msra.mxu0 %v1979
  %v1981 = vand.u32 %v165, 4294901760
  %1982 = vmatpush.msra.mxu0 %v1981
  %v1983 = vand.u32 %v158, 4294901760
  %1984 = vmatpush.msra.mxu0 %v1983
  %v1985 = vand.u32 %v151, 4294901760
  %1986 = vmatpush.msra.mxu0 %v1985
  %v1987 = vand.u32 %v144, 4294901760
  %1988 = vmatpush.msra.mxu0 %v1987
  %v1989 = vand.u32 %v137, 4294901760
  %1990 = vmatpush.msra.mxu0 %v1989
  %v1991 = vand.u32 %v130, 4294901760
  %1992 = vmatpush.msra.mxu0 %v1991
  %v1993 = vand.u32 %v15, 4294901760
  %v1994 = vsub.f32 %v15, %v1993
  %v1995 = vand.u32 %v1994, 4294901760
  %v1996 = vsub.f32 %v1994, %v1995
  %v1997 = vand.u32 %v1996, 4294901760
  %1998 = vmatmul.f32.gmra.mxu0 %v1997
  %v1999 = vpop.f32.mrf.mxu0
  %v2000 = vadd.f32 %v1959, %v1999
  %2001 = vdwg.mxu0
  %v2002 = vand.u32 %v235, 4294901760
  %v2003 = vsub.f32 %v235, %v2002
  %v2004 = vand.u32 %v2003, 4294901760
  %v2005 = vsub.f32 %v2003, %v2004
  %v2006 = vand.u32 %v2005, 4294901760
  %2007 = vmatpush.msra.mxu0 %v2006
  %v2008 = vand.u32 %v228, 4294901760
  %v2009 = vsub.f32 %v228, %v2008
  %v2010 = vand.u32 %v2009, 4294901760
  %v2011 = vsub.f32 %v2009, %v2010
  %v2012 = vand.u32 %v2011, 4294901760
  %2013 = vmatpush.msra.mxu0 %v2012
  %v2014 = vand.u32 %v221, 4294901760
  %v2015 = vsub.f32 %v221, %v2014
  %v2016 = vand.u32 %v2015, 4294901760
  %v2017 = vsub.f32 %v2015, %v2016
  %v2018 = vand.u32 %v2017, 4294901760
  %2019 = vmatpush.msra.mxu0 %v2018
  %v2020 = vand.u32 %v214, 4294901760
  %v2021 = vsub.f32 %v214, %v2020
  %v2022 = vand.u32 %v2021, 4294901760
  %v2023 = vsub.f32 %v2021, %v2022
  %v2024 = vand.u32 %v2023, 4294901760
  %2025 = vmatpush.msra.mxu0 %v2024
  %v2026 = vand.u32 %v207, 4294901760
  %v2027 = vsub.f32 %v207, %v2026
  %v2028 = vand.u32 %v2027, 4294901760
  %v2029 = vsub.f32 %v2027, %v2028
  %v2030 = vand.u32 %v2029, 4294901760
  %2031 = vmatpush.msra.mxu0 %v2030
  %v2032 = vand.u32 %v200, 4294901760
  %v2033 = vsub.f32 %v200, %v2032
  %v2034 = vand.u32 %v2033, 4294901760
  %v2035 = vsub.f32 %v2033, %v2034
  %v2036 = vand.u32 %v2035, 4294901760
  %2037 = vmatpush.msra.mxu0 %v2036
  %v2038 = vand.u32 %v193, 4294901760
  %v2039 = vsub.f32 %v193, %v2038
  %v2040 = vand.u32 %v2039, 4294901760
  %v2041 = vsub.f32 %v2039, %v2040
  %v2042 = vand.u32 %v2041, 4294901760
  %2043 = vmatpush.msra.mxu0 %v2042
  %v2044 = vand.u32 %v186, 4294901760
  %v2045 = vsub.f32 %v186, %v2044
  %v2046 = vand.u32 %v2045, 4294901760
  %v2047 = vsub.f32 %v2045, %v2046
  %v2048 = vand.u32 %v2047, 4294901760
  %2049 = vmatpush.msra.mxu0 %v2048
  %v2050 = vand.u32 %v179, 4294901760
  %v2051 = vsub.f32 %v179, %v2050
  %v2052 = vand.u32 %v2051, 4294901760
  %v2053 = vsub.f32 %v2051, %v2052
  %v2054 = vand.u32 %v2053, 4294901760
  %2055 = vmatpush.msra.mxu0 %v2054
  %v2056 = vand.u32 %v172, 4294901760
  %v2057 = vsub.f32 %v172, %v2056
  %v2058 = vand.u32 %v2057, 4294901760
  %v2059 = vsub.f32 %v2057, %v2058
  %v2060 = vand.u32 %v2059, 4294901760
  %2061 = vmatpush.msra.mxu0 %v2060
  %v2062 = vand.u32 %v165, 4294901760
  %v2063 = vsub.f32 %v165, %v2062
  %v2064 = vand.u32 %v2063, 4294901760
  %v2065 = vsub.f32 %v2063, %v2064
  %v2066 = vand.u32 %v2065, 4294901760
  %2067 = vmatpush.msra.mxu0 %v2066
  %v2068 = vand.u32 %v158, 4294901760
  %v2069 = vsub.f32 %v158, %v2068
  %v2070 = vand.u32 %v2069, 4294901760
  %v2071 = vsub.f32 %v2069, %v2070
  %v2072 = vand.u32 %v2071, 4294901760
  %2073 = vmatpush.msra.mxu0 %v2072
  %v2074 = vand.u32 %v151, 4294901760
  %v2075 = vsub.f32 %v151, %v2074
  %v2076 = vand.u32 %v2075, 4294901760
  %v2077 = vsub.f32 %v2075, %v2076
  %v2078 = vand.u32 %v2077, 4294901760
  %2079 = vmatpush.msra.mxu0 %v2078
  %v2080 = vand.u32 %v144, 4294901760
  %v2081 = vsub.f32 %v144, %v2080
  %v2082 = vand.u32 %v2081, 4294901760
  %v2083 = vsub.f32 %v2081, %v2082
  %v2084 = vand.u32 %v2083, 4294901760
  %2085 = vmatpush.msra.mxu0 %v2084
  %v2086 = vand.u32 %v137, 4294901760
  %v2087 = vsub.f32 %v137, %v2086
  %v2088 = vand.u32 %v2087, 4294901760
  %v2089 = vsub.f32 %v2087, %v2088
  %v2090 = vand.u32 %v2089, 4294901760
  %2091 = vmatpush.msra.mxu0 %v2090
  %v2092 = vand.u32 %v130, 4294901760
  %v2093 = vsub.f32 %v130, %v2092
  %v2094 = vand.u32 %v2093, 4294901760
  %v2095 = vsub.f32 %v2093, %v2094
  %v2096 = vand.u32 %v2095, 4294901760
  %2097 = vmatpush.msra.mxu0 %v2096
  %v2098 = vand.u32 %v15, 4294901760
  %2099 = vmatmul.f32.gmra.mxu0 %v2098
  %v2100 = vpop.f32.mrf.mxu0
  %v2101 = vadd.f32 %v2000, %v2100
  %2102 = vdwg.mxu0
  %v2103 = vand.u32 %v235, 4294901760
  %v2104 = vsub.f32 %v235, %v2103
  %2105 = vmatpush.msra.mxu0 %v2104
  %v2106 = vand.u32 %v228, 4294901760
  %v2107 = vsub.f32 %v228, %v2106
  %2108 = vmatpush.msra.mxu0 %v2107
  %v2109 = vand.u32 %v221, 4294901760
  %v2110 = vsub.f32 %v221, %v2109
  %2111 = vmatpush.msra.mxu0 %v2110
  %v2112 = vand.u32 %v214, 4294901760
  %v2113 = vsub.f32 %v214, %v2112
  %2114 = vmatpush.msra.mxu0 %v2113
  %v2115 = vand.u32 %v207, 4294901760
  %v2116 = vsub.f32 %v207, %v2115
  %2117 = vmatpush.msra.mxu0 %v2116
  %v2118 = vand.u32 %v200, 4294901760
  %v2119 = vsub.f32 %v200, %v2118
  %2120 = vmatpush.msra.mxu0 %v2119
  %v2121 = vand.u32 %v193, 4294901760
  %v2122 = vsub.f32 %v193, %v2121
  %2123 = vmatpush.msra.mxu0 %v2122
  %v2124 = vand.u32 %v186, 4294901760
  %v2125 = vsub.f32 %v186, %v2124
  %2126 = vmatpush.msra.mxu0 %v2125
  %v2127 = vand.u32 %v179, 4294901760
  %v2128 = vsub.f32 %v179, %v2127
  %2129 = vmatpush.msra.mxu0 %v2128
  %v2130 = vand.u32 %v172, 4294901760
  %v2131 = vsub.f32 %v172, %v2130
  %2132 = vmatpush.msra.mxu0 %v2131
  %v2133 = vand.u32 %v165, 4294901760
  %v2134 = vsub.f32 %v165, %v2133
  %2135 = vmatpush.msra.mxu0 %v2134
  %v2136 = vand.u32 %v158, 4294901760
  %v2137 = vsub.f32 %v158, %v2136
  %2138 = vmatpush.msra.mxu0 %v2137
  %v2139 = vand.u32 %v151, 4294901760
  %v2140 = vsub.f32 %v151, %v2139
  %2141 = vmatpush.msra.mxu0 %v2140
  %v2142 = vand.u32 %v144, 4294901760
  %v2143 = vsub.f32 %v144, %v2142
  %2144 = vmatpush.msra.mxu0 %v2143
  %v2145 = vand.u32 %v137, 4294901760
  %v2146 = vsub.f32 %v137, %v2145
  %2147 = vmatpush.msra.mxu0 %v2146
  %v2148 = vand.u32 %v130, 4294901760
  %v2149 = vsub.f32 %v130, %v2148
  %2150 = vmatpush.msra.mxu0 %v2149
  %v2151 = vand.u32 %v15, 4294901760
  %v2152 = vsub.f32 %v15, %v2151
  %2153 = vmatmul.f32.gmra.mxu0 %v2152
  %v2154 = vpop.f32.mrf.mxu0
  %v2155 = vadd.f32 %v2101, %v2154
  %2156 = vdwg.mxu0
  %v2157 = vand.u32 %v235, 4294901760
  %2158 = vmatpush.msra.mxu0 %v2157
  %v2159 = vand.u32 %v228, 4294901760
  %2160 = vmatpush.msra.mxu0 %v2159
  %v2161 = vand.u32 %v221, 4294901760
  %2162 = vmatpush.msra.mxu0 %v2161
  %v2163 = vand.u32 %v214, 4294901760
  %2164 = vmatpush.msra.mxu0 %v2163
  %v2165 = vand.u32 %v207, 4294901760
  %2166 = vmatpush.msra.mxu0 %v2165
  %v2167 = vand.u32 %v200, 4294901760
  %2168 = vmatpush.msra.mxu0 %v2167
  %v2169 = vand.u32 %v193, 4294901760
  %2170 = vmatpush.msra.mxu0 %v2169
  %v2171 = vand.u32 %v186, 4294901760
  %2172 = vmatpush.msra.mxu0 %v2171
  %v2173 = vand.u32 %v179, 4294901760
  %2174 = vmatpush.msra.mxu0 %v2173
  %v2175 = vand.u32 %v172, 4294901760
  %2176 = vmatpush.msra.mxu0 %v2175
  %v2177 = vand.u32 %v165, 4294901760
  %2178 = vmatpush.msra.mxu0 %v2177
  %v2179 = vand.u32 %v158, 4294901760
  %2180 = vmatpush.msra.mxu0 %v2179
  %v2181 = vand.u32 %v151, 4294901760
  %2182 = vmatpush.msra.mxu0 %v2181
  %v2183 = vand.u32 %v144, 4294901760
  %2184 = vmatpush.msra.mxu0 %v2183
  %v2185 = vand.u32 %v137, 4294901760
  %2186 = vmatpush.msra.mxu0 %v2185
  %v2187 = vand.u32 %v130, 4294901760
  %2188 = vmatpush.msra.mxu0 %v2187
  %v2189 = vand.u32 %v15, 4294901760
  %v2190 = vsub.f32 %v15, %v2189
  %v2191 = vand.u32 %v2190, 4294901760
  %2192 = vmatmul.f32.gmra.mxu0 %v2191
  %v2193 = vpop.f32.mrf.mxu0
  %v2194 = vadd.f32 %v2155, %v2193
  %2195 = vdwg.mxu0
  %v2196 = vand.u32 %v235, 4294901760
  %v2197 = vsub.f32 %v235, %v2196
  %v2198 = vand.u32 %v2197, 4294901760
  %2199 = vmatpush.msra.mxu0 %v2198
  %v2200 = vand.u32 %v228, 4294901760
  %v2201 = vsub.f32 %v228, %v2200
  %v2202 = vand.u32 %v2201, 4294901760
  %2203 = vmatpush.msra.mxu0 %v2202
  %v2204 = vand.u32 %v221, 4294901760
  %v2205 = vsub.f32 %v221, %v2204
  %v2206 = vand.u32 %v2205, 4294901760
  %2207 = vmatpush.msra.mxu0 %v2206
  %v2208 = vand.u32 %v214, 4294901760
  %v2209 = vsub.f32 %v214, %v2208
  %v2210 = vand.u32 %v2209, 4294901760
  %2211 = vmatpush.msra.mxu0 %v2210
  %v2212 = vand.u32 %v207, 4294901760
  %v2213 = vsub.f32 %v207, %v2212
  %v2214 = vand.u32 %v2213, 4294901760
  %2215 = vmatpush.msra.mxu0 %v2214
  %v2216 = vand.u32 %v200, 4294901760
  %v2217 = vsub.f32 %v200, %v2216
  %v2218 = vand.u32 %v2217, 4294901760
  %2219 = vmatpush.msra.mxu0 %v2218
  %v2220 = vand.u32 %v193, 4294901760
  %v2221 = vsub.f32 %v193, %v2220
  %v2222 = vand.u32 %v2221, 4294901760
  %2223 = vmatpush.msra.mxu0 %v2222
  %v2224 = vand.u32 %v186, 4294901760
  %v2225 = vsub.f32 %v186, %v2224
  %v2226 = vand.u32 %v2225, 4294901760
  %2227 = vmatpush.msra.mxu0 %v2226
  %v2228 = vand.u32 %v179, 4294901760
  %v2229 = vsub.f32 %v179, %v2228
  %v2230 = vand.u32 %v2229, 4294901760
  %2231 = vmatpush.msra.mxu0 %v2230
  %v2232 = vand.u32 %v172, 4294901760
  %v2233 = vsub.f32 %v172, %v2232
  %v2234 = vand.u32 %v2233, 4294901760
  %2235 = vmatpush.msra.mxu0 %v2234
  %v2236 = vand.u32 %v165, 4294901760
  %v2237 = vsub.f32 %v165, %v2236
  %v2238 = vand.u32 %v2237, 4294901760
  %2239 = vmatpush.msra.mxu0 %v2238
  %v2240 = vand.u32 %v158, 4294901760
  %v2241 = vsub.f32 %v158, %v2240
  %v2242 = vand.u32 %v2241, 4294901760
  %2243 = vmatpush.msra.mxu0 %v2242
  %v2244 = vand.u32 %v151, 4294901760
  %v2245 = vsub.f32 %v151, %v2244
  %v2246 = vand.u32 %v2245, 4294901760
  %2247 = vmatpush.msra.mxu0 %v2246
  %v2248 = vand.u32 %v144, 4294901760
  %v2249 = vsub.f32 %v144, %v2248
  %v2250 = vand.u32 %v2249, 4294901760
  %2251 = vmatpush.msra.mxu0 %v2250
  %v2252 = vand.u32 %v137, 4294901760
  %v2253 = vsub.f32 %v137, %v2252
  %v2254 = vand.u32 %v2253, 4294901760
  %2255 = vmatpush.msra.mxu0 %v2254
  %v2256 = vand.u32 %v130, 4294901760
  %v2257 = vsub.f32 %v130, %v2256
  %v2258 = vand.u32 %v2257, 4294901760
  %2259 = vmatpush.msra.mxu0 %v2258
  %v2260 = vand.u32 %v15, 4294901760
  %2261 = vmatmul.f32.gmra.mxu0 %v2260
  %v2262 = vpop.f32.mrf.mxu0
  %v2263 = vadd.f32 %v2194, %v2262
  %2264 = vdwg.mxu0
  %v2265 = vand.u32 %v235, 4294901760
  %2266 = vmatpush.msra.mxu0 %v2265
  %v2267 = vand.u32 %v228, 4294901760
  %2268 = vmatpush.msra.mxu0 %v2267
  %v2269 = vand.u32 %v221, 4294901760
  %2270 = vmatpush.msra.mxu0 %v2269
  %v2271 = vand.u32 %v214, 4294901760
  %2272 = vmatpush.msra.mxu0 %v2271
  %v2273 = vand.u32 %v207, 4294901760
  %2274 = vmatpush.msra.mxu0 %v2273
  %v2275 = vand.u32 %v200, 4294901760
  %2276 = vmatpush.msra.mxu0 %v2275
  %v2277 = vand.u32 %v193, 4294901760
  %2278 = vmatpush.msra.mxu0 %v2277
  %v2279 = vand.u32 %v186, 4294901760
  %2280 = vmatpush.msra.mxu0 %v2279
  %v2281 = vand.u32 %v179, 4294901760
  %2282 = vmatpush.msra.mxu0 %v2281
  %v2283 = vand.u32 %v172, 4294901760
  %2284 = vmatpush.msra.mxu0 %v2283
  %v2285 = vand.u32 %v165, 4294901760
  %2286 = vmatpush.msra.mxu0 %v2285
  %v2287 = vand.u32 %v158, 4294901760
  %2288 = vmatpush.msra.mxu0 %v2287
  %v2289 = vand.u32 %v151, 4294901760
  %2290 = vmatpush.msra.mxu0 %v2289
  %v2291 = vand.u32 %v144, 4294901760
  %2292 = vmatpush.msra.mxu0 %v2291
  %v2293 = vand.u32 %v137, 4294901760
  %2294 = vmatpush.msra.mxu0 %v2293
  %v2295 = vand.u32 %v130, 4294901760
  %2296 = vmatpush.msra.mxu0 %v2295
  %v2297 = vand.u32 %v15, 4294901760
  %2298 = vmatmul.f32.gmra.mxu0 %v2297
  %v2299 = vpop.f32.mrf.mxu0
  %v2300 = vadd.f32 %v2263, %v2299
  %2301 = vdwg.mxu0
  %v2302 = vand.u32 %v124, 4294901760
  %2303 = vmatpush.msra.mxu0 %v2302
  %v2304 = vand.u32 %v117, 4294901760
  %2305 = vmatpush.msra.mxu0 %v2304
  %v2306 = vand.u32 %v110, 4294901760
  %2307 = vmatpush.msra.mxu0 %v2306
  %v2308 = vand.u32 %v103, 4294901760
  %2309 = vmatpush.msra.mxu0 %v2308
  %v2310 = vand.u32 %v96, 4294901760
  %2311 = vmatpush.msra.mxu0 %v2310
  %v2312 = vand.u32 %v89, 4294901760
  %2313 = vmatpush.msra.mxu0 %v2312
  %v2314 = vand.u32 %v82, 4294901760
  %2315 = vmatpush.msra.mxu0 %v2314
  %v2316 = vand.u32 %v75, 4294901760
  %2317 = vmatpush.msra.mxu0 %v2316
  %v2318 = vand.u32 %v68, 4294901760
  %2319 = vmatpush.msra.mxu0 %v2318
  %v2320 = vand.u32 %v61, 4294901760
  %2321 = vmatpush.msra.mxu0 %v2320
  %v2322 = vand.u32 %v54, 4294901760
  %2323 = vmatpush.msra.mxu0 %v2322
  %v2324 = vand.u32 %v47, 4294901760
  %2325 = vmatpush.msra.mxu0 %v2324
  %v2326 = vand.u32 %v40, 4294901760
  %2327 = vmatpush.msra.mxu0 %v2326
  %v2328 = vand.u32 %v33, 4294901760
  %2329 = vmatpush.msra.mxu0 %v2328
  %v2330 = vand.u32 %v26, 4294901760
  %2331 = vmatpush.msra.mxu0 %v2330
  %v2332 = vand.u32 %v19, 4294901760
  %2333 = vmatpush.msra.mxu0 %v2332
  %v2334 = vand.u32 %v14, 4294901760
  %v2335 = vsub.f32 %v14, %v2334
  %v2336 = vand.u32 %v2335, 4294901760
  %v2337 = vsub.f32 %v2335, %v2336
  %v2338 = vand.u32 %v2337, 4294901760
  %2339 = vmatmul.f32.gmra.mxu0 %v2338
  %v2340 = vpop.f32.mrf.mxu0
  %v2341 = vadd.f32 %v245, %v2340
  %2342 = vdwg.mxu0
  %v2343 = vand.u32 %v124, 4294901760
  %v2344 = vsub.f32 %v124, %v2343
  %v2345 = vand.u32 %v2344, 4294901760
  %v2346 = vsub.f32 %v2344, %v2345
  %v2347 = vand.u32 %v2346, 4294901760
  %2348 = vmatpush.msra.mxu0 %v2347
  %v2349 = vand.u32 %v117, 4294901760
  %v2350 = vsub.f32 %v117, %v2349
  %v2351 = vand.u32 %v2350, 4294901760
  %v2352 = vsub.f32 %v2350, %v2351
  %v2353 = vand.u32 %v2352, 4294901760
  %2354 = vmatpush.msra.mxu0 %v2353
  %v2355 = vand.u32 %v110, 4294901760
  %v2356 = vsub.f32 %v110, %v2355
  %v2357 = vand.u32 %v2356, 4294901760
  %v2358 = vsub.f32 %v2356, %v2357
  %v2359 = vand.u32 %v2358, 4294901760
  %2360 = vmatpush.msra.mxu0 %v2359
  %v2361 = vand.u32 %v103, 4294901760
  %v2362 = vsub.f32 %v103, %v2361
  %v2363 = vand.u32 %v2362, 4294901760
  %v2364 = vsub.f32 %v2362, %v2363
  %v2365 = vand.u32 %v2364, 4294901760
  %2366 = vmatpush.msra.mxu0 %v2365
  %v2367 = vand.u32 %v96, 4294901760
  %v2368 = vsub.f32 %v96, %v2367
  %v2369 = vand.u32 %v2368, 4294901760
  %v2370 = vsub.f32 %v2368, %v2369
  %v2371 = vand.u32 %v2370, 4294901760
  %2372 = vmatpush.msra.mxu0 %v2371
  %v2373 = vand.u32 %v89, 4294901760
  %v2374 = vsub.f32 %v89, %v2373
  %v2375 = vand.u32 %v2374, 4294901760
  %v2376 = vsub.f32 %v2374, %v2375
  %v2377 = vand.u32 %v2376, 4294901760
  %2378 = vmatpush.msra.mxu0 %v2377
  %v2379 = vand.u32 %v82, 4294901760
  %v2380 = vsub.f32 %v82, %v2379
  %v2381 = vand.u32 %v2380, 4294901760
  %v2382 = vsub.f32 %v2380, %v2381
  %v2383 = vand.u32 %v2382, 4294901760
  %2384 = vmatpush.msra.mxu0 %v2383
  %v2385 = vand.u32 %v75, 4294901760
  %v2386 = vsub.f32 %v75, %v2385
  %v2387 = vand.u32 %v2386, 4294901760
  %v2388 = vsub.f32 %v2386, %v2387
  %v2389 = vand.u32 %v2388, 4294901760
  %2390 = vmatpush.msra.mxu0 %v2389
  %v2391 = vand.u32 %v68, 4294901760
  %v2392 = vsub.f32 %v68, %v2391
  %v2393 = vand.u32 %v2392, 4294901760
  %v2394 = vsub.f32 %v2392, %v2393
  %v2395 = vand.u32 %v2394, 4294901760
  %2396 = vmatpush.msra.mxu0 %v2395
  %v2397 = vand.u32 %v61, 4294901760
  %v2398 = vsub.f32 %v61, %v2397
  %v2399 = vand.u32 %v2398, 4294901760
  %v2400 = vsub.f32 %v2398, %v2399
  %v2401 = vand.u32 %v2400, 4294901760
  %2402 = vmatpush.msra.mxu0 %v2401
  %v2403 = vand.u32 %v54, 4294901760
  %v2404 = vsub.f32 %v54, %v2403
  %v2405 = vand.u32 %v2404, 4294901760
  %v2406 = vsub.f32 %v2404, %v2405
  %v2407 = vand.u32 %v2406, 4294901760
  %2408 = vmatpush.msra.mxu0 %v2407
  %v2409 = vand.u32 %v47, 4294901760
  %v2410 = vsub.f32 %v47, %v2409
  %v2411 = vand.u32 %v2410, 4294901760
  %v2412 = vsub.f32 %v2410, %v2411
  %v2413 = vand.u32 %v2412, 4294901760
  %2414 = vmatpush.msra.mxu0 %v2413
  %v2415 = vand.u32 %v40, 4294901760
  %v2416 = vsub.f32 %v40, %v2415
  %v2417 = vand.u32 %v2416, 4294901760
  %v2418 = vsub.f32 %v2416, %v2417
  %v2419 = vand.u32 %v2418, 4294901760
  %2420 = vmatpush.msra.mxu0 %v2419
  %v2421 = vand.u32 %v33, 4294901760
  %v2422 = vsub.f32 %v33, %v2421
  %v2423 = vand.u32 %v2422, 4294901760
  %v2424 = vsub.f32 %v2422, %v2423
  %v2425 = vand.u32 %v2424, 4294901760
  %2426 = vmatpush.msra.mxu0 %v2425
  %v2427 = vand.u32 %v26, 4294901760
  %v2428 = vsub.f32 %v26, %v2427
  %v2429 = vand.u32 %v2428, 4294901760
  %v2430 = vsub.f32 %v2428, %v2429
  %v2431 = vand.u32 %v2430, 4294901760
  %2432 = vmatpush.msra.mxu0 %v2431
  %v2433 = vand.u32 %v19, 4294901760
  %v2434 = vsub.f32 %v19, %v2433
  %v2435 = vand.u32 %v2434, 4294901760
  %v2436 = vsub.f32 %v2434, %v2435
  %v2437 = vand.u32 %v2436, 4294901760
  %2438 = vmatpush.msra.mxu0 %v2437
  %v2439 = vand.u32 %v14, 4294901760
  %2440 = vmatmul.f32.gmra.mxu0 %v2439
  %v2441 = vpop.f32.mrf.mxu0
  %v2442 = vadd.f32 %v2341, %v2441
  %2443 = vdwg.mxu0
  %v2444 = vand.u32 %v124, 4294901760
  %v2445 = vsub.f32 %v124, %v2444
  %2446 = vmatpush.msra.mxu0 %v2445
  %v2447 = vand.u32 %v117, 4294901760
  %v2448 = vsub.f32 %v117, %v2447
  %2449 = vmatpush.msra.mxu0 %v2448
  %v2450 = vand.u32 %v110, 4294901760
  %v2451 = vsub.f32 %v110, %v2450
  %2452 = vmatpush.msra.mxu0 %v2451
  %v2453 = vand.u32 %v103, 4294901760
  %v2454 = vsub.f32 %v103, %v2453
  %2455 = vmatpush.msra.mxu0 %v2454
  %v2456 = vand.u32 %v96, 4294901760
  %v2457 = vsub.f32 %v96, %v2456
  %2458 = vmatpush.msra.mxu0 %v2457
  %v2459 = vand.u32 %v89, 4294901760
  %v2460 = vsub.f32 %v89, %v2459
  %2461 = vmatpush.msra.mxu0 %v2460
  %v2462 = vand.u32 %v82, 4294901760
  %v2463 = vsub.f32 %v82, %v2462
  %2464 = vmatpush.msra.mxu0 %v2463
  %v2465 = vand.u32 %v75, 4294901760
  %v2466 = vsub.f32 %v75, %v2465
  %2467 = vmatpush.msra.mxu0 %v2466
  %v2468 = vand.u32 %v68, 4294901760
  %v2469 = vsub.f32 %v68, %v2468
  %2470 = vmatpush.msra.mxu0 %v2469
  %v2471 = vand.u32 %v61, 4294901760
  %v2472 = vsub.f32 %v61, %v2471
  %2473 = vmatpush.msra.mxu0 %v2472
  %v2474 = vand.u32 %v54, 4294901760
  %v2475 = vsub.f32 %v54, %v2474
  %2476 = vmatpush.msra.mxu0 %v2475
  %v2477 = vand.u32 %v47, 4294901760
  %v2478 = vsub.f32 %v47, %v2477
  %2479 = vmatpush.msra.mxu0 %v2478
  %v2480 = vand.u32 %v40, 4294901760
  %v2481 = vsub.f32 %v40, %v2480
  %2482 = vmatpush.msra.mxu0 %v2481
  %v2483 = vand.u32 %v33, 4294901760
  %v2484 = vsub.f32 %v33, %v2483
  %2485 = vmatpush.msra.mxu0 %v2484
  %v2486 = vand.u32 %v26, 4294901760
  %v2487 = vsub.f32 %v26, %v2486
  %2488 = vmatpush.msra.mxu0 %v2487
  %v2489 = vand.u32 %v19, 4294901760
  %v2490 = vsub.f32 %v19, %v2489
  %2491 = vmatpush.msra.mxu0 %v2490
  %v2492 = vand.u32 %v14, 4294901760
  %v2493 = vsub.f32 %v14, %v2492
  %2494 = vmatmul.f32.gmra.mxu0 %v2493
  %v2495 = vpop.f32.mrf.mxu0
  %v2496 = vadd.f32 %v2442, %v2495
  %2497 = vdwg.mxu0
  %v2498 = vand.u32 %v124, 4294901760
  %2499 = vmatpush.msra.mxu0 %v2498
  %v2500 = vand.u32 %v117, 4294901760
  %2501 = vmatpush.msra.mxu0 %v2500
  %v2502 = vand.u32 %v110, 4294901760
  %2503 = vmatpush.msra.mxu0 %v2502
  %v2504 = vand.u32 %v103, 4294901760
  %2505 = vmatpush.msra.mxu0 %v2504
  %v2506 = vand.u32 %v96, 4294901760
  %2507 = vmatpush.msra.mxu0 %v2506
  %v2508 = vand.u32 %v89, 4294901760
  %2509 = vmatpush.msra.mxu0 %v2508
  %v2510 = vand.u32 %v82, 4294901760
  %2511 = vmatpush.msra.mxu0 %v2510
  %v2512 = vand.u32 %v75, 4294901760
  %2513 = vmatpush.msra.mxu0 %v2512
  %v2514 = vand.u32 %v68, 4294901760
  %2515 = vmatpush.msra.mxu0 %v2514
  %v2516 = vand.u32 %v61, 4294901760
  %2517 = vmatpush.msra.mxu0 %v2516
  %v2518 = vand.u32 %v54, 4294901760
  %2519 = vmatpush.msra.mxu0 %v2518
  %v2520 = vand.u32 %v47, 4294901760
  %2521 = vmatpush.msra.mxu0 %v2520
  %v2522 = vand.u32 %v40, 4294901760
  %2523 = vmatpush.msra.mxu0 %v2522
  %v2524 = vand.u32 %v33, 4294901760
  %2525 = vmatpush.msra.mxu0 %v2524
  %v2526 = vand.u32 %v26, 4294901760
  %2527 = vmatpush.msra.mxu0 %v2526
  %v2528 = vand.u32 %v19, 4294901760
  %2529 = vmatpush.msra.mxu0 %v2528
  %v2530 = vand.u32 %v14, 4294901760
  %v2531 = vsub.f32 %v14, %v2530
  %v2532 = vand.u32 %v2531, 4294901760
  %2533 = vmatmul.f32.gmra.mxu0 %v2532
  %v2534 = vpop.f32.mrf.mxu0
  %v2535 = vadd.f32 %v2496, %v2534
  %2536 = vdwg.mxu0
  %v2537 = vand.u32 %v124, 4294901760
  %v2538 = vsub.f32 %v124, %v2537
  %v2539 = vand.u32 %v2538, 4294901760
  %2540 = vmatpush.msra.mxu0 %v2539
  %v2541 = vand.u32 %v117, 4294901760
  %v2542 = vsub.f32 %v117, %v2541
  %v2543 = vand.u32 %v2542, 4294901760
  %2544 = vmatpush.msra.mxu0 %v2543
  %v2545 = vand.u32 %v110, 4294901760
  %v2546 = vsub.f32 %v110, %v2545
  %v2547 = vand.u32 %v2546, 4294901760
  %2548 = vmatpush.msra.mxu0 %v2547
  %v2549 = vand.u32 %v103, 4294901760
  %v2550 = vsub.f32 %v103, %v2549
  %v2551 = vand.u32 %v2550, 4294901760
  %2552 = vmatpush.msra.mxu0 %v2551
  %v2553 = vand.u32 %v96, 4294901760
  %v2554 = vsub.f32 %v96, %v2553
  %v2555 = vand.u32 %v2554, 4294901760
  %2556 = vmatpush.msra.mxu0 %v2555
  %v2557 = vand.u32 %v89, 4294901760
  %v2558 = vsub.f32 %v89, %v2557
  %v2559 = vand.u32 %v2558, 4294901760
  %2560 = vmatpush.msra.mxu0 %v2559
  %v2561 = vand.u32 %v82, 4294901760
  %v2562 = vsub.f32 %v82, %v2561
  %v2563 = vand.u32 %v2562, 4294901760
  %2564 = vmatpush.msra.mxu0 %v2563
  %v2565 = vand.u32 %v75, 4294901760
  %v2566 = vsub.f32 %v75, %v2565
  %v2567 = vand.u32 %v2566, 4294901760
  %2568 = vmatpush.msra.mxu0 %v2567
  %v2569 = vand.u32 %v68, 4294901760
  %v2570 = vsub.f32 %v68, %v2569
  %v2571 = vand.u32 %v2570, 4294901760
  %2572 = vmatpush.msra.mxu0 %v2571
  %v2573 = vand.u32 %v61, 4294901760
  %v2574 = vsub.f32 %v61, %v2573
  %v2575 = vand.u32 %v2574, 4294901760
  %2576 = vmatpush.msra.mxu0 %v2575
  %v2577 = vand.u32 %v54, 4294901760
  %v2578 = vsub.f32 %v54, %v2577
  %v2579 = vand.u32 %v2578, 4294901760
  %2580 = vmatpush.msra.mxu0 %v2579
  %v2581 = vand.u32 %v47, 4294901760
  %v2582 = vsub.f32 %v47, %v2581
  %v2583 = vand.u32 %v2582, 4294901760
  %2584 = vmatpush.msra.mxu0 %v2583
  %v2585 = vand.u32 %v40, 4294901760
  %v2586 = vsub.f32 %v40, %v2585
  %v2587 = vand.u32 %v2586, 4294901760
  %2588 = vmatpush.msra.mxu0 %v2587
  %v2589 = vand.u32 %v33, 4294901760
  %v2590 = vsub.f32 %v33, %v2589
  %v2591 = vand.u32 %v2590, 4294901760
  %2592 = vmatpush.msra.mxu0 %v2591
  %v2593 = vand.u32 %v26, 4294901760
  %v2594 = vsub.f32 %v26, %v2593
  %v2595 = vand.u32 %v2594, 4294901760
  %2596 = vmatpush.msra.mxu0 %v2595
  %v2597 = vand.u32 %v19, 4294901760
  %v2598 = vsub.f32 %v19, %v2597
  %v2599 = vand.u32 %v2598, 4294901760
  %2600 = vmatpush.msra.mxu0 %v2599
  %v2601 = vand.u32 %v14, 4294901760
  %2602 = vmatmul.f32.gmra.mxu0 %v2601
  %v2603 = vpop.f32.mrf.mxu0
  %v2604 = vadd.f32 %v2535, %v2603
  %2605 = vdwg.mxu0
  %v2606 = vand.u32 %v124, 4294901760
  %2607 = vmatpush.msra.mxu0 %v2606
  %v2608 = vand.u32 %v117, 4294901760
  %2609 = vmatpush.msra.mxu0 %v2608
  %v2610 = vand.u32 %v110, 4294901760
  %2611 = vmatpush.msra.mxu0 %v2610
  %v2612 = vand.u32 %v103, 4294901760
  %2613 = vmatpush.msra.mxu0 %v2612
  %v2614 = vand.u32 %v96, 4294901760
  %2615 = vmatpush.msra.mxu0 %v2614
  %v2616 = vand.u32 %v89, 4294901760
  %2617 = vmatpush.msra.mxu0 %v2616
  %v2618 = vand.u32 %v82, 4294901760
  %2619 = vmatpush.msra.mxu0 %v2618
  %v2620 = vand.u32 %v75, 4294901760
  %2621 = vmatpush.msra.mxu0 %v2620
  %v2622 = vand.u32 %v68, 4294901760
  %2623 = vmatpush.msra.mxu0 %v2622
  %v2624 = vand.u32 %v61, 4294901760
  %2625 = vmatpush.msra.mxu0 %v2624
  %v2626 = vand.u32 %v54, 4294901760
  %2627 = vmatpush.msra.mxu0 %v2626
  %v2628 = vand.u32 %v47, 4294901760
  %2629 = vmatpush.msra.mxu0 %v2628
  %v2630 = vand.u32 %v40, 4294901760
  %2631 = vmatpush.msra.mxu0 %v2630
  %v2632 = vand.u32 %v33, 4294901760
  %2633 = vmatpush.msra.mxu0 %v2632
  %v2634 = vand.u32 %v26, 4294901760
  %2635 = vmatpush.msra.mxu0 %v2634
  %v2636 = vand.u32 %v19, 4294901760
  %2637 = vmatpush.msra.mxu0 %v2636
  %v2638 = vand.u32 %v14, 4294901760
  %2639 = vmatmul.f32.gmra.mxu0 %v2638
  %v2640 = vpop.f32.mrf.mxu0
  %v2641 = vadd.f32 %v2604, %v2640
  %2642 = vdwg.mxu0
  %v2643 = vand.u32 %v236, 4294901760
  %2644 = vmatpush.msra.mxu0 %v2643
  %v2645 = vand.u32 %v229, 4294901760
  %2646 = vmatpush.msra.mxu0 %v2645
  %v2647 = vand.u32 %v222, 4294901760
  %2648 = vmatpush.msra.mxu0 %v2647
  %v2649 = vand.u32 %v215, 4294901760
  %2650 = vmatpush.msra.mxu0 %v2649
  %v2651 = vand.u32 %v208, 4294901760
  %2652 = vmatpush.msra.mxu0 %v2651
  %v2653 = vand.u32 %v201, 4294901760
  %2654 = vmatpush.msra.mxu0 %v2653
  %v2655 = vand.u32 %v194, 4294901760
  %2656 = vmatpush.msra.mxu0 %v2655
  %v2657 = vand.u32 %v187, 4294901760
  %2658 = vmatpush.msra.mxu0 %v2657
  %v2659 = vand.u32 %v180, 4294901760
  %2660 = vmatpush.msra.mxu0 %v2659
  %v2661 = vand.u32 %v173, 4294901760
  %2662 = vmatpush.msra.mxu0 %v2661
  %v2663 = vand.u32 %v166, 4294901760
  %2664 = vmatpush.msra.mxu0 %v2663
  %v2665 = vand.u32 %v159, 4294901760
  %2666 = vmatpush.msra.mxu0 %v2665
  %v2667 = vand.u32 %v152, 4294901760
  %2668 = vmatpush.msra.mxu0 %v2667
  %v2669 = vand.u32 %v145, 4294901760
  %2670 = vmatpush.msra.mxu0 %v2669
  %v2671 = vand.u32 %v138, 4294901760
  %2672 = vmatpush.msra.mxu0 %v2671
  %v2673 = vand.u32 %v131, 4294901760
  %2674 = vmatpush.msra.mxu0 %v2673
  %v2675 = vand.u32 %v15, 4294901760
  %v2676 = vsub.f32 %v15, %v2675
  %v2677 = vand.u32 %v2676, 4294901760
  %v2678 = vsub.f32 %v2676, %v2677
  %v2679 = vand.u32 %v2678, 4294901760
  %2680 = vmatmul.f32.gmra.mxu0 %v2679
  %v2681 = vpop.f32.mrf.mxu0
  %v2682 = vadd.f32 %v2641, %v2681
  %2683 = vdwg.mxu0
  %v2684 = vand.u32 %v236, 4294901760
  %v2685 = vsub.f32 %v236, %v2684
  %v2686 = vand.u32 %v2685, 4294901760
  %v2687 = vsub.f32 %v2685, %v2686
  %v2688 = vand.u32 %v2687, 4294901760
  %2689 = vmatpush.msra.mxu0 %v2688
  %v2690 = vand.u32 %v229, 4294901760
  %v2691 = vsub.f32 %v229, %v2690
  %v2692 = vand.u32 %v2691, 4294901760
  %v2693 = vsub.f32 %v2691, %v2692
  %v2694 = vand.u32 %v2693, 4294901760
  %2695 = vmatpush.msra.mxu0 %v2694
  %v2696 = vand.u32 %v222, 4294901760
  %v2697 = vsub.f32 %v222, %v2696
  %v2698 = vand.u32 %v2697, 4294901760
  %v2699 = vsub.f32 %v2697, %v2698
  %v2700 = vand.u32 %v2699, 4294901760
  %2701 = vmatpush.msra.mxu0 %v2700
  %v2702 = vand.u32 %v215, 4294901760
  %v2703 = vsub.f32 %v215, %v2702
  %v2704 = vand.u32 %v2703, 4294901760
  %v2705 = vsub.f32 %v2703, %v2704
  %v2706 = vand.u32 %v2705, 4294901760
  %2707 = vmatpush.msra.mxu0 %v2706
  %v2708 = vand.u32 %v208, 4294901760
  %v2709 = vsub.f32 %v208, %v2708
  %v2710 = vand.u32 %v2709, 4294901760
  %v2711 = vsub.f32 %v2709, %v2710
  %v2712 = vand.u32 %v2711, 4294901760
  %2713 = vmatpush.msra.mxu0 %v2712
  %v2714 = vand.u32 %v201, 4294901760
  %v2715 = vsub.f32 %v201, %v2714
  %v2716 = vand.u32 %v2715, 4294901760
  %v2717 = vsub.f32 %v2715, %v2716
  %v2718 = vand.u32 %v2717, 4294901760
  %2719 = vmatpush.msra.mxu0 %v2718
  %v2720 = vand.u32 %v194, 4294901760
  %v2721 = vsub.f32 %v194, %v2720
  %v2722 = vand.u32 %v2721, 4294901760
  %v2723 = vsub.f32 %v2721, %v2722
  %v2724 = vand.u32 %v2723, 4294901760
  %2725 = vmatpush.msra.mxu0 %v2724
  %v2726 = vand.u32 %v187, 4294901760
  %v2727 = vsub.f32 %v187, %v2726
  %v2728 = vand.u32 %v2727, 4294901760
  %v2729 = vsub.f32 %v2727, %v2728
  %v2730 = vand.u32 %v2729, 4294901760
  %2731 = vmatpush.msra.mxu0 %v2730
  %v2732 = vand.u32 %v180, 4294901760
  %v2733 = vsub.f32 %v180, %v2732
  %v2734 = vand.u32 %v2733, 4294901760
  %v2735 = vsub.f32 %v2733, %v2734
  %v2736 = vand.u32 %v2735, 4294901760
  %2737 = vmatpush.msra.mxu0 %v2736
  %v2738 = vand.u32 %v173, 4294901760
  %v2739 = vsub.f32 %v173, %v2738
  %v2740 = vand.u32 %v2739, 4294901760
  %v2741 = vsub.f32 %v2739, %v2740
  %v2742 = vand.u32 %v2741, 4294901760
  %2743 = vmatpush.msra.mxu0 %v2742
  %v2744 = vand.u32 %v166, 4294901760
  %v2745 = vsub.f32 %v166, %v2744
  %v2746 = vand.u32 %v2745, 4294901760
  %v2747 = vsub.f32 %v2745, %v2746
  %v2748 = vand.u32 %v2747, 4294901760
  %2749 = vmatpush.msra.mxu0 %v2748
  %v2750 = vand.u32 %v159, 4294901760
  %v2751 = vsub.f32 %v159, %v2750
  %v2752 = vand.u32 %v2751, 4294901760
  %v2753 = vsub.f32 %v2751, %v2752
  %v2754 = vand.u32 %v2753, 4294901760
  %2755 = vmatpush.msra.mxu0 %v2754
  %v2756 = vand.u32 %v152, 4294901760
  %v2757 = vsub.f32 %v152, %v2756
  %v2758 = vand.u32 %v2757, 4294901760
  %v2759 = vsub.f32 %v2757, %v2758
  %v2760 = vand.u32 %v2759, 4294901760
  %2761 = vmatpush.msra.mxu0 %v2760
  %v2762 = vand.u32 %v145, 4294901760
  %v2763 = vsub.f32 %v145, %v2762
  %v2764 = vand.u32 %v2763, 4294901760
  %v2765 = vsub.f32 %v2763, %v2764
  %v2766 = vand.u32 %v2765, 4294901760
  %2767 = vmatpush.msra.mxu0 %v2766
  %v2768 = vand.u32 %v138, 4294901760
  %v2769 = vsub.f32 %v138, %v2768
  %v2770 = vand.u32 %v2769, 4294901760
  %v2771 = vsub.f32 %v2769, %v2770
  %v2772 = vand.u32 %v2771, 4294901760
  %2773 = vmatpush.msra.mxu0 %v2772
  %v2774 = vand.u32 %v131, 4294901760
  %v2775 = vsub.f32 %v131, %v2774
  %v2776 = vand.u32 %v2775, 4294901760
  %v2777 = vsub.f32 %v2775, %v2776
  %v2778 = vand.u32 %v2777, 4294901760
  %2779 = vmatpush.msra.mxu0 %v2778
  %v2780 = vand.u32 %v15, 4294901760
  %2781 = vmatmul.f32.gmra.mxu0 %v2780
  %v2782 = vpop.f32.mrf.mxu0
  %v2783 = vadd.f32 %v2682, %v2782
  %2784 = vdwg.mxu0
  %v2785 = vand.u32 %v236, 4294901760
  %v2786 = vsub.f32 %v236, %v2785
  %2787 = vmatpush.msra.mxu0 %v2786
  %v2788 = vand.u32 %v229, 4294901760
  %v2789 = vsub.f32 %v229, %v2788
  %2790 = vmatpush.msra.mxu0 %v2789
  %v2791 = vand.u32 %v222, 4294901760
  %v2792 = vsub.f32 %v222, %v2791
  %2793 = vmatpush.msra.mxu0 %v2792
  %v2794 = vand.u32 %v215, 4294901760
  %v2795 = vsub.f32 %v215, %v2794
  %2796 = vmatpush.msra.mxu0 %v2795
  %v2797 = vand.u32 %v208, 4294901760
  %v2798 = vsub.f32 %v208, %v2797
  %2799 = vmatpush.msra.mxu0 %v2798
  %v2800 = vand.u32 %v201, 4294901760
  %v2801 = vsub.f32 %v201, %v2800
  %2802 = vmatpush.msra.mxu0 %v2801
  %v2803 = vand.u32 %v194, 4294901760
  %v2804 = vsub.f32 %v194, %v2803
  %2805 = vmatpush.msra.mxu0 %v2804
  %v2806 = vand.u32 %v187, 4294901760
  %v2807 = vsub.f32 %v187, %v2806
  %2808 = vmatpush.msra.mxu0 %v2807
  %v2809 = vand.u32 %v180, 4294901760
  %v2810 = vsub.f32 %v180, %v2809
  %2811 = vmatpush.msra.mxu0 %v2810
  %v2812 = vand.u32 %v173, 4294901760
  %v2813 = vsub.f32 %v173, %v2812
  %2814 = vmatpush.msra.mxu0 %v2813
  %v2815 = vand.u32 %v166, 4294901760
  %v2816 = vsub.f32 %v166, %v2815
  %2817 = vmatpush.msra.mxu0 %v2816
  %v2818 = vand.u32 %v159, 4294901760
  %v2819 = vsub.f32 %v159, %v2818
  %2820 = vmatpush.msra.mxu0 %v2819
  %v2821 = vand.u32 %v152, 4294901760
  %v2822 = vsub.f32 %v152, %v2821
  %2823 = vmatpush.msra.mxu0 %v2822
  %v2824 = vand.u32 %v145, 4294901760
  %v2825 = vsub.f32 %v145, %v2824
  %2826 = vmatpush.msra.mxu0 %v2825
  %v2827 = vand.u32 %v138, 4294901760
  %v2828 = vsub.f32 %v138, %v2827
  %2829 = vmatpush.msra.mxu0 %v2828
  %v2830 = vand.u32 %v131, 4294901760
  %v2831 = vsub.f32 %v131, %v2830
  %2832 = vmatpush.msra.mxu0 %v2831
  %v2833 = vand.u32 %v15, 4294901760
  %v2834 = vsub.f32 %v15, %v2833
  %2835 = vmatmul.f32.gmra.mxu0 %v2834
  %v2836 = vpop.f32.mrf.mxu0
  %v2837 = vadd.f32 %v2783, %v2836
  %2838 = vdwg.mxu0
  %v2839 = vand.u32 %v236, 4294901760
  %2840 = vmatpush.msra.mxu0 %v2839
  %v2841 = vand.u32 %v229, 4294901760
  %2842 = vmatpush.msra.mxu0 %v2841
  %v2843 = vand.u32 %v222, 4294901760
  %2844 = vmatpush.msra.mxu0 %v2843
  %v2845 = vand.u32 %v215, 4294901760
  %2846 = vmatpush.msra.mxu0 %v2845
  %v2847 = vand.u32 %v208, 4294901760
  %2848 = vmatpush.msra.mxu0 %v2847
  %v2849 = vand.u32 %v201, 4294901760
  %2850 = vmatpush.msra.mxu0 %v2849
  %v2851 = vand.u32 %v194, 4294901760
  %2852 = vmatpush.msra.mxu0 %v2851
  %v2853 = vand.u32 %v187, 4294901760
  %2854 = vmatpush.msra.mxu0 %v2853
  %v2855 = vand.u32 %v180, 4294901760
  %2856 = vmatpush.msra.mxu0 %v2855
  %v2857 = vand.u32 %v173, 4294901760
  %2858 = vmatpush.msra.mxu0 %v2857
  %v2859 = vand.u32 %v166, 4294901760
  %2860 = vmatpush.msra.mxu0 %v2859
  %v2861 = vand.u32 %v159, 4294901760
  %2862 = vmatpush.msra.mxu0 %v2861
  %v2863 = vand.u32 %v152, 4294901760
  %2864 = vmatpush.msra.mxu0 %v2863
  %v2865 = vand.u32 %v145, 4294901760
  %2866 = vmatpush.msra.mxu0 %v2865
  %v2867 = vand.u32 %v138, 4294901760
  %2868 = vmatpush.msra.mxu0 %v2867
  %v2869 = vand.u32 %v131, 4294901760
  %2870 = vmatpush.msra.mxu0 %v2869
  %v2871 = vand.u32 %v15, 4294901760
  %v2872 = vsub.f32 %v15, %v2871
  %v2873 = vand.u32 %v2872, 4294901760
  %2874 = vmatmul.f32.gmra.mxu0 %v2873
  %v2875 = vpop.f32.mrf.mxu0
  %v2876 = vadd.f32 %v2837, %v2875
  %2877 = vdwg.mxu0
  %v2878 = vand.u32 %v236, 4294901760
  %v2879 = vsub.f32 %v236, %v2878
  %v2880 = vand.u32 %v2879, 4294901760
  %2881 = vmatpush.msra.mxu0 %v2880
  %v2882 = vand.u32 %v229, 4294901760
  %v2883 = vsub.f32 %v229, %v2882
  %v2884 = vand.u32 %v2883, 4294901760
  %2885 = vmatpush.msra.mxu0 %v2884
  %v2886 = vand.u32 %v222, 4294901760
  %v2887 = vsub.f32 %v222, %v2886
  %v2888 = vand.u32 %v2887, 4294901760
  %2889 = vmatpush.msra.mxu0 %v2888
  %v2890 = vand.u32 %v215, 4294901760
  %v2891 = vsub.f32 %v215, %v2890
  %v2892 = vand.u32 %v2891, 4294901760
  %2893 = vmatpush.msra.mxu0 %v2892
  %v2894 = vand.u32 %v208, 4294901760
  %v2895 = vsub.f32 %v208, %v2894
  %v2896 = vand.u32 %v2895, 4294901760
  %2897 = vmatpush.msra.mxu0 %v2896
  %v2898 = vand.u32 %v201, 4294901760
  %v2899 = vsub.f32 %v201, %v2898
  %v2900 = vand.u32 %v2899, 4294901760
  %2901 = vmatpush.msra.mxu0 %v2900
  %v2902 = vand.u32 %v194, 4294901760
  %v2903 = vsub.f32 %v194, %v2902
  %v2904 = vand.u32 %v2903, 4294901760
  %2905 = vmatpush.msra.mxu0 %v2904
  %v2906 = vand.u32 %v187, 4294901760
  %v2907 = vsub.f32 %v187, %v2906
  %v2908 = vand.u32 %v2907, 4294901760
  %2909 = vmatpush.msra.mxu0 %v2908
  %v2910 = vand.u32 %v180, 4294901760
  %v2911 = vsub.f32 %v180, %v2910
  %v2912 = vand.u32 %v2911, 4294901760
  %2913 = vmatpush.msra.mxu0 %v2912
  %v2914 = vand.u32 %v173, 4294901760
  %v2915 = vsub.f32 %v173, %v2914
  %v2916 = vand.u32 %v2915, 4294901760
  %2917 = vmatpush.msra.mxu0 %v2916
  %v2918 = vand.u32 %v166, 4294901760
  %v2919 = vsub.f32 %v166, %v2918
  %v2920 = vand.u32 %v2919, 4294901760
  %2921 = vmatpush.msra.mxu0 %v2920
  %v2922 = vand.u32 %v159, 4294901760
  %v2923 = vsub.f32 %v159, %v2922
  %v2924 = vand.u32 %v2923, 4294901760
  %2925 = vmatpush.msra.mxu0 %v2924
  %v2926 = vand.u32 %v152, 4294901760
  %v2927 = vsub.f32 %v152, %v2926
  %v2928 = vand.u32 %v2927, 4294901760
  %2929 = vmatpush.msra.mxu0 %v2928
  %v2930 = vand.u32 %v145, 4294901760
  %v2931 = vsub.f32 %v145, %v2930
  %v2932 = vand.u32 %v2931, 4294901760
  %2933 = vmatpush.msra.mxu0 %v2932
  %v2934 = vand.u32 %v138, 4294901760
  %v2935 = vsub.f32 %v138, %v2934
  %v2936 = vand.u32 %v2935, 4294901760
  %2937 = vmatpush.msra.mxu0 %v2936
  %v2938 = vand.u32 %v131, 4294901760
  %v2939 = vsub.f32 %v131, %v2938
  %v2940 = vand.u32 %v2939, 4294901760
  %2941 = vmatpush.msra.mxu0 %v2940
  %v2942 = vand.u32 %v15, 4294901760
  %2943 = vmatmul.f32.gmra.mxu0 %v2942
  %v2944 = vpop.f32.mrf.mxu0
  %v2945 = vadd.f32 %v2876, %v2944
  %2946 = vdwg.mxu0
  %v2947 = vand.u32 %v236, 4294901760
  %2948 = vmatpush.msra.mxu0 %v2947
  %v2949 = vand.u32 %v229, 4294901760
  %2950 = vmatpush.msra.mxu0 %v2949
  %v2951 = vand.u32 %v222, 4294901760
  %2952 = vmatpush.msra.mxu0 %v2951
  %v2953 = vand.u32 %v215, 4294901760
  %2954 = vmatpush.msra.mxu0 %v2953
  %v2955 = vand.u32 %v208, 4294901760
  %2956 = vmatpush.msra.mxu0 %v2955
  %v2957 = vand.u32 %v201, 4294901760
  %2958 = vmatpush.msra.mxu0 %v2957
  %v2959 = vand.u32 %v194, 4294901760
  %2960 = vmatpush.msra.mxu0 %v2959
  %v2961 = vand.u32 %v187, 4294901760
  %2962 = vmatpush.msra.mxu0 %v2961
  %v2963 = vand.u32 %v180, 4294901760
  %2964 = vmatpush.msra.mxu0 %v2963
  %v2965 = vand.u32 %v173, 4294901760
  %2966 = vmatpush.msra.mxu0 %v2965
  %v2967 = vand.u32 %v166, 4294901760
  %2968 = vmatpush.msra.mxu0 %v2967
  %v2969 = vand.u32 %v159, 4294901760
  %2970 = vmatpush.msra.mxu0 %v2969
  %v2971 = vand.u32 %v152, 4294901760
  %2972 = vmatpush.msra.mxu0 %v2971
  %v2973 = vand.u32 %v145, 4294901760
  %2974 = vmatpush.msra.mxu0 %v2973
  %v2975 = vand.u32 %v138, 4294901760
  %2976 = vmatpush.msra.mxu0 %v2975
  %v2977 = vand.u32 %v131, 4294901760
  %2978 = vmatpush.msra.mxu0 %v2977
  %v2979 = vand.u32 %v15, 4294901760
  %2980 = vmatmul.f32.gmra.mxu0 %v2979
  %v2981 = vpop.f32.mrf.mxu0
  %v2982 = vadd.f32 %v2945, %v2981
  %2983 = vdwg.mxu0
  %v2984 = vand.u32 %v125, 4294901760
  %2985 = vmatpush.msra.mxu0 %v2984
  %v2986 = vand.u32 %v118, 4294901760
  %2987 = vmatpush.msra.mxu0 %v2986
  %v2988 = vand.u32 %v111, 4294901760
  %2989 = vmatpush.msra.mxu0 %v2988
  %v2990 = vand.u32 %v104, 4294901760
  %2991 = vmatpush.msra.mxu0 %v2990
  %v2992 = vand.u32 %v97, 4294901760
  %2993 = vmatpush.msra.mxu0 %v2992
  %v2994 = vand.u32 %v90, 4294901760
  %2995 = vmatpush.msra.mxu0 %v2994
  %v2996 = vand.u32 %v83, 4294901760
  %2997 = vmatpush.msra.mxu0 %v2996
  %v2998 = vand.u32 %v76, 4294901760
  %2999 = vmatpush.msra.mxu0 %v2998
  %v3000 = vand.u32 %v69, 4294901760
  %3001 = vmatpush.msra.mxu0 %v3000
  %v3002 = vand.u32 %v62, 4294901760
  %3003 = vmatpush.msra.mxu0 %v3002
  %v3004 = vand.u32 %v55, 4294901760
  %3005 = vmatpush.msra.mxu0 %v3004
  %v3006 = vand.u32 %v48, 4294901760
  %3007 = vmatpush.msra.mxu0 %v3006
  %v3008 = vand.u32 %v41, 4294901760
  %3009 = vmatpush.msra.mxu0 %v3008
  %v3010 = vand.u32 %v34, 4294901760
  %3011 = vmatpush.msra.mxu0 %v3010
  %v3012 = vand.u32 %v27, 4294901760
  %3013 = vmatpush.msra.mxu0 %v3012
  %v3014 = vand.u32 %v20, 4294901760
  %3015 = vmatpush.msra.mxu0 %v3014
  %v3016 = vand.u32 %v14, 4294901760
  %v3017 = vsub.f32 %v14, %v3016
  %v3018 = vand.u32 %v3017, 4294901760
  %v3019 = vsub.f32 %v3017, %v3018
  %v3020 = vand.u32 %v3019, 4294901760
  %3021 = vmatmul.f32.gmra.mxu0 %v3020
  %v3022 = vpop.f32.mrf.mxu0
  %v3023 = vadd.f32 %v246, %v3022
  %3024 = vdwg.mxu0
  %v3025 = vand.u32 %v125, 4294901760
  %v3026 = vsub.f32 %v125, %v3025
  %v3027 = vand.u32 %v3026, 4294901760
  %v3028 = vsub.f32 %v3026, %v3027
  %v3029 = vand.u32 %v3028, 4294901760
  %3030 = vmatpush.msra.mxu0 %v3029
  %v3031 = vand.u32 %v118, 4294901760
  %v3032 = vsub.f32 %v118, %v3031
  %v3033 = vand.u32 %v3032, 4294901760
  %v3034 = vsub.f32 %v3032, %v3033
  %v3035 = vand.u32 %v3034, 4294901760
  %3036 = vmatpush.msra.mxu0 %v3035
  %v3037 = vand.u32 %v111, 4294901760
  %v3038 = vsub.f32 %v111, %v3037
  %v3039 = vand.u32 %v3038, 4294901760
  %v3040 = vsub.f32 %v3038, %v3039
  %v3041 = vand.u32 %v3040, 4294901760
  %3042 = vmatpush.msra.mxu0 %v3041
  %v3043 = vand.u32 %v104, 4294901760
  %v3044 = vsub.f32 %v104, %v3043
  %v3045 = vand.u32 %v3044, 4294901760
  %v3046 = vsub.f32 %v3044, %v3045
  %v3047 = vand.u32 %v3046, 4294901760
  %3048 = vmatpush.msra.mxu0 %v3047
  %v3049 = vand.u32 %v97, 4294901760
  %v3050 = vsub.f32 %v97, %v3049
  %v3051 = vand.u32 %v3050, 4294901760
  %v3052 = vsub.f32 %v3050, %v3051
  %v3053 = vand.u32 %v3052, 4294901760
  %3054 = vmatpush.msra.mxu0 %v3053
  %v3055 = vand.u32 %v90, 4294901760
  %v3056 = vsub.f32 %v90, %v3055
  %v3057 = vand.u32 %v3056, 4294901760
  %v3058 = vsub.f32 %v3056, %v3057
  %v3059 = vand.u32 %v3058, 4294901760
  %3060 = vmatpush.msra.mxu0 %v3059
  %v3061 = vand.u32 %v83, 4294901760
  %v3062 = vsub.f32 %v83, %v3061
  %v3063 = vand.u32 %v3062, 4294901760
  %v3064 = vsub.f32 %v3062, %v3063
  %v3065 = vand.u32 %v3064, 4294901760
  %3066 = vmatpush.msra.mxu0 %v3065
  %v3067 = vand.u32 %v76, 4294901760
  %v3068 = vsub.f32 %v76, %v3067
  %v3069 = vand.u32 %v3068, 4294901760
  %v3070 = vsub.f32 %v3068, %v3069
  %v3071 = vand.u32 %v3070, 4294901760
  %3072 = vmatpush.msra.mxu0 %v3071
  %v3073 = vand.u32 %v69, 4294901760
  %v3074 = vsub.f32 %v69, %v3073
  %v3075 = vand.u32 %v3074, 4294901760
  %v3076 = vsub.f32 %v3074, %v3075
  %v3077 = vand.u32 %v3076, 4294901760
  %3078 = vmatpush.msra.mxu0 %v3077
  %v3079 = vand.u32 %v62, 4294901760
  %v3080 = vsub.f32 %v62, %v3079
  %v3081 = vand.u32 %v3080, 4294901760
  %v3082 = vsub.f32 %v3080, %v3081
  %v3083 = vand.u32 %v3082, 4294901760
  %3084 = vmatpush.msra.mxu0 %v3083
  %v3085 = vand.u32 %v55, 4294901760
  %v3086 = vsub.f32 %v55, %v3085
  %v3087 = vand.u32 %v3086, 4294901760
  %v3088 = vsub.f32 %v3086, %v3087
  %v3089 = vand.u32 %v3088, 4294901760
  %3090 = vmatpush.msra.mxu0 %v3089
  %v3091 = vand.u32 %v48, 4294901760
  %v3092 = vsub.f32 %v48, %v3091
  %v3093 = vand.u32 %v3092, 4294901760
  %v3094 = vsub.f32 %v3092, %v3093
  %v3095 = vand.u32 %v3094, 4294901760
  %3096 = vmatpush.msra.mxu0 %v3095
  %v3097 = vand.u32 %v41, 4294901760
  %v3098 = vsub.f32 %v41, %v3097
  %v3099 = vand.u32 %v3098, 4294901760
  %v3100 = vsub.f32 %v3098, %v3099
  %v3101 = vand.u32 %v3100, 4294901760
  %3102 = vmatpush.msra.mxu0 %v3101
  %v3103 = vand.u32 %v34, 4294901760
  %v3104 = vsub.f32 %v34, %v3103
  %v3105 = vand.u32 %v3104, 4294901760
  %v3106 = vsub.f32 %v3104, %v3105
  %v3107 = vand.u32 %v3106, 4294901760
  %3108 = vmatpush.msra.mxu0 %v3107
  %v3109 = vand.u32 %v27, 4294901760
  %v3110 = vsub.f32 %v27, %v3109
  %v3111 = vand.u32 %v3110, 4294901760
  %v3112 = vsub.f32 %v3110, %v3111
  %v3113 = vand.u32 %v3112, 4294901760
  %3114 = vmatpush.msra.mxu0 %v3113
  %v3115 = vand.u32 %v20, 4294901760
  %v3116 = vsub.f32 %v20, %v3115
  %v3117 = vand.u32 %v3116, 4294901760
  %v3118 = vsub.f32 %v3116, %v3117
  %v3119 = vand.u32 %v3118, 4294901760
  %3120 = vmatpush.msra.mxu0 %v3119
  %v3121 = vand.u32 %v14, 4294901760
  %3122 = vmatmul.f32.gmra.mxu0 %v3121
  %v3123 = vpop.f32.mrf.mxu0
  %v3124 = vadd.f32 %v3023, %v3123
  %3125 = vdwg.mxu0
  %v3126 = vand.u32 %v125, 4294901760
  %v3127 = vsub.f32 %v125, %v3126
  %3128 = vmatpush.msra.mxu0 %v3127
  %v3129 = vand.u32 %v118, 4294901760
  %v3130 = vsub.f32 %v118, %v3129
  %3131 = vmatpush.msra.mxu0 %v3130
  %v3132 = vand.u32 %v111, 4294901760
  %v3133 = vsub.f32 %v111, %v3132
  %3134 = vmatpush.msra.mxu0 %v3133
  %v3135 = vand.u32 %v104, 4294901760
  %v3136 = vsub.f32 %v104, %v3135
  %3137 = vmatpush.msra.mxu0 %v3136
  %v3138 = vand.u32 %v97, 4294901760
  %v3139 = vsub.f32 %v97, %v3138
  %3140 = vmatpush.msra.mxu0 %v3139
  %v3141 = vand.u32 %v90, 4294901760
  %v3142 = vsub.f32 %v90, %v3141
  %3143 = vmatpush.msra.mxu0 %v3142
  %v3144 = vand.u32 %v83, 4294901760
  %v3145 = vsub.f32 %v83, %v3144
  %3146 = vmatpush.msra.mxu0 %v3145
  %v3147 = vand.u32 %v76, 4294901760
  %v3148 = vsub.f32 %v76, %v3147
  %3149 = vmatpush.msra.mxu0 %v3148
  %v3150 = vand.u32 %v69, 4294901760
  %v3151 = vsub.f32 %v69, %v3150
  %3152 = vmatpush.msra.mxu0 %v3151
  %v3153 = vand.u32 %v62, 4294901760
  %v3154 = vsub.f32 %v62, %v3153
  %3155 = vmatpush.msra.mxu0 %v3154
  %v3156 = vand.u32 %v55, 4294901760
  %v3157 = vsub.f32 %v55, %v3156
  %3158 = vmatpush.msra.mxu0 %v3157
  %v3159 = vand.u32 %v48, 4294901760
  %v3160 = vsub.f32 %v48, %v3159
  %3161 = vmatpush.msra.mxu0 %v3160
  %v3162 = vand.u32 %v41, 4294901760
  %v3163 = vsub.f32 %v41, %v3162
  %3164 = vmatpush.msra.mxu0 %v3163
  %v3165 = vand.u32 %v34, 4294901760
  %v3166 = vsub.f32 %v34, %v3165
  %3167 = vmatpush.msra.mxu0 %v3166
  %v3168 = vand.u32 %v27, 4294901760
  %v3169 = vsub.f32 %v27, %v3168
  %3170 = vmatpush.msra.mxu0 %v3169
  %v3171 = vand.u32 %v20, 4294901760
  %v3172 = vsub.f32 %v20, %v3171
  %3173 = vmatpush.msra.mxu0 %v3172
  %v3174 = vand.u32 %v14, 4294901760
  %v3175 = vsub.f32 %v14, %v3174
  %3176 = vmatmul.f32.gmra.mxu0 %v3175
  %v3177 = vpop.f32.mrf.mxu0
  %v3178 = vadd.f32 %v3124, %v3177
  %3179 = vdwg.mxu0
  %v3180 = vand.u32 %v125, 4294901760
  %3181 = vmatpush.msra.mxu0 %v3180
  %v3182 = vand.u32 %v118, 4294901760
  %3183 = vmatpush.msra.mxu0 %v3182
  %v3184 = vand.u32 %v111, 4294901760
  %3185 = vmatpush.msra.mxu0 %v3184
  %v3186 = vand.u32 %v104, 4294901760
  %3187 = vmatpush.msra.mxu0 %v3186
  %v3188 = vand.u32 %v97, 4294901760
  %3189 = vmatpush.msra.mxu0 %v3188
  %v3190 = vand.u32 %v90, 4294901760
  %3191 = vmatpush.msra.mxu0 %v3190
  %v3192 = vand.u32 %v83, 4294901760
  %3193 = vmatpush.msra.mxu0 %v3192
  %v3194 = vand.u32 %v76, 4294901760
  %3195 = vmatpush.msra.mxu0 %v3194
  %v3196 = vand.u32 %v69, 4294901760
  %3197 = vmatpush.msra.mxu0 %v3196
  %v3198 = vand.u32 %v62, 4294901760
  %3199 = vmatpush.msra.mxu0 %v3198
  %v3200 = vand.u32 %v55, 4294901760
  %3201 = vmatpush.msra.mxu0 %v3200
  %v3202 = vand.u32 %v48, 4294901760
  %3203 = vmatpush.msra.mxu0 %v3202
  %v3204 = vand.u32 %v41, 4294901760
  %3205 = vmatpush.msra.mxu0 %v3204
  %v3206 = vand.u32 %v34, 4294901760
  %3207 = vmatpush.msra.mxu0 %v3206
  %v3208 = vand.u32 %v27, 4294901760
  %3209 = vmatpush.msra.mxu0 %v3208
  %v3210 = vand.u32 %v20, 4294901760
  %3211 = vmatpush.msra.mxu0 %v3210
  %v3212 = vand.u32 %v14, 4294901760
  %v3213 = vsub.f32 %v14, %v3212
  %v3214 = vand.u32 %v3213, 4294901760
  %3215 = vmatmul.f32.gmra.mxu0 %v3214
  %v3216 = vpop.f32.mrf.mxu0
  %v3217 = vadd.f32 %v3178, %v3216
  %3218 = vdwg.mxu0
  %v3219 = vand.u32 %v125, 4294901760
  %v3220 = vsub.f32 %v125, %v3219
  %v3221 = vand.u32 %v3220, 4294901760
  %3222 = vmatpush.msra.mxu0 %v3221
  %v3223 = vand.u32 %v118, 4294901760
  %v3224 = vsub.f32 %v118, %v3223
  %v3225 = vand.u32 %v3224, 4294901760
  %3226 = vmatpush.msra.mxu0 %v3225
  %v3227 = vand.u32 %v111, 4294901760
  %v3228 = vsub.f32 %v111, %v3227
  %v3229 = vand.u32 %v3228, 4294901760
  %3230 = vmatpush.msra.mxu0 %v3229
  %v3231 = vand.u32 %v104, 4294901760
  %v3232 = vsub.f32 %v104, %v3231
  %v3233 = vand.u32 %v3232, 4294901760
  %3234 = vmatpush.msra.mxu0 %v3233
  %v3235 = vand.u32 %v97, 4294901760
  %v3236 = vsub.f32 %v97, %v3235
  %v3237 = vand.u32 %v3236, 4294901760
  %3238 = vmatpush.msra.mxu0 %v3237
  %v3239 = vand.u32 %v90, 4294901760
  %v3240 = vsub.f32 %v90, %v3239
  %v3241 = vand.u32 %v3240, 4294901760
  %3242 = vmatpush.msra.mxu0 %v3241
  %v3243 = vand.u32 %v83, 4294901760
  %v3244 = vsub.f32 %v83, %v3243
  %v3245 = vand.u32 %v3244, 4294901760
  %3246 = vmatpush.msra.mxu0 %v3245
  %v3247 = vand.u32 %v76, 4294901760
  %v3248 = vsub.f32 %v76, %v3247
  %v3249 = vand.u32 %v3248, 4294901760
  %3250 = vmatpush.msra.mxu0 %v3249
  %v3251 = vand.u32 %v69, 4294901760
  %v3252 = vsub.f32 %v69, %v3251
  %v3253 = vand.u32 %v3252, 4294901760
  %3254 = vmatpush.msra.mxu0 %v3253
  %v3255 = vand.u32 %v62, 4294901760
  %v3256 = vsub.f32 %v62, %v3255
  %v3257 = vand.u32 %v3256, 4294901760
  %3258 = vmatpush.msra.mxu0 %v3257
  %v3259 = vand.u32 %v55, 4294901760
  %v3260 = vsub.f32 %v55, %v3259
  %v3261 = vand.u32 %v3260, 4294901760
  %3262 = vmatpush.msra.mxu0 %v3261
  %v3263 = vand.u32 %v48, 4294901760
  %v3264 = vsub.f32 %v48, %v3263
  %v3265 = vand.u32 %v3264, 4294901760
  %3266 = vmatpush.msra.mxu0 %v3265
  %v3267 = vand.u32 %v41, 4294901760
  %v3268 = vsub.f32 %v41, %v3267
  %v3269 = vand.u32 %v3268, 4294901760
  %3270 = vmatpush.msra.mxu0 %v3269
  %v3271 = vand.u32 %v34, 4294901760
  %v3272 = vsub.f32 %v34, %v3271
  %v3273 = vand.u32 %v3272, 4294901760
  %3274 = vmatpush.msra.mxu0 %v3273
  %v3275 = vand.u32 %v27, 4294901760
  %v3276 = vsub.f32 %v27, %v3275
  %v3277 = vand.u32 %v3276, 4294901760
  %3278 = vmatpush.msra.mxu0 %v3277
  %v3279 = vand.u32 %v20, 4294901760
  %v3280 = vsub.f32 %v20, %v3279
  %v3281 = vand.u32 %v3280, 4294901760
  %3282 = vmatpush.msra.mxu0 %v3281
  %v3283 = vand.u32 %v14, 4294901760
  %3284 = vmatmul.f32.gmra.mxu0 %v3283
  %v3285 = vpop.f32.mrf.mxu0
  %v3286 = vadd.f32 %v3217, %v3285
  %3287 = vdwg.mxu0
  %v3288 = vand.u32 %v125, 4294901760
  %3289 = vmatpush.msra.mxu0 %v3288
  %v3290 = vand.u32 %v118, 4294901760
  %3291 = vmatpush.msra.mxu0 %v3290
  %v3292 = vand.u32 %v111, 4294901760
  %3293 = vmatpush.msra.mxu0 %v3292
  %v3294 = vand.u32 %v104, 4294901760
  %3295 = vmatpush.msra.mxu0 %v3294
  %v3296 = vand.u32 %v97, 4294901760
  %3297 = vmatpush.msra.mxu0 %v3296
  %v3298 = vand.u32 %v90, 4294901760
  %3299 = vmatpush.msra.mxu0 %v3298
  %v3300 = vand.u32 %v83, 4294901760
  %3301 = vmatpush.msra.mxu0 %v3300
  %v3302 = vand.u32 %v76, 4294901760
  %3303 = vmatpush.msra.mxu0 %v3302
  %v3304 = vand.u32 %v69, 4294901760
  %3305 = vmatpush.msra.mxu0 %v3304
  %v3306 = vand.u32 %v62, 4294901760
  %3307 = vmatpush.msra.mxu0 %v3306
  %v3308 = vand.u32 %v55, 4294901760
  %3309 = vmatpush.msra.mxu0 %v3308
  %v3310 = vand.u32 %v48, 4294901760
  %3311 = vmatpush.msra.mxu0 %v3310
  %v3312 = vand.u32 %v41, 4294901760
  %3313 = vmatpush.msra.mxu0 %v3312
  %v3314 = vand.u32 %v34, 4294901760
  %3315 = vmatpush.msra.mxu0 %v3314
  %v3316 = vand.u32 %v27, 4294901760
  %3317 = vmatpush.msra.mxu0 %v3316
  %v3318 = vand.u32 %v20, 4294901760
  %3319 = vmatpush.msra.mxu0 %v3318
  %v3320 = vand.u32 %v14, 4294901760
  %3321 = vmatmul.f32.gmra.mxu0 %v3320
  %v3322 = vpop.f32.mrf.mxu0
  %v3323 = vadd.f32 %v3286, %v3322
  %3324 = vdwg.mxu0
  %v3325 = vand.u32 %v237, 4294901760
  %3326 = vmatpush.msra.mxu0 %v3325
  %v3327 = vand.u32 %v230, 4294901760
  %3328 = vmatpush.msra.mxu0 %v3327
  %v3329 = vand.u32 %v223, 4294901760
  %3330 = vmatpush.msra.mxu0 %v3329
  %v3331 = vand.u32 %v216, 4294901760
  %3332 = vmatpush.msra.mxu0 %v3331
  %v3333 = vand.u32 %v209, 4294901760
  %3334 = vmatpush.msra.mxu0 %v3333
  %v3335 = vand.u32 %v202, 4294901760
  %3336 = vmatpush.msra.mxu0 %v3335
  %v3337 = vand.u32 %v195, 4294901760
  %3338 = vmatpush.msra.mxu0 %v3337
  %v3339 = vand.u32 %v188, 4294901760
  %3340 = vmatpush.msra.mxu0 %v3339
  %v3341 = vand.u32 %v181, 4294901760
  %3342 = vmatpush.msra.mxu0 %v3341
  %v3343 = vand.u32 %v174, 4294901760
  %3344 = vmatpush.msra.mxu0 %v3343
  %v3345 = vand.u32 %v167, 4294901760
  %3346 = vmatpush.msra.mxu0 %v3345
  %v3347 = vand.u32 %v160, 4294901760
  %3348 = vmatpush.msra.mxu0 %v3347
  %v3349 = vand.u32 %v153, 4294901760
  %3350 = vmatpush.msra.mxu0 %v3349
  %v3351 = vand.u32 %v146, 4294901760
  %3352 = vmatpush.msra.mxu0 %v3351
  %v3353 = vand.u32 %v139, 4294901760
  %3354 = vmatpush.msra.mxu0 %v3353
  %v3355 = vand.u32 %v132, 4294901760
  %3356 = vmatpush.msra.mxu0 %v3355
  %v3357 = vand.u32 %v15, 4294901760
  %v3358 = vsub.f32 %v15, %v3357
  %v3359 = vand.u32 %v3358, 4294901760
  %v3360 = vsub.f32 %v3358, %v3359
  %v3361 = vand.u32 %v3360, 4294901760
  %3362 = vmatmul.f32.gmra.mxu0 %v3361
  %v3363 = vpop.f32.mrf.mxu0
  %v3364 = vadd.f32 %v3323, %v3363
  %3365 = vdwg.mxu0
  %v3366 = vand.u32 %v237, 4294901760
  %v3367 = vsub.f32 %v237, %v3366
  %v3368 = vand.u32 %v3367, 4294901760
  %v3369 = vsub.f32 %v3367, %v3368
  %v3370 = vand.u32 %v3369, 4294901760
  %3371 = vmatpush.msra.mxu0 %v3370
  %v3372 = vand.u32 %v230, 4294901760
  %v3373 = vsub.f32 %v230, %v3372
  %v3374 = vand.u32 %v3373, 4294901760
  %v3375 = vsub.f32 %v3373, %v3374
  %v3376 = vand.u32 %v3375, 4294901760
  %3377 = vmatpush.msra.mxu0 %v3376
  %v3378 = vand.u32 %v223, 4294901760
  %v3379 = vsub.f32 %v223, %v3378
  %v3380 = vand.u32 %v3379, 4294901760
  %v3381 = vsub.f32 %v3379, %v3380
  %v3382 = vand.u32 %v3381, 4294901760
  %3383 = vmatpush.msra.mxu0 %v3382
  %v3384 = vand.u32 %v216, 4294901760
  %v3385 = vsub.f32 %v216, %v3384
  %v3386 = vand.u32 %v3385, 4294901760
  %v3387 = vsub.f32 %v3385, %v3386
  %v3388 = vand.u32 %v3387, 4294901760
  %3389 = vmatpush.msra.mxu0 %v3388
  %v3390 = vand.u32 %v209, 4294901760
  %v3391 = vsub.f32 %v209, %v3390
  %v3392 = vand.u32 %v3391, 4294901760
  %v3393 = vsub.f32 %v3391, %v3392
  %v3394 = vand.u32 %v3393, 4294901760
  %3395 = vmatpush.msra.mxu0 %v3394
  %v3396 = vand.u32 %v202, 4294901760
  %v3397 = vsub.f32 %v202, %v3396
  %v3398 = vand.u32 %v3397, 4294901760
  %v3399 = vsub.f32 %v3397, %v3398
  %v3400 = vand.u32 %v3399, 4294901760
  %3401 = vmatpush.msra.mxu0 %v3400
  %v3402 = vand.u32 %v195, 4294901760
  %v3403 = vsub.f32 %v195, %v3402
  %v3404 = vand.u32 %v3403, 4294901760
  %v3405 = vsub.f32 %v3403, %v3404
  %v3406 = vand.u32 %v3405, 4294901760
  %3407 = vmatpush.msra.mxu0 %v3406
  %v3408 = vand.u32 %v188, 4294901760
  %v3409 = vsub.f32 %v188, %v3408
  %v3410 = vand.u32 %v3409, 4294901760
  %v3411 = vsub.f32 %v3409, %v3410
  %v3412 = vand.u32 %v3411, 4294901760
  %3413 = vmatpush.msra.mxu0 %v3412
  %v3414 = vand.u32 %v181, 4294901760
  %v3415 = vsub.f32 %v181, %v3414
  %v3416 = vand.u32 %v3415, 4294901760
  %v3417 = vsub.f32 %v3415, %v3416
  %v3418 = vand.u32 %v3417, 4294901760
  %3419 = vmatpush.msra.mxu0 %v3418
  %v3420 = vand.u32 %v174, 4294901760
  %v3421 = vsub.f32 %v174, %v3420
  %v3422 = vand.u32 %v3421, 4294901760
  %v3423 = vsub.f32 %v3421, %v3422
  %v3424 = vand.u32 %v3423, 4294901760
  %3425 = vmatpush.msra.mxu0 %v3424
  %v3426 = vand.u32 %v167, 4294901760
  %v3427 = vsub.f32 %v167, %v3426
  %v3428 = vand.u32 %v3427, 4294901760
  %v3429 = vsub.f32 %v3427, %v3428
  %v3430 = vand.u32 %v3429, 4294901760
  %3431 = vmatpush.msra.mxu0 %v3430
  %v3432 = vand.u32 %v160, 4294901760
  %v3433 = vsub.f32 %v160, %v3432
  %v3434 = vand.u32 %v3433, 4294901760
  %v3435 = vsub.f32 %v3433, %v3434
  %v3436 = vand.u32 %v3435, 4294901760
  %3437 = vmatpush.msra.mxu0 %v3436
  %v3438 = vand.u32 %v153, 4294901760
  %v3439 = vsub.f32 %v153, %v3438
  %v3440 = vand.u32 %v3439, 4294901760
  %v3441 = vsub.f32 %v3439, %v3440
  %v3442 = vand.u32 %v3441, 4294901760
  %3443 = vmatpush.msra.mxu0 %v3442
  %v3444 = vand.u32 %v146, 4294901760
  %v3445 = vsub.f32 %v146, %v3444
  %v3446 = vand.u32 %v3445, 4294901760
  %v3447 = vsub.f32 %v3445, %v3446
  %v3448 = vand.u32 %v3447, 4294901760
  %3449 = vmatpush.msra.mxu0 %v3448
  %v3450 = vand.u32 %v139, 4294901760
  %v3451 = vsub.f32 %v139, %v3450
  %v3452 = vand.u32 %v3451, 4294901760
  %v3453 = vsub.f32 %v3451, %v3452
  %v3454 = vand.u32 %v3453, 4294901760
  %3455 = vmatpush.msra.mxu0 %v3454
  %v3456 = vand.u32 %v132, 4294901760
  %v3457 = vsub.f32 %v132, %v3456
  %v3458 = vand.u32 %v3457, 4294901760
  %v3459 = vsub.f32 %v3457, %v3458
  %v3460 = vand.u32 %v3459, 4294901760
  %3461 = vmatpush.msra.mxu0 %v3460
  %v3462 = vand.u32 %v15, 4294901760
  %3463 = vmatmul.f32.gmra.mxu0 %v3462
  %v3464 = vpop.f32.mrf.mxu0
  %v3465 = vadd.f32 %v3364, %v3464
  %3466 = vdwg.mxu0
  %v3467 = vand.u32 %v237, 4294901760
  %v3468 = vsub.f32 %v237, %v3467
  %3469 = vmatpush.msra.mxu0 %v3468
  %v3470 = vand.u32 %v230, 4294901760
  %v3471 = vsub.f32 %v230, %v3470
  %3472 = vmatpush.msra.mxu0 %v3471
  %v3473 = vand.u32 %v223, 4294901760
  %v3474 = vsub.f32 %v223, %v3473
  %3475 = vmatpush.msra.mxu0 %v3474
  %v3476 = vand.u32 %v216, 4294901760
  %v3477 = vsub.f32 %v216, %v3476
  %3478 = vmatpush.msra.mxu0 %v3477
  %v3479 = vand.u32 %v209, 4294901760
  %v3480 = vsub.f32 %v209, %v3479
  %3481 = vmatpush.msra.mxu0 %v3480
  %v3482 = vand.u32 %v202, 4294901760
  %v3483 = vsub.f32 %v202, %v3482
  %3484 = vmatpush.msra.mxu0 %v3483
  %v3485 = vand.u32 %v195, 4294901760
  %v3486 = vsub.f32 %v195, %v3485
  %3487 = vmatpush.msra.mxu0 %v3486
  %v3488 = vand.u32 %v188, 4294901760
  %v3489 = vsub.f32 %v188, %v3488
  %3490 = vmatpush.msra.mxu0 %v3489
  %v3491 = vand.u32 %v181, 4294901760
  %v3492 = vsub.f32 %v181, %v3491
  %3493 = vmatpush.msra.mxu0 %v3492
  %v3494 = vand.u32 %v174, 4294901760
  %v3495 = vsub.f32 %v174, %v3494
  %3496 = vmatpush.msra.mxu0 %v3495
  %v3497 = vand.u32 %v167, 4294901760
  %v3498 = vsub.f32 %v167, %v3497
  %3499 = vmatpush.msra.mxu0 %v3498
  %v3500 = vand.u32 %v160, 4294901760
  %v3501 = vsub.f32 %v160, %v3500
  %3502 = vmatpush.msra.mxu0 %v3501
  %v3503 = vand.u32 %v153, 4294901760
  %v3504 = vsub.f32 %v153, %v3503
  %3505 = vmatpush.msra.mxu0 %v3504
  %v3506 = vand.u32 %v146, 4294901760
  %v3507 = vsub.f32 %v146, %v3506
  %3508 = vmatpush.msra.mxu0 %v3507
  %v3509 = vand.u32 %v139, 4294901760
  %v3510 = vsub.f32 %v139, %v3509
  %3511 = vmatpush.msra.mxu0 %v3510
  %v3512 = vand.u32 %v132, 4294901760
  %v3513 = vsub.f32 %v132, %v3512
  %3514 = vmatpush.msra.mxu0 %v3513
  %v3515 = vand.u32 %v15, 4294901760
  %v3516 = vsub.f32 %v15, %v3515
  %3517 = vmatmul.f32.gmra.mxu0 %v3516
  %v3518 = vpop.f32.mrf.mxu0
  %v3519 = vadd.f32 %v3465, %v3518
  %3520 = vdwg.mxu0
  %v3521 = vand.u32 %v237, 4294901760
  %3522 = vmatpush.msra.mxu0 %v3521
  %v3523 = vand.u32 %v230, 4294901760
  %3524 = vmatpush.msra.mxu0 %v3523
  %v3525 = vand.u32 %v223, 4294901760
  %3526 = vmatpush.msra.mxu0 %v3525
  %v3527 = vand.u32 %v216, 4294901760
  %3528 = vmatpush.msra.mxu0 %v3527
  %v3529 = vand.u32 %v209, 4294901760
  %3530 = vmatpush.msra.mxu0 %v3529
  %v3531 = vand.u32 %v202, 4294901760
  %3532 = vmatpush.msra.mxu0 %v3531
  %v3533 = vand.u32 %v195, 4294901760
  %3534 = vmatpush.msra.mxu0 %v3533
  %v3535 = vand.u32 %v188, 4294901760
  %3536 = vmatpush.msra.mxu0 %v3535
  %v3537 = vand.u32 %v181, 4294901760
  %3538 = vmatpush.msra.mxu0 %v3537
  %v3539 = vand.u32 %v174, 4294901760
  %3540 = vmatpush.msra.mxu0 %v3539
  %v3541 = vand.u32 %v167, 4294901760
  %3542 = vmatpush.msra.mxu0 %v3541
  %v3543 = vand.u32 %v160, 4294901760
  %3544 = vmatpush.msra.mxu0 %v3543
  %v3545 = vand.u32 %v153, 4294901760
  %3546 = vmatpush.msra.mxu0 %v3545
  %v3547 = vand.u32 %v146, 4294901760
  %3548 = vmatpush.msra.mxu0 %v3547
  %v3549 = vand.u32 %v139, 4294901760
  %3550 = vmatpush.msra.mxu0 %v3549
  %v3551 = vand.u32 %v132, 4294901760
  %3552 = vmatpush.msra.mxu0 %v3551
  %v3553 = vand.u32 %v15, 4294901760
  %v3554 = vsub.f32 %v15, %v3553
  %v3555 = vand.u32 %v3554, 4294901760
  %3556 = vmatmul.f32.gmra.mxu0 %v3555
  %v3557 = vpop.f32.mrf.mxu0
  %v3558 = vadd.f32 %v3519, %v3557
  %3559 = vdwg.mxu0
  %v3560 = vand.u32 %v237, 4294901760
  %v3561 = vsub.f32 %v237, %v3560
  %v3562 = vand.u32 %v3561, 4294901760
  %3563 = vmatpush.msra.mxu0 %v3562
  %v3564 = vand.u32 %v230, 4294901760
  %v3565 = vsub.f32 %v230, %v3564
  %v3566 = vand.u32 %v3565, 4294901760
  %3567 = vmatpush.msra.mxu0 %v3566
  %v3568 = vand.u32 %v223, 4294901760
  %v3569 = vsub.f32 %v223, %v3568
  %v3570 = vand.u32 %v3569, 4294901760
  %3571 = vmatpush.msra.mxu0 %v3570
  %v3572 = vand.u32 %v216, 4294901760
  %v3573 = vsub.f32 %v216, %v3572
  %v3574 = vand.u32 %v3573, 4294901760
  %3575 = vmatpush.msra.mxu0 %v3574
  %v3576 = vand.u32 %v209, 4294901760
  %v3577 = vsub.f32 %v209, %v3576
  %v3578 = vand.u32 %v3577, 4294901760
  %3579 = vmatpush.msra.mxu0 %v3578
  %v3580 = vand.u32 %v202, 4294901760
  %v3581 = vsub.f32 %v202, %v3580
  %v3582 = vand.u32 %v3581, 4294901760
  %3583 = vmatpush.msra.mxu0 %v3582
  %v3584 = vand.u32 %v195, 4294901760
  %v3585 = vsub.f32 %v195, %v3584
  %v3586 = vand.u32 %v3585, 4294901760
  %3587 = vmatpush.msra.mxu0 %v3586
  %v3588 = vand.u32 %v188, 4294901760
  %v3589 = vsub.f32 %v188, %v3588
  %v3590 = vand.u32 %v3589, 4294901760
  %3591 = vmatpush.msra.mxu0 %v3590
  %v3592 = vand.u32 %v181, 4294901760
  %v3593 = vsub.f32 %v181, %v3592
  %v3594 = vand.u32 %v3593, 4294901760
  %3595 = vmatpush.msra.mxu0 %v3594
  %v3596 = vand.u32 %v174, 4294901760
  %v3597 = vsub.f32 %v174, %v3596
  %v3598 = vand.u32 %v3597, 4294901760
  %3599 = vmatpush.msra.mxu0 %v3598
  %v3600 = vand.u32 %v167, 4294901760
  %v3601 = vsub.f32 %v167, %v3600
  %v3602 = vand.u32 %v3601, 4294901760
  %3603 = vmatpush.msra.mxu0 %v3602
  %v3604 = vand.u32 %v160, 4294901760
  %v3605 = vsub.f32 %v160, %v3604
  %v3606 = vand.u32 %v3605, 4294901760
  %3607 = vmatpush.msra.mxu0 %v3606
  %v3608 = vand.u32 %v153, 4294901760
  %v3609 = vsub.f32 %v153, %v3608
  %v3610 = vand.u32 %v3609, 4294901760
  %3611 = vmatpush.msra.mxu0 %v3610
  %v3612 = vand.u32 %v146, 4294901760
  %v3613 = vsub.f32 %v146, %v3612
  %v3614 = vand.u32 %v3613, 4294901760
  %3615 = vmatpush.msra.mxu0 %v3614
  %v3616 = vand.u32 %v139, 4294901760
  %v3617 = vsub.f32 %v139, %v3616
  %v3618 = vand.u32 %v3617, 4294901760
  %3619 = vmatpush.msra.mxu0 %v3618
  %v3620 = vand.u32 %v132, 4294901760
  %v3621 = vsub.f32 %v132, %v3620
  %v3622 = vand.u32 %v3621, 4294901760
  %3623 = vmatpush.msra.mxu0 %v3622
  %v3624 = vand.u32 %v15, 4294901760
  %3625 = vmatmul.f32.gmra.mxu0 %v3624
  %v3626 = vpop.f32.mrf.mxu0
  %v3627 = vadd.f32 %v3558, %v3626
  %3628 = vdwg.mxu0
  %v3629 = vand.u32 %v237, 4294901760
  %3630 = vmatpush.msra.mxu0 %v3629
  %v3631 = vand.u32 %v230, 4294901760
  %3632 = vmatpush.msra.mxu0 %v3631
  %v3633 = vand.u32 %v223, 4294901760
  %3634 = vmatpush.msra.mxu0 %v3633
  %v3635 = vand.u32 %v216, 4294901760
  %3636 = vmatpush.msra.mxu0 %v3635
  %v3637 = vand.u32 %v209, 4294901760
  %3638 = vmatpush.msra.mxu0 %v3637
  %v3639 = vand.u32 %v202, 4294901760
  %3640 = vmatpush.msra.mxu0 %v3639
  %v3641 = vand.u32 %v195, 4294901760
  %3642 = vmatpush.msra.mxu0 %v3641
  %v3643 = vand.u32 %v188, 4294901760
  %3644 = vmatpush.msra.mxu0 %v3643
  %v3645 = vand.u32 %v181, 4294901760
  %3646 = vmatpush.msra.mxu0 %v3645
  %v3647 = vand.u32 %v174, 4294901760
  %3648 = vmatpush.msra.mxu0 %v3647
  %v3649 = vand.u32 %v167, 4294901760
  %3650 = vmatpush.msra.mxu0 %v3649
  %v3651 = vand.u32 %v160, 4294901760
  %3652 = vmatpush.msra.mxu0 %v3651
  %v3653 = vand.u32 %v153, 4294901760
  %3654 = vmatpush.msra.mxu0 %v3653
  %v3655 = vand.u32 %v146, 4294901760
  %3656 = vmatpush.msra.mxu0 %v3655
  %v3657 = vand.u32 %v139, 4294901760
  %3658 = vmatpush.msra.mxu0 %v3657
  %v3659 = vand.u32 %v132, 4294901760
  %3660 = vmatpush.msra.mxu0 %v3659
  %v3661 = vand.u32 %v15, 4294901760
  %3662 = vmatmul.f32.gmra.mxu0 %v3661
  %v3663 = vpop.f32.mrf.mxu0
  %v3664 = vadd.f32 %v3627, %v3663
  %3665 = vdwg.mxu0
  %v3666 = vand.u32 %v126, 4294901760
  %3667 = vmatpush.msra.mxu0 %v3666
  %v3668 = vand.u32 %v119, 4294901760
  %3669 = vmatpush.msra.mxu0 %v3668
  %v3670 = vand.u32 %v112, 4294901760
  %3671 = vmatpush.msra.mxu0 %v3670
  %v3672 = vand.u32 %v105, 4294901760
  %3673 = vmatpush.msra.mxu0 %v3672
  %v3674 = vand.u32 %v98, 4294901760
  %3675 = vmatpush.msra.mxu0 %v3674
  %v3676 = vand.u32 %v91, 4294901760
  %3677 = vmatpush.msra.mxu0 %v3676
  %v3678 = vand.u32 %v84, 4294901760
  %3679 = vmatpush.msra.mxu0 %v3678
  %v3680 = vand.u32 %v77, 4294901760
  %3681 = vmatpush.msra.mxu0 %v3680
  %v3682 = vand.u32 %v70, 4294901760
  %3683 = vmatpush.msra.mxu0 %v3682
  %v3684 = vand.u32 %v63, 4294901760
  %3685 = vmatpush.msra.mxu0 %v3684
  %v3686 = vand.u32 %v56, 4294901760
  %3687 = vmatpush.msra.mxu0 %v3686
  %v3688 = vand.u32 %v49, 4294901760
  %3689 = vmatpush.msra.mxu0 %v3688
  %v3690 = vand.u32 %v42, 4294901760
  %3691 = vmatpush.msra.mxu0 %v3690
  %v3692 = vand.u32 %v35, 4294901760
  %3693 = vmatpush.msra.mxu0 %v3692
  %v3694 = vand.u32 %v28, 4294901760
  %3695 = vmatpush.msra.mxu0 %v3694
  %v3696 = vand.u32 %v21, 4294901760
  %3697 = vmatpush.msra.mxu0 %v3696
  %v3698 = vand.u32 %v14, 4294901760
  %v3699 = vsub.f32 %v14, %v3698
  %v3700 = vand.u32 %v3699, 4294901760
  %v3701 = vsub.f32 %v3699, %v3700
  %v3702 = vand.u32 %v3701, 4294901760
  %3703 = vmatmul.f32.gmra.mxu0 %v3702
  %v3704 = vpop.f32.mrf.mxu0
  %v3705 = vadd.f32 %v247, %v3704
  %3706 = vdwg.mxu0
  %v3707 = vand.u32 %v126, 4294901760
  %v3708 = vsub.f32 %v126, %v3707
  %v3709 = vand.u32 %v3708, 4294901760
  %v3710 = vsub.f32 %v3708, %v3709
  %v3711 = vand.u32 %v3710, 4294901760
  %3712 = vmatpush.msra.mxu0 %v3711
  %v3713 = vand.u32 %v119, 4294901760
  %v3714 = vsub.f32 %v119, %v3713
  %v3715 = vand.u32 %v3714, 4294901760
  %v3716 = vsub.f32 %v3714, %v3715
  %v3717 = vand.u32 %v3716, 4294901760
  %3718 = vmatpush.msra.mxu0 %v3717
  %v3719 = vand.u32 %v112, 4294901760
  %v3720 = vsub.f32 %v112, %v3719
  %v3721 = vand.u32 %v3720, 4294901760
  %v3722 = vsub.f32 %v3720, %v3721
  %v3723 = vand.u32 %v3722, 4294901760
  %3724 = vmatpush.msra.mxu0 %v3723
  %v3725 = vand.u32 %v105, 4294901760
  %v3726 = vsub.f32 %v105, %v3725
  %v3727 = vand.u32 %v3726, 4294901760
  %v3728 = vsub.f32 %v3726, %v3727
  %v3729 = vand.u32 %v3728, 4294901760
  %3730 = vmatpush.msra.mxu0 %v3729
  %v3731 = vand.u32 %v98, 4294901760
  %v3732 = vsub.f32 %v98, %v3731
  %v3733 = vand.u32 %v3732, 4294901760
  %v3734 = vsub.f32 %v3732, %v3733
  %v3735 = vand.u32 %v3734, 4294901760
  %3736 = vmatpush.msra.mxu0 %v3735
  %v3737 = vand.u32 %v91, 4294901760
  %v3738 = vsub.f32 %v91, %v3737
  %v3739 = vand.u32 %v3738, 4294901760
  %v3740 = vsub.f32 %v3738, %v3739
  %v3741 = vand.u32 %v3740, 4294901760
  %3742 = vmatpush.msra.mxu0 %v3741
  %v3743 = vand.u32 %v84, 4294901760
  %v3744 = vsub.f32 %v84, %v3743
  %v3745 = vand.u32 %v3744, 4294901760
  %v3746 = vsub.f32 %v3744, %v3745
  %v3747 = vand.u32 %v3746, 4294901760
  %3748 = vmatpush.msra.mxu0 %v3747
  %v3749 = vand.u32 %v77, 4294901760
  %v3750 = vsub.f32 %v77, %v3749
  %v3751 = vand.u32 %v3750, 4294901760
  %v3752 = vsub.f32 %v3750, %v3751
  %v3753 = vand.u32 %v3752, 4294901760
  %3754 = vmatpush.msra.mxu0 %v3753
  %v3755 = vand.u32 %v70, 4294901760
  %v3756 = vsub.f32 %v70, %v3755
  %v3757 = vand.u32 %v3756, 4294901760
  %v3758 = vsub.f32 %v3756, %v3757
  %v3759 = vand.u32 %v3758, 4294901760
  %3760 = vmatpush.msra.mxu0 %v3759
  %v3761 = vand.u32 %v63, 4294901760
  %v3762 = vsub.f32 %v63, %v3761
  %v3763 = vand.u32 %v3762, 4294901760
  %v3764 = vsub.f32 %v3762, %v3763
  %v3765 = vand.u32 %v3764, 4294901760
  %3766 = vmatpush.msra.mxu0 %v3765
  %v3767 = vand.u32 %v56, 4294901760
  %v3768 = vsub.f32 %v56, %v3767
  %v3769 = vand.u32 %v3768, 4294901760
  %v3770 = vsub.f32 %v3768, %v3769
  %v3771 = vand.u32 %v3770, 4294901760
  %3772 = vmatpush.msra.mxu0 %v3771
  %v3773 = vand.u32 %v49, 4294901760
  %v3774 = vsub.f32 %v49, %v3773
  %v3775 = vand.u32 %v3774, 4294901760
  %v3776 = vsub.f32 %v3774, %v3775
  %v3777 = vand.u32 %v3776, 4294901760
  %3778 = vmatpush.msra.mxu0 %v3777
  %v3779 = vand.u32 %v42, 4294901760
  %v3780 = vsub.f32 %v42, %v3779
  %v3781 = vand.u32 %v3780, 4294901760
  %v3782 = vsub.f32 %v3780, %v3781
  %v3783 = vand.u32 %v3782, 4294901760
  %3784 = vmatpush.msra.mxu0 %v3783
  %v3785 = vand.u32 %v35, 4294901760
  %v3786 = vsub.f32 %v35, %v3785
  %v3787 = vand.u32 %v3786, 4294901760
  %v3788 = vsub.f32 %v3786, %v3787
  %v3789 = vand.u32 %v3788, 4294901760
  %3790 = vmatpush.msra.mxu0 %v3789
  %v3791 = vand.u32 %v28, 4294901760
  %v3792 = vsub.f32 %v28, %v3791
  %v3793 = vand.u32 %v3792, 4294901760
  %v3794 = vsub.f32 %v3792, %v3793
  %v3795 = vand.u32 %v3794, 4294901760
  %3796 = vmatpush.msra.mxu0 %v3795
  %v3797 = vand.u32 %v21, 4294901760
  %v3798 = vsub.f32 %v21, %v3797
  %v3799 = vand.u32 %v3798, 4294901760
  %v3800 = vsub.f32 %v3798, %v3799
  %v3801 = vand.u32 %v3800, 4294901760
  %3802 = vmatpush.msra.mxu0 %v3801
  %v3803 = vand.u32 %v14, 4294901760
  %3804 = vmatmul.f32.gmra.mxu0 %v3803
  %v3805 = vpop.f32.mrf.mxu0
  %v3806 = vadd.f32 %v3705, %v3805
  %3807 = vdwg.mxu0
  %v3808 = vand.u32 %v126, 4294901760
  %v3809 = vsub.f32 %v126, %v3808
  %3810 = vmatpush.msra.mxu0 %v3809
  %v3811 = vand.u32 %v119, 4294901760
  %v3812 = vsub.f32 %v119, %v3811
  %3813 = vmatpush.msra.mxu0 %v3812
  %v3814 = vand.u32 %v112, 4294901760
  %v3815 = vsub.f32 %v112, %v3814
  %3816 = vmatpush.msra.mxu0 %v3815
  %v3817 = vand.u32 %v105, 4294901760
  %v3818 = vsub.f32 %v105, %v3817
  %3819 = vmatpush.msra.mxu0 %v3818
  %v3820 = vand.u32 %v98, 4294901760
  %v3821 = vsub.f32 %v98, %v3820
  %3822 = vmatpush.msra.mxu0 %v3821
  %v3823 = vand.u32 %v91, 4294901760
  %v3824 = vsub.f32 %v91, %v3823
  %3825 = vmatpush.msra.mxu0 %v3824
  %v3826 = vand.u32 %v84, 4294901760
  %v3827 = vsub.f32 %v84, %v3826
  %3828 = vmatpush.msra.mxu0 %v3827
  %v3829 = vand.u32 %v77, 4294901760
  %v3830 = vsub.f32 %v77, %v3829
  %3831 = vmatpush.msra.mxu0 %v3830
  %v3832 = vand.u32 %v70, 4294901760
  %v3833 = vsub.f32 %v70, %v3832
  %3834 = vmatpush.msra.mxu0 %v3833
  %v3835 = vand.u32 %v63, 4294901760
  %v3836 = vsub.f32 %v63, %v3835
  %3837 = vmatpush.msra.mxu0 %v3836
  %v3838 = vand.u32 %v56, 4294901760
  %v3839 = vsub.f32 %v56, %v3838
  %3840 = vmatpush.msra.mxu0 %v3839
  %v3841 = vand.u32 %v49, 4294901760
  %v3842 = vsub.f32 %v49, %v3841
  %3843 = vmatpush.msra.mxu0 %v3842
  %v3844 = vand.u32 %v42, 4294901760
  %v3845 = vsub.f32 %v42, %v3844
  %3846 = vmatpush.msra.mxu0 %v3845
  %v3847 = vand.u32 %v35, 4294901760
  %v3848 = vsub.f32 %v35, %v3847
  %3849 = vmatpush.msra.mxu0 %v3848
  %v3850 = vand.u32 %v28, 4294901760
  %v3851 = vsub.f32 %v28, %v3850
  %3852 = vmatpush.msra.mxu0 %v3851
  %v3853 = vand.u32 %v21, 4294901760
  %v3854 = vsub.f32 %v21, %v3853
  %3855 = vmatpush.msra.mxu0 %v3854
  %v3856 = vand.u32 %v14, 4294901760
  %v3857 = vsub.f32 %v14, %v3856
  %3858 = vmatmul.f32.gmra.mxu0 %v3857
  %v3859 = vpop.f32.mrf.mxu0
  %v3860 = vadd.f32 %v3806, %v3859
  %3861 = vdwg.mxu0
  %v3862 = vand.u32 %v126, 4294901760
  %3863 = vmatpush.msra.mxu0 %v3862
  %v3864 = vand.u32 %v119, 4294901760
  %3865 = vmatpush.msra.mxu0 %v3864
  %v3866 = vand.u32 %v112, 4294901760
  %3867 = vmatpush.msra.mxu0 %v3866
  %v3868 = vand.u32 %v105, 4294901760
  %3869 = vmatpush.msra.mxu0 %v3868
  %v3870 = vand.u32 %v98, 4294901760
  %3871 = vmatpush.msra.mxu0 %v3870
  %v3872 = vand.u32 %v91, 4294901760
  %3873 = vmatpush.msra.mxu0 %v3872
  %v3874 = vand.u32 %v84, 4294901760
  %3875 = vmatpush.msra.mxu0 %v3874
  %v3876 = vand.u32 %v77, 4294901760
  %3877 = vmatpush.msra.mxu0 %v3876
  %v3878 = vand.u32 %v70, 4294901760
  %3879 = vmatpush.msra.mxu0 %v3878
  %v3880 = vand.u32 %v63, 4294901760
  %3881 = vmatpush.msra.mxu0 %v3880
  %v3882 = vand.u32 %v56, 4294901760
  %3883 = vmatpush.msra.mxu0 %v3882
  %v3884 = vand.u32 %v49, 4294901760
  %3885 = vmatpush.msra.mxu0 %v3884
  %v3886 = vand.u32 %v42, 4294901760
  %3887 = vmatpush.msra.mxu0 %v3886
  %v3888 = vand.u32 %v35, 4294901760
  %3889 = vmatpush.msra.mxu0 %v3888
  %v3890 = vand.u32 %v28, 4294901760
  %3891 = vmatpush.msra.mxu0 %v3890
  %v3892 = vand.u32 %v21, 4294901760
  %3893 = vmatpush.msra.mxu0 %v3892
  %v3894 = vand.u32 %v14, 4294901760
  %v3895 = vsub.f32 %v14, %v3894
  %v3896 = vand.u32 %v3895, 4294901760
  %3897 = vmatmul.f32.gmra.mxu0 %v3896
  %v3898 = vpop.f32.mrf.mxu0
  %v3899 = vadd.f32 %v3860, %v3898
  %3900 = vdwg.mxu0
  %v3901 = vand.u32 %v126, 4294901760
  %v3902 = vsub.f32 %v126, %v3901
  %v3903 = vand.u32 %v3902, 4294901760
  %3904 = vmatpush.msra.mxu0 %v3903
  %v3905 = vand.u32 %v119, 4294901760
  %v3906 = vsub.f32 %v119, %v3905
  %v3907 = vand.u32 %v3906, 4294901760
  %3908 = vmatpush.msra.mxu0 %v3907
  %v3909 = vand.u32 %v112, 4294901760
  %v3910 = vsub.f32 %v112, %v3909
  %v3911 = vand.u32 %v3910, 4294901760
  %3912 = vmatpush.msra.mxu0 %v3911
  %v3913 = vand.u32 %v105, 4294901760
  %v3914 = vsub.f32 %v105, %v3913
  %v3915 = vand.u32 %v3914, 4294901760
  %3916 = vmatpush.msra.mxu0 %v3915
  %v3917 = vand.u32 %v98, 4294901760
  %v3918 = vsub.f32 %v98, %v3917
  %v3919 = vand.u32 %v3918, 4294901760
  %3920 = vmatpush.msra.mxu0 %v3919
  %v3921 = vand.u32 %v91, 4294901760
  %v3922 = vsub.f32 %v91, %v3921
  %v3923 = vand.u32 %v3922, 4294901760
  %3924 = vmatpush.msra.mxu0 %v3923
  %v3925 = vand.u32 %v84, 4294901760
  %v3926 = vsub.f32 %v84, %v3925
  %v3927 = vand.u32 %v3926, 4294901760
  %3928 = vmatpush.msra.mxu0 %v3927
  %v3929 = vand.u32 %v77, 4294901760
  %v3930 = vsub.f32 %v77, %v3929
  %v3931 = vand.u32 %v3930, 4294901760
  %3932 = vmatpush.msra.mxu0 %v3931
  %v3933 = vand.u32 %v70, 4294901760
  %v3934 = vsub.f32 %v70, %v3933
  %v3935 = vand.u32 %v3934, 4294901760
  %3936 = vmatpush.msra.mxu0 %v3935
  %v3937 = vand.u32 %v63, 4294901760
  %v3938 = vsub.f32 %v63, %v3937
  %v3939 = vand.u32 %v3938, 4294901760
  %3940 = vmatpush.msra.mxu0 %v3939
  %v3941 = vand.u32 %v56, 4294901760
  %v3942 = vsub.f32 %v56, %v3941
  %v3943 = vand.u32 %v3942, 4294901760
  %3944 = vmatpush.msra.mxu0 %v3943
  %v3945 = vand.u32 %v49, 4294901760
  %v3946 = vsub.f32 %v49, %v3945
  %v3947 = vand.u32 %v3946, 4294901760
  %3948 = vmatpush.msra.mxu0 %v3947
  %v3949 = vand.u32 %v42, 4294901760
  %v3950 = vsub.f32 %v42, %v3949
  %v3951 = vand.u32 %v3950, 4294901760
  %3952 = vmatpush.msra.mxu0 %v3951
  %v3953 = vand.u32 %v35, 4294901760
  %v3954 = vsub.f32 %v35, %v3953
  %v3955 = vand.u32 %v3954, 4294901760
  %3956 = vmatpush.msra.mxu0 %v3955
  %v3957 = vand.u32 %v28, 4294901760
  %v3958 = vsub.f32 %v28, %v3957
  %v3959 = vand.u32 %v3958, 4294901760
  %3960 = vmatpush.msra.mxu0 %v3959
  %v3961 = vand.u32 %v21, 4294901760
  %v3962 = vsub.f32 %v21, %v3961
  %v3963 = vand.u32 %v3962, 4294901760
  %3964 = vmatpush.msra.mxu0 %v3963
  %v3965 = vand.u32 %v14, 4294901760
  %3966 = vmatmul.f32.gmra.mxu0 %v3965
  %v3967 = vpop.f32.mrf.mxu0
  %v3968 = vadd.f32 %v3899, %v3967
  %3969 = vdwg.mxu0
  %v3970 = vand.u32 %v126, 4294901760
  %3971 = vmatpush.msra.mxu0 %v3970
  %v3972 = vand.u32 %v119, 4294901760
  %3973 = vmatpush.msra.mxu0 %v3972
  %v3974 = vand.u32 %v112, 4294901760
  %3975 = vmatpush.msra.mxu0 %v3974
  %v3976 = vand.u32 %v105, 4294901760
  %3977 = vmatpush.msra.mxu0 %v3976
  %v3978 = vand.u32 %v98, 4294901760
  %3979 = vmatpush.msra.mxu0 %v3978
  %v3980 = vand.u32 %v91, 4294901760
  %3981 = vmatpush.msra.mxu0 %v3980
  %v3982 = vand.u32 %v84, 4294901760
  %3983 = vmatpush.msra.mxu0 %v3982
  %v3984 = vand.u32 %v77, 4294901760
  %3985 = vmatpush.msra.mxu0 %v3984
  %v3986 = vand.u32 %v70, 4294901760
  %3987 = vmatpush.msra.mxu0 %v3986
  %v3988 = vand.u32 %v63, 4294901760
  %3989 = vmatpush.msra.mxu0 %v3988
  %v3990 = vand.u32 %v56, 4294901760
  %3991 = vmatpush.msra.mxu0 %v3990
  %v3992 = vand.u32 %v49, 4294901760
  %3993 = vmatpush.msra.mxu0 %v3992
  %v3994 = vand.u32 %v42, 4294901760
  %3995 = vmatpush.msra.mxu0 %v3994
  %v3996 = vand.u32 %v35, 4294901760
  %3997 = vmatpush.msra.mxu0 %v3996
  %v3998 = vand.u32 %v28, 4294901760
  %3999 = vmatpush.msra.mxu0 %v3998
  %v4000 = vand.u32 %v21, 4294901760
  %4001 = vmatpush.msra.mxu0 %v4000
  %v4002 = vand.u32 %v14, 4294901760
  %4003 = vmatmul.f32.gmra.mxu0 %v4002
  %v4004 = vpop.f32.mrf.mxu0
  %v4005 = vadd.f32 %v3968, %v4004
  %4006 = vdwg.mxu0
  %v4007 = vand.u32 %v238, 4294901760
  %4008 = vmatpush.msra.mxu0 %v4007
  %v4009 = vand.u32 %v231, 4294901760
  %4010 = vmatpush.msra.mxu0 %v4009
  %v4011 = vand.u32 %v224, 4294901760
  %4012 = vmatpush.msra.mxu0 %v4011
  %v4013 = vand.u32 %v217, 4294901760
  %4014 = vmatpush.msra.mxu0 %v4013
  %v4015 = vand.u32 %v210, 4294901760
  %4016 = vmatpush.msra.mxu0 %v4015
  %v4017 = vand.u32 %v203, 4294901760
  %4018 = vmatpush.msra.mxu0 %v4017
  %v4019 = vand.u32 %v196, 4294901760
  %4020 = vmatpush.msra.mxu0 %v4019
  %v4021 = vand.u32 %v189, 4294901760
  %4022 = vmatpush.msra.mxu0 %v4021
  %v4023 = vand.u32 %v182, 4294901760
  %4024 = vmatpush.msra.mxu0 %v4023
  %v4025 = vand.u32 %v175, 4294901760
  %4026 = vmatpush.msra.mxu0 %v4025
  %v4027 = vand.u32 %v168, 4294901760
  %4028 = vmatpush.msra.mxu0 %v4027
  %v4029 = vand.u32 %v161, 4294901760
  %4030 = vmatpush.msra.mxu0 %v4029
  %v4031 = vand.u32 %v154, 4294901760
  %4032 = vmatpush.msra.mxu0 %v4031
  %v4033 = vand.u32 %v147, 4294901760
  %4034 = vmatpush.msra.mxu0 %v4033
  %v4035 = vand.u32 %v140, 4294901760
  %4036 = vmatpush.msra.mxu0 %v4035
  %v4037 = vand.u32 %v133, 4294901760
  %4038 = vmatpush.msra.mxu0 %v4037
  %v4039 = vand.u32 %v15, 4294901760
  %v4040 = vsub.f32 %v15, %v4039
  %v4041 = vand.u32 %v4040, 4294901760
  %v4042 = vsub.f32 %v4040, %v4041
  %v4043 = vand.u32 %v4042, 4294901760
  %4044 = vmatmul.f32.gmra.mxu0 %v4043
  %v4045 = vpop.f32.mrf.mxu0
  %v4046 = vadd.f32 %v4005, %v4045
  %4047 = vdwg.mxu0
  %v4048 = vand.u32 %v238, 4294901760
  %v4049 = vsub.f32 %v238, %v4048
  %v4050 = vand.u32 %v4049, 4294901760
  %v4051 = vsub.f32 %v4049, %v4050
  %v4052 = vand.u32 %v4051, 4294901760
  %4053 = vmatpush.msra.mxu0 %v4052
  %v4054 = vand.u32 %v231, 4294901760
  %v4055 = vsub.f32 %v231, %v4054
  %v4056 = vand.u32 %v4055, 4294901760
  %v4057 = vsub.f32 %v4055, %v4056
  %v4058 = vand.u32 %v4057, 4294901760
  %4059 = vmatpush.msra.mxu0 %v4058
  %v4060 = vand.u32 %v224, 4294901760
  %v4061 = vsub.f32 %v224, %v4060
  %v4062 = vand.u32 %v4061, 4294901760
  %v4063 = vsub.f32 %v4061, %v4062
  %v4064 = vand.u32 %v4063, 4294901760
  %4065 = vmatpush.msra.mxu0 %v4064
  %v4066 = vand.u32 %v217, 4294901760
  %v4067 = vsub.f32 %v217, %v4066
  %v4068 = vand.u32 %v4067, 4294901760
  %v4069 = vsub.f32 %v4067, %v4068
  %v4070 = vand.u32 %v4069, 4294901760
  %4071 = vmatpush.msra.mxu0 %v4070
  %v4072 = vand.u32 %v210, 4294901760
  %v4073 = vsub.f32 %v210, %v4072
  %v4074 = vand.u32 %v4073, 4294901760
  %v4075 = vsub.f32 %v4073, %v4074
  %v4076 = vand.u32 %v4075, 4294901760
  %4077 = vmatpush.msra.mxu0 %v4076
  %v4078 = vand.u32 %v203, 4294901760
  %v4079 = vsub.f32 %v203, %v4078
  %v4080 = vand.u32 %v4079, 4294901760
  %v4081 = vsub.f32 %v4079, %v4080
  %v4082 = vand.u32 %v4081, 4294901760
  %4083 = vmatpush.msra.mxu0 %v4082
  %v4084 = vand.u32 %v196, 4294901760
  %v4085 = vsub.f32 %v196, %v4084
  %v4086 = vand.u32 %v4085, 4294901760
  %v4087 = vsub.f32 %v4085, %v4086
  %v4088 = vand.u32 %v4087, 4294901760
  %4089 = vmatpush.msra.mxu0 %v4088
  %v4090 = vand.u32 %v189, 4294901760
  %v4091 = vsub.f32 %v189, %v4090
  %v4092 = vand.u32 %v4091, 4294901760
  %v4093 = vsub.f32 %v4091, %v4092
  %v4094 = vand.u32 %v4093, 4294901760
  %4095 = vmatpush.msra.mxu0 %v4094
  %v4096 = vand.u32 %v182, 4294901760
  %v4097 = vsub.f32 %v182, %v4096
  %v4098 = vand.u32 %v4097, 4294901760
  %v4099 = vsub.f32 %v4097, %v4098
  %v4100 = vand.u32 %v4099, 4294901760
  %4101 = vmatpush.msra.mxu0 %v4100
  %v4102 = vand.u32 %v175, 4294901760
  %v4103 = vsub.f32 %v175, %v4102
  %v4104 = vand.u32 %v4103, 4294901760
  %v4105 = vsub.f32 %v4103, %v4104
  %v4106 = vand.u32 %v4105, 4294901760
  %4107 = vmatpush.msra.mxu0 %v4106
  %v4108 = vand.u32 %v168, 4294901760
  %v4109 = vsub.f32 %v168, %v4108
  %v4110 = vand.u32 %v4109, 4294901760
  %v4111 = vsub.f32 %v4109, %v4110
  %v4112 = vand.u32 %v4111, 4294901760
  %4113 = vmatpush.msra.mxu0 %v4112
  %v4114 = vand.u32 %v161, 4294901760
  %v4115 = vsub.f32 %v161, %v4114
  %v4116 = vand.u32 %v4115, 4294901760
  %v4117 = vsub.f32 %v4115, %v4116
  %v4118 = vand.u32 %v4117, 4294901760
  %4119 = vmatpush.msra.mxu0 %v4118
  %v4120 = vand.u32 %v154, 4294901760
  %v4121 = vsub.f32 %v154, %v4120
  %v4122 = vand.u32 %v4121, 4294901760
  %v4123 = vsub.f32 %v4121, %v4122
  %v4124 = vand.u32 %v4123, 4294901760
  %4125 = vmatpush.msra.mxu0 %v4124
  %v4126 = vand.u32 %v147, 4294901760
  %v4127 = vsub.f32 %v147, %v4126
  %v4128 = vand.u32 %v4127, 4294901760
  %v4129 = vsub.f32 %v4127, %v4128
  %v4130 = vand.u32 %v4129, 4294901760
  %4131 = vmatpush.msra.mxu0 %v4130
  %v4132 = vand.u32 %v140, 4294901760
  %v4133 = vsub.f32 %v140, %v4132
  %v4134 = vand.u32 %v4133, 4294901760
  %v4135 = vsub.f32 %v4133, %v4134
  %v4136 = vand.u32 %v4135, 4294901760
  %4137 = vmatpush.msra.mxu0 %v4136
  %v4138 = vand.u32 %v133, 4294901760
  %v4139 = vsub.f32 %v133, %v4138
  %v4140 = vand.u32 %v4139, 4294901760
  %v4141 = vsub.f32 %v4139, %v4140
  %v4142 = vand.u32 %v4141, 4294901760
  %4143 = vmatpush.msra.mxu0 %v4142
  %v4144 = vand.u32 %v15, 4294901760
  %4145 = vmatmul.f32.gmra.mxu0 %v4144
  %v4146 = vpop.f32.mrf.mxu0
  %v4147 = vadd.f32 %v4046, %v4146
  %4148 = vdwg.mxu0
  %v4149 = vand.u32 %v238, 4294901760
  %v4150 = vsub.f32 %v238, %v4149
  %4151 = vmatpush.msra.mxu0 %v4150
  %v4152 = vand.u32 %v231, 4294901760
  %v4153 = vsub.f32 %v231, %v4152
  %4154 = vmatpush.msra.mxu0 %v4153
  %v4155 = vand.u32 %v224, 4294901760
  %v4156 = vsub.f32 %v224, %v4155
  %4157 = vmatpush.msra.mxu0 %v4156
  %v4158 = vand.u32 %v217, 4294901760
  %v4159 = vsub.f32 %v217, %v4158
  %4160 = vmatpush.msra.mxu0 %v4159
  %v4161 = vand.u32 %v210, 4294901760
  %v4162 = vsub.f32 %v210, %v4161
  %4163 = vmatpush.msra.mxu0 %v4162
  %v4164 = vand.u32 %v203, 4294901760
  %v4165 = vsub.f32 %v203, %v4164
  %4166 = vmatpush.msra.mxu0 %v4165
  %v4167 = vand.u32 %v196, 4294901760
  %v4168 = vsub.f32 %v196, %v4167
  %4169 = vmatpush.msra.mxu0 %v4168
  %v4170 = vand.u32 %v189, 4294901760
  %v4171 = vsub.f32 %v189, %v4170
  %4172 = vmatpush.msra.mxu0 %v4171
  %v4173 = vand.u32 %v182, 4294901760
  %v4174 = vsub.f32 %v182, %v4173
  %4175 = vmatpush.msra.mxu0 %v4174
  %v4176 = vand.u32 %v175, 4294901760
  %v4177 = vsub.f32 %v175, %v4176
  %4178 = vmatpush.msra.mxu0 %v4177
  %v4179 = vand.u32 %v168, 4294901760
  %v4180 = vsub.f32 %v168, %v4179
  %4181 = vmatpush.msra.mxu0 %v4180
  %v4182 = vand.u32 %v161, 4294901760
  %v4183 = vsub.f32 %v161, %v4182
  %4184 = vmatpush.msra.mxu0 %v4183
  %v4185 = vand.u32 %v154, 4294901760
  %v4186 = vsub.f32 %v154, %v4185
  %4187 = vmatpush.msra.mxu0 %v4186
  %v4188 = vand.u32 %v147, 4294901760
  %v4189 = vsub.f32 %v147, %v4188
  %4190 = vmatpush.msra.mxu0 %v4189
  %v4191 = vand.u32 %v140, 4294901760
  %v4192 = vsub.f32 %v140, %v4191
  %4193 = vmatpush.msra.mxu0 %v4192
  %v4194 = vand.u32 %v133, 4294901760
  %v4195 = vsub.f32 %v133, %v4194
  %4196 = vmatpush.msra.mxu0 %v4195
  %v4197 = vand.u32 %v15, 4294901760
  %v4198 = vsub.f32 %v15, %v4197
  %4199 = vmatmul.f32.gmra.mxu0 %v4198
  %v4200 = vpop.f32.mrf.mxu0
  %v4201 = vadd.f32 %v4147, %v4200
  %4202 = vdwg.mxu0
  %v4203 = vand.u32 %v238, 4294901760
  %4204 = vmatpush.msra.mxu0 %v4203
  %v4205 = vand.u32 %v231, 4294901760
  %4206 = vmatpush.msra.mxu0 %v4205
  %v4207 = vand.u32 %v224, 4294901760
  %4208 = vmatpush.msra.mxu0 %v4207
  %v4209 = vand.u32 %v217, 4294901760
  %4210 = vmatpush.msra.mxu0 %v4209
  %v4211 = vand.u32 %v210, 4294901760
  %4212 = vmatpush.msra.mxu0 %v4211
  %v4213 = vand.u32 %v203, 4294901760
  %4214 = vmatpush.msra.mxu0 %v4213
  %v4215 = vand.u32 %v196, 4294901760
  %4216 = vmatpush.msra.mxu0 %v4215
  %v4217 = vand.u32 %v189, 4294901760
  %4218 = vmatpush.msra.mxu0 %v4217
  %v4219 = vand.u32 %v182, 4294901760
  %4220 = vmatpush.msra.mxu0 %v4219
  %v4221 = vand.u32 %v175, 4294901760
  %4222 = vmatpush.msra.mxu0 %v4221
  %v4223 = vand.u32 %v168, 4294901760
  %4224 = vmatpush.msra.mxu0 %v4223
  %v4225 = vand.u32 %v161, 4294901760
  %4226 = vmatpush.msra.mxu0 %v4225
  %v4227 = vand.u32 %v154, 4294901760
  %4228 = vmatpush.msra.mxu0 %v4227
  %v4229 = vand.u32 %v147, 4294901760
  %4230 = vmatpush.msra.mxu0 %v4229
  %v4231 = vand.u32 %v140, 4294901760
  %4232 = vmatpush.msra.mxu0 %v4231
  %v4233 = vand.u32 %v133, 4294901760
  %4234 = vmatpush.msra.mxu0 %v4233
  %v4235 = vand.u32 %v15, 4294901760
  %v4236 = vsub.f32 %v15, %v4235
  %v4237 = vand.u32 %v4236, 4294901760
  %4238 = vmatmul.f32.gmra.mxu0 %v4237
  %v4239 = vpop.f32.mrf.mxu0
  %v4240 = vadd.f32 %v4201, %v4239
  %4241 = vdwg.mxu0
  %v4242 = vand.u32 %v238, 4294901760
  %v4243 = vsub.f32 %v238, %v4242
  %v4244 = vand.u32 %v4243, 4294901760
  %4245 = vmatpush.msra.mxu0 %v4244
  %v4246 = vand.u32 %v231, 4294901760
  %v4247 = vsub.f32 %v231, %v4246
  %v4248 = vand.u32 %v4247, 4294901760
  %4249 = vmatpush.msra.mxu0 %v4248
  %v4250 = vand.u32 %v224, 4294901760
  %v4251 = vsub.f32 %v224, %v4250
  %v4252 = vand.u32 %v4251, 4294901760
  %4253 = vmatpush.msra.mxu0 %v4252
  %v4254 = vand.u32 %v217, 4294901760
  %v4255 = vsub.f32 %v217, %v4254
  %v4256 = vand.u32 %v4255, 4294901760
  %4257 = vmatpush.msra.mxu0 %v4256
  %v4258 = vand.u32 %v210, 4294901760
  %v4259 = vsub.f32 %v210, %v4258
  %v4260 = vand.u32 %v4259, 4294901760
  %4261 = vmatpush.msra.mxu0 %v4260
  %v4262 = vand.u32 %v203, 4294901760
  %v4263 = vsub.f32 %v203, %v4262
  %v4264 = vand.u32 %v4263, 4294901760
  %4265 = vmatpush.msra.mxu0 %v4264
  %v4266 = vand.u32 %v196, 4294901760
  %v4267 = vsub.f32 %v196, %v4266
  %v4268 = vand.u32 %v4267, 4294901760
  %4269 = vmatpush.msra.mxu0 %v4268
  %v4270 = vand.u32 %v189, 4294901760
  %v4271 = vsub.f32 %v189, %v4270
  %v4272 = vand.u32 %v4271, 4294901760
  %4273 = vmatpush.msra.mxu0 %v4272
  %v4274 = vand.u32 %v182, 4294901760
  %v4275 = vsub.f32 %v182, %v4274
  %v4276 = vand.u32 %v4275, 4294901760
  %4277 = vmatpush.msra.mxu0 %v4276
  %v4278 = vand.u32 %v175, 4294901760
  %v4279 = vsub.f32 %v175, %v4278
  %v4280 = vand.u32 %v4279, 4294901760
  %4281 = vmatpush.msra.mxu0 %v4280
  %v4282 = vand.u32 %v168, 4294901760
  %v4283 = vsub.f32 %v168, %v4282
  %v4284 = vand.u32 %v4283, 4294901760
  %4285 = vmatpush.msra.mxu0 %v4284
  %v4286 = vand.u32 %v161, 4294901760
  %v4287 = vsub.f32 %v161, %v4286
  %v4288 = vand.u32 %v4287, 4294901760
  %4289 = vmatpush.msra.mxu0 %v4288
  %v4290 = vand.u32 %v154, 4294901760
  %v4291 = vsub.f32 %v154, %v4290
  %v4292 = vand.u32 %v4291, 4294901760
  %4293 = vmatpush.msra.mxu0 %v4292
  %v4294 = vand.u32 %v147, 4294901760
  %v4295 = vsub.f32 %v147, %v4294
  %v4296 = vand.u32 %v4295, 4294901760
  %4297 = vmatpush.msra.mxu0 %v4296
  %v4298 = vand.u32 %v140, 4294901760
  %v4299 = vsub.f32 %v140, %v4298
  %v4300 = vand.u32 %v4299, 4294901760
  %4301 = vmatpush.msra.mxu0 %v4300
  %v4302 = vand.u32 %v133, 4294901760
  %v4303 = vsub.f32 %v133, %v4302
  %v4304 = vand.u32 %v4303, 4294901760
  %4305 = vmatpush.msra.mxu0 %v4304
  %v4306 = vand.u32 %v15, 4294901760
  %4307 = vmatmul.f32.gmra.mxu0 %v4306
  %v4308 = vpop.f32.mrf.mxu0
  %v4309 = vadd.f32 %v4240, %v4308
  %4310 = vdwg.mxu0
  %v4311 = vand.u32 %v238, 4294901760
  %4312 = vmatpush.msra.mxu0 %v4311
  %v4313 = vand.u32 %v231, 4294901760
  %4314 = vmatpush.msra.mxu0 %v4313
  %v4315 = vand.u32 %v224, 4294901760
  %4316 = vmatpush.msra.mxu0 %v4315
  %v4317 = vand.u32 %v217, 4294901760
  %4318 = vmatpush.msra.mxu0 %v4317
  %v4319 = vand.u32 %v210, 4294901760
  %4320 = vmatpush.msra.mxu0 %v4319
  %v4321 = vand.u32 %v203, 4294901760
  %4322 = vmatpush.msra.mxu0 %v4321
  %v4323 = vand.u32 %v196, 4294901760
  %4324 = vmatpush.msra.mxu0 %v4323
  %v4325 = vand.u32 %v189, 4294901760
  %4326 = vmatpush.msra.mxu0 %v4325
  %v4327 = vand.u32 %v182, 4294901760
  %4328 = vmatpush.msra.mxu0 %v4327
  %v4329 = vand.u32 %v175, 4294901760
  %4330 = vmatpush.msra.mxu0 %v4329
  %v4331 = vand.u32 %v168, 4294901760
  %4332 = vmatpush.msra.mxu0 %v4331
  %v4333 = vand.u32 %v161, 4294901760
  %4334 = vmatpush.msra.mxu0 %v4333
  %v4335 = vand.u32 %v154, 4294901760
  %4336 = vmatpush.msra.mxu0 %v4335
  %v4337 = vand.u32 %v147, 4294901760
  %4338 = vmatpush.msra.mxu0 %v4337
  %v4339 = vand.u32 %v140, 4294901760
  %4340 = vmatpush.msra.mxu0 %v4339
  %v4341 = vand.u32 %v133, 4294901760
  %4342 = vmatpush.msra.mxu0 %v4341
  %v4343 = vand.u32 %v15, 4294901760
  %4344 = vmatmul.f32.gmra.mxu0 %v4343
  %v4345 = vpop.f32.mrf.mxu0
  %v4346 = vadd.f32 %v4309, %v4345
  %4347 = vdwg.mxu0
  %v4348 = vand.u32 %v127, 4294901760
  %4349 = vmatpush.msra.mxu0 %v4348
  %v4350 = vand.u32 %v120, 4294901760
  %4351 = vmatpush.msra.mxu0 %v4350
  %v4352 = vand.u32 %v113, 4294901760
  %4353 = vmatpush.msra.mxu0 %v4352
  %v4354 = vand.u32 %v106, 4294901760
  %4355 = vmatpush.msra.mxu0 %v4354
  %v4356 = vand.u32 %v99, 4294901760
  %4357 = vmatpush.msra.mxu0 %v4356
  %v4358 = vand.u32 %v92, 4294901760
  %4359 = vmatpush.msra.mxu0 %v4358
  %v4360 = vand.u32 %v85, 4294901760
  %4361 = vmatpush.msra.mxu0 %v4360
  %v4362 = vand.u32 %v78, 4294901760
  %4363 = vmatpush.msra.mxu0 %v4362
  %v4364 = vand.u32 %v71, 4294901760
  %4365 = vmatpush.msra.mxu0 %v4364
  %v4366 = vand.u32 %v64, 4294901760
  %4367 = vmatpush.msra.mxu0 %v4366
  %v4368 = vand.u32 %v57, 4294901760
  %4369 = vmatpush.msra.mxu0 %v4368
  %v4370 = vand.u32 %v50, 4294901760
  %4371 = vmatpush.msra.mxu0 %v4370
  %v4372 = vand.u32 %v43, 4294901760
  %4373 = vmatpush.msra.mxu0 %v4372
  %v4374 = vand.u32 %v36, 4294901760
  %4375 = vmatpush.msra.mxu0 %v4374
  %v4376 = vand.u32 %v29, 4294901760
  %4377 = vmatpush.msra.mxu0 %v4376
  %v4378 = vand.u32 %v22, 4294901760
  %4379 = vmatpush.msra.mxu0 %v4378
  %v4380 = vand.u32 %v14, 4294901760
  %v4381 = vsub.f32 %v14, %v4380
  %v4382 = vand.u32 %v4381, 4294901760
  %v4383 = vsub.f32 %v4381, %v4382
  %v4384 = vand.u32 %v4383, 4294901760
  %4385 = vmatmul.f32.gmra.mxu0 %v4384
  %v4386 = vpop.f32.mrf.mxu0
  %v4387 = vadd.f32 %v248, %v4386
  %4388 = vdwg.mxu0
  %v4389 = vand.u32 %v127, 4294901760
  %v4390 = vsub.f32 %v127, %v4389
  %v4391 = vand.u32 %v4390, 4294901760
  %v4392 = vsub.f32 %v4390, %v4391
  %v4393 = vand.u32 %v4392, 4294901760
  %4394 = vmatpush.msra.mxu0 %v4393
  %v4395 = vand.u32 %v120, 4294901760
  %v4396 = vsub.f32 %v120, %v4395
  %v4397 = vand.u32 %v4396, 4294901760
  %v4398 = vsub.f32 %v4396, %v4397
  %v4399 = vand.u32 %v4398, 4294901760
  %4400 = vmatpush.msra.mxu0 %v4399
  %v4401 = vand.u32 %v113, 4294901760
  %v4402 = vsub.f32 %v113, %v4401
  %v4403 = vand.u32 %v4402, 4294901760
  %v4404 = vsub.f32 %v4402, %v4403
  %v4405 = vand.u32 %v4404, 4294901760
  %4406 = vmatpush.msra.mxu0 %v4405
  %v4407 = vand.u32 %v106, 4294901760
  %v4408 = vsub.f32 %v106, %v4407
  %v4409 = vand.u32 %v4408, 4294901760
  %v4410 = vsub.f32 %v4408, %v4409
  %v4411 = vand.u32 %v4410, 4294901760
  %4412 = vmatpush.msra.mxu0 %v4411
  %v4413 = vand.u32 %v99, 4294901760
  %v4414 = vsub.f32 %v99, %v4413
  %v4415 = vand.u32 %v4414, 4294901760
  %v4416 = vsub.f32 %v4414, %v4415
  %v4417 = vand.u32 %v4416, 4294901760
  %4418 = vmatpush.msra.mxu0 %v4417
  %v4419 = vand.u32 %v92, 4294901760
  %v4420 = vsub.f32 %v92, %v4419
  %v4421 = vand.u32 %v4420, 4294901760
  %v4422 = vsub.f32 %v4420, %v4421
  %v4423 = vand.u32 %v4422, 4294901760
  %4424 = vmatpush.msra.mxu0 %v4423
  %v4425 = vand.u32 %v85, 4294901760
  %v4426 = vsub.f32 %v85, %v4425
  %v4427 = vand.u32 %v4426, 4294901760
  %v4428 = vsub.f32 %v4426, %v4427
  %v4429 = vand.u32 %v4428, 4294901760
  %4430 = vmatpush.msra.mxu0 %v4429
  %v4431 = vand.u32 %v78, 4294901760
  %v4432 = vsub.f32 %v78, %v4431
  %v4433 = vand.u32 %v4432, 4294901760
  %v4434 = vsub.f32 %v4432, %v4433
  %v4435 = vand.u32 %v4434, 4294901760
  %4436 = vmatpush.msra.mxu0 %v4435
  %v4437 = vand.u32 %v71, 4294901760
  %v4438 = vsub.f32 %v71, %v4437
  %v4439 = vand.u32 %v4438, 4294901760
  %v4440 = vsub.f32 %v4438, %v4439
  %v4441 = vand.u32 %v4440, 4294901760
  %4442 = vmatpush.msra.mxu0 %v4441
  %v4443 = vand.u32 %v64, 4294901760
  %v4444 = vsub.f32 %v64, %v4443
  %v4445 = vand.u32 %v4444, 4294901760
  %v4446 = vsub.f32 %v4444, %v4445
  %v4447 = vand.u32 %v4446, 4294901760
  %4448 = vmatpush.msra.mxu0 %v4447
  %v4449 = vand.u32 %v57, 4294901760
  %v4450 = vsub.f32 %v57, %v4449
  %v4451 = vand.u32 %v4450, 4294901760
  %v4452 = vsub.f32 %v4450, %v4451
  %v4453 = vand.u32 %v4452, 4294901760
  %4454 = vmatpush.msra.mxu0 %v4453
  %v4455 = vand.u32 %v50, 4294901760
  %v4456 = vsub.f32 %v50, %v4455
  %v4457 = vand.u32 %v4456, 4294901760
  %v4458 = vsub.f32 %v4456, %v4457
  %v4459 = vand.u32 %v4458, 4294901760
  %4460 = vmatpush.msra.mxu0 %v4459
  %v4461 = vand.u32 %v43, 4294901760
  %v4462 = vsub.f32 %v43, %v4461
  %v4463 = vand.u32 %v4462, 4294901760
  %v4464 = vsub.f32 %v4462, %v4463
  %v4465 = vand.u32 %v4464, 4294901760
  %4466 = vmatpush.msra.mxu0 %v4465
  %v4467 = vand.u32 %v36, 4294901760
  %v4468 = vsub.f32 %v36, %v4467
  %v4469 = vand.u32 %v4468, 4294901760
  %v4470 = vsub.f32 %v4468, %v4469
  %v4471 = vand.u32 %v4470, 4294901760
  %4472 = vmatpush.msra.mxu0 %v4471
  %v4473 = vand.u32 %v29, 4294901760
  %v4474 = vsub.f32 %v29, %v4473
  %v4475 = vand.u32 %v4474, 4294901760
  %v4476 = vsub.f32 %v4474, %v4475
  %v4477 = vand.u32 %v4476, 4294901760
  %4478 = vmatpush.msra.mxu0 %v4477
  %v4479 = vand.u32 %v22, 4294901760
  %v4480 = vsub.f32 %v22, %v4479
  %v4481 = vand.u32 %v4480, 4294901760
  %v4482 = vsub.f32 %v4480, %v4481
  %v4483 = vand.u32 %v4482, 4294901760
  %4484 = vmatpush.msra.mxu0 %v4483
  %v4485 = vand.u32 %v14, 4294901760
  %4486 = vmatmul.f32.gmra.mxu0 %v4485
  %v4487 = vpop.f32.mrf.mxu0
  %v4488 = vadd.f32 %v4387, %v4487
  %4489 = vdwg.mxu0
  %v4490 = vand.u32 %v127, 4294901760
  %v4491 = vsub.f32 %v127, %v4490
  %4492 = vmatpush.msra.mxu0 %v4491
  %v4493 = vand.u32 %v120, 4294901760
  %v4494 = vsub.f32 %v120, %v4493
  %4495 = vmatpush.msra.mxu0 %v4494
  %v4496 = vand.u32 %v113, 4294901760
  %v4497 = vsub.f32 %v113, %v4496
  %4498 = vmatpush.msra.mxu0 %v4497
  %v4499 = vand.u32 %v106, 4294901760
  %v4500 = vsub.f32 %v106, %v4499
  %4501 = vmatpush.msra.mxu0 %v4500
  %v4502 = vand.u32 %v99, 4294901760
  %v4503 = vsub.f32 %v99, %v4502
  %4504 = vmatpush.msra.mxu0 %v4503
  %v4505 = vand.u32 %v92, 4294901760
  %v4506 = vsub.f32 %v92, %v4505
  %4507 = vmatpush.msra.mxu0 %v4506
  %v4508 = vand.u32 %v85, 4294901760
  %v4509 = vsub.f32 %v85, %v4508
  %4510 = vmatpush.msra.mxu0 %v4509
  %v4511 = vand.u32 %v78, 4294901760
  %v4512 = vsub.f32 %v78, %v4511
  %4513 = vmatpush.msra.mxu0 %v4512
  %v4514 = vand.u32 %v71, 4294901760
  %v4515 = vsub.f32 %v71, %v4514
  %4516 = vmatpush.msra.mxu0 %v4515
  %v4517 = vand.u32 %v64, 4294901760
  %v4518 = vsub.f32 %v64, %v4517
  %4519 = vmatpush.msra.mxu0 %v4518
  %v4520 = vand.u32 %v57, 4294901760
  %v4521 = vsub.f32 %v57, %v4520
  %4522 = vmatpush.msra.mxu0 %v4521
  %v4523 = vand.u32 %v50, 4294901760
  %v4524 = vsub.f32 %v50, %v4523
  %4525 = vmatpush.msra.mxu0 %v4524
  %v4526 = vand.u32 %v43, 4294901760
  %v4527 = vsub.f32 %v43, %v4526
  %4528 = vmatpush.msra.mxu0 %v4527
  %v4529 = vand.u32 %v36, 4294901760
  %v4530 = vsub.f32 %v36, %v4529
  %4531 = vmatpush.msra.mxu0 %v4530
  %v4532 = vand.u32 %v29, 4294901760
  %v4533 = vsub.f32 %v29, %v4532
  %4534 = vmatpush.msra.mxu0 %v4533
  %v4535 = vand.u32 %v22, 4294901760
  %v4536 = vsub.f32 %v22, %v4535
  %4537 = vmatpush.msra.mxu0 %v4536
  %v4538 = vand.u32 %v14, 4294901760
  %v4539 = vsub.f32 %v14, %v4538
  %4540 = vmatmul.f32.gmra.mxu0 %v4539
  %v4541 = vpop.f32.mrf.mxu0
  %v4542 = vadd.f32 %v4488, %v4541
  %4543 = vdwg.mxu0
  %v4544 = vand.u32 %v127, 4294901760
  %4545 = vmatpush.msra.mxu0 %v4544
  %v4546 = vand.u32 %v120, 4294901760
  %4547 = vmatpush.msra.mxu0 %v4546
  %v4548 = vand.u32 %v113, 4294901760
  %4549 = vmatpush.msra.mxu0 %v4548
  %v4550 = vand.u32 %v106, 4294901760
  %4551 = vmatpush.msra.mxu0 %v4550
  %v4552 = vand.u32 %v99, 4294901760
  %4553 = vmatpush.msra.mxu0 %v4552
  %v4554 = vand.u32 %v92, 4294901760
  %4555 = vmatpush.msra.mxu0 %v4554
  %v4556 = vand.u32 %v85, 4294901760
  %4557 = vmatpush.msra.mxu0 %v4556
  %v4558 = vand.u32 %v78, 4294901760
  %4559 = vmatpush.msra.mxu0 %v4558
  %v4560 = vand.u32 %v71, 4294901760
  %4561 = vmatpush.msra.mxu0 %v4560
  %v4562 = vand.u32 %v64, 4294901760
  %4563 = vmatpush.msra.mxu0 %v4562
  %v4564 = vand.u32 %v57, 4294901760
  %4565 = vmatpush.msra.mxu0 %v4564
  %v4566 = vand.u32 %v50, 4294901760
  %4567 = vmatpush.msra.mxu0 %v4566
  %v4568 = vand.u32 %v43, 4294901760
  %4569 = vmatpush.msra.mxu0 %v4568
  %v4570 = vand.u32 %v36, 4294901760
  %4571 = vmatpush.msra.mxu0 %v4570
  %v4572 = vand.u32 %v29, 4294901760
  %4573 = vmatpush.msra.mxu0 %v4572
  %v4574 = vand.u32 %v22, 4294901760
  %4575 = vmatpush.msra.mxu0 %v4574
  %v4576 = vand.u32 %v14, 4294901760
  %v4577 = vsub.f32 %v14, %v4576
  %v4578 = vand.u32 %v4577, 4294901760
  %4579 = vmatmul.f32.gmra.mxu0 %v4578
  %v4580 = vpop.f32.mrf.mxu0
  %v4581 = vadd.f32 %v4542, %v4580
  %4582 = vdwg.mxu0
  %v4583 = vand.u32 %v127, 4294901760
  %v4584 = vsub.f32 %v127, %v4583
  %v4585 = vand.u32 %v4584, 4294901760
  %4586 = vmatpush.msra.mxu0 %v4585
  %v4587 = vand.u32 %v120, 4294901760
  %v4588 = vsub.f32 %v120, %v4587
  %v4589 = vand.u32 %v4588, 4294901760
  %4590 = vmatpush.msra.mxu0 %v4589
  %v4591 = vand.u32 %v113, 4294901760
  %v4592 = vsub.f32 %v113, %v4591
  %v4593 = vand.u32 %v4592, 4294901760
  %4594 = vmatpush.msra.mxu0 %v4593
  %v4595 = vand.u32 %v106, 4294901760
  %v4596 = vsub.f32 %v106, %v4595
  %v4597 = vand.u32 %v4596, 4294901760
  %4598 = vmatpush.msra.mxu0 %v4597
  %v4599 = vand.u32 %v99, 4294901760
  %v4600 = vsub.f32 %v99, %v4599
  %v4601 = vand.u32 %v4600, 4294901760
  %4602 = vmatpush.msra.mxu0 %v4601
  %v4603 = vand.u32 %v92, 4294901760
  %v4604 = vsub.f32 %v92, %v4603
  %v4605 = vand.u32 %v4604, 4294901760
  %4606 = vmatpush.msra.mxu0 %v4605
  %v4607 = vand.u32 %v85, 4294901760
  %v4608 = vsub.f32 %v85, %v4607
  %v4609 = vand.u32 %v4608, 4294901760
  %4610 = vmatpush.msra.mxu0 %v4609
  %v4611 = vand.u32 %v78, 4294901760
  %v4612 = vsub.f32 %v78, %v4611
  %v4613 = vand.u32 %v4612, 4294901760
  %4614 = vmatpush.msra.mxu0 %v4613
  %v4615 = vand.u32 %v71, 4294901760
  %v4616 = vsub.f32 %v71, %v4615
  %v4617 = vand.u32 %v4616, 4294901760
  %4618 = vmatpush.msra.mxu0 %v4617
  %v4619 = vand.u32 %v64, 4294901760
  %v4620 = vsub.f32 %v64, %v4619
  %v4621 = vand.u32 %v4620, 4294901760
  %4622 = vmatpush.msra.mxu0 %v4621
  %v4623 = vand.u32 %v57, 4294901760
  %v4624 = vsub.f32 %v57, %v4623
  %v4625 = vand.u32 %v4624, 4294901760
  %4626 = vmatpush.msra.mxu0 %v4625
  %v4627 = vand.u32 %v50, 4294901760
  %v4628 = vsub.f32 %v50, %v4627
  %v4629 = vand.u32 %v4628, 4294901760
  %4630 = vmatpush.msra.mxu0 %v4629
  %v4631 = vand.u32 %v43, 4294901760
  %v4632 = vsub.f32 %v43, %v4631
  %v4633 = vand.u32 %v4632, 4294901760
  %4634 = vmatpush.msra.mxu0 %v4633
  %v4635 = vand.u32 %v36, 4294901760
  %v4636 = vsub.f32 %v36, %v4635
  %v4637 = vand.u32 %v4636, 4294901760
  %4638 = vmatpush.msra.mxu0 %v4637
  %v4639 = vand.u32 %v29, 4294901760
  %v4640 = vsub.f32 %v29, %v4639
  %v4641 = vand.u32 %v4640, 4294901760
  %4642 = vmatpush.msra.mxu0 %v4641
  %v4643 = vand.u32 %v22, 4294901760
  %v4644 = vsub.f32 %v22, %v4643
  %v4645 = vand.u32 %v4644, 4294901760
  %4646 = vmatpush.msra.mxu0 %v4645
  %v4647 = vand.u32 %v14, 4294901760
  %4648 = vmatmul.f32.gmra.mxu0 %v4647
  %v4649 = vpop.f32.mrf.mxu0
  %v4650 = vadd.f32 %v4581, %v4649
  %4651 = vdwg.mxu0
  %v4652 = vand.u32 %v127, 4294901760
  %4653 = vmatpush.msra.mxu0 %v4652
  %v4654 = vand.u32 %v120, 4294901760
  %4655 = vmatpush.msra.mxu0 %v4654
  %v4656 = vand.u32 %v113, 4294901760
  %4657 = vmatpush.msra.mxu0 %v4656
  %v4658 = vand.u32 %v106, 4294901760
  %4659 = vmatpush.msra.mxu0 %v4658
  %v4660 = vand.u32 %v99, 4294901760
  %4661 = vmatpush.msra.mxu0 %v4660
  %v4662 = vand.u32 %v92, 4294901760
  %4663 = vmatpush.msra.mxu0 %v4662
  %v4664 = vand.u32 %v85, 4294901760
  %4665 = vmatpush.msra.mxu0 %v4664
  %v4666 = vand.u32 %v78, 4294901760
  %4667 = vmatpush.msra.mxu0 %v4666
  %v4668 = vand.u32 %v71, 4294901760
  %4669 = vmatpush.msra.mxu0 %v4668
  %v4670 = vand.u32 %v64, 4294901760
  %4671 = vmatpush.msra.mxu0 %v4670
  %v4672 = vand.u32 %v57, 4294901760
  %4673 = vmatpush.msra.mxu0 %v4672
  %v4674 = vand.u32 %v50, 4294901760
  %4675 = vmatpush.msra.mxu0 %v4674
  %v4676 = vand.u32 %v43, 4294901760
  %4677 = vmatpush.msra.mxu0 %v4676
  %v4678 = vand.u32 %v36, 4294901760
  %4679 = vmatpush.msra.mxu0 %v4678
  %v4680 = vand.u32 %v29, 4294901760
  %4681 = vmatpush.msra.mxu0 %v4680
  %v4682 = vand.u32 %v22, 4294901760
  %4683 = vmatpush.msra.mxu0 %v4682
  %v4684 = vand.u32 %v14, 4294901760
  %4685 = vmatmul.f32.gmra.mxu0 %v4684
  %v4686 = vpop.f32.mrf.mxu0
  %v4687 = vadd.f32 %v4650, %v4686
  %4688 = vdwg.mxu0
  %v4689 = vand.u32 %v239, 4294901760
  %4690 = vmatpush.msra.mxu0 %v4689
  %v4691 = vand.u32 %v232, 4294901760
  %4692 = vmatpush.msra.mxu0 %v4691
  %v4693 = vand.u32 %v225, 4294901760
  %4694 = vmatpush.msra.mxu0 %v4693
  %v4695 = vand.u32 %v218, 4294901760
  %4696 = vmatpush.msra.mxu0 %v4695
  %v4697 = vand.u32 %v211, 4294901760
  %4698 = vmatpush.msra.mxu0 %v4697
  %v4699 = vand.u32 %v204, 4294901760
  %4700 = vmatpush.msra.mxu0 %v4699
  %v4701 = vand.u32 %v197, 4294901760
  %4702 = vmatpush.msra.mxu0 %v4701
  %v4703 = vand.u32 %v190, 4294901760
  %4704 = vmatpush.msra.mxu0 %v4703
  %v4705 = vand.u32 %v183, 4294901760
  %4706 = vmatpush.msra.mxu0 %v4705
  %v4707 = vand.u32 %v176, 4294901760
  %4708 = vmatpush.msra.mxu0 %v4707
  %v4709 = vand.u32 %v169, 4294901760
  %4710 = vmatpush.msra.mxu0 %v4709
  %v4711 = vand.u32 %v162, 4294901760
  %4712 = vmatpush.msra.mxu0 %v4711
  %v4713 = vand.u32 %v155, 4294901760
  %4714 = vmatpush.msra.mxu0 %v4713
  %v4715 = vand.u32 %v148, 4294901760
  %4716 = vmatpush.msra.mxu0 %v4715
  %v4717 = vand.u32 %v141, 4294901760
  %4718 = vmatpush.msra.mxu0 %v4717
  %v4719 = vand.u32 %v134, 4294901760
  %4720 = vmatpush.msra.mxu0 %v4719
  %v4721 = vand.u32 %v15, 4294901760
  %v4722 = vsub.f32 %v15, %v4721
  %v4723 = vand.u32 %v4722, 4294901760
  %v4724 = vsub.f32 %v4722, %v4723
  %v4725 = vand.u32 %v4724, 4294901760
  %4726 = vmatmul.f32.gmra.mxu0 %v4725
  %v4727 = vpop.f32.mrf.mxu0
  %v4728 = vadd.f32 %v4687, %v4727
  %4729 = vdwg.mxu0
  %v4730 = vand.u32 %v239, 4294901760
  %v4731 = vsub.f32 %v239, %v4730
  %v4732 = vand.u32 %v4731, 4294901760
  %v4733 = vsub.f32 %v4731, %v4732
  %v4734 = vand.u32 %v4733, 4294901760
  %4735 = vmatpush.msra.mxu0 %v4734
  %v4736 = vand.u32 %v232, 4294901760
  %v4737 = vsub.f32 %v232, %v4736
  %v4738 = vand.u32 %v4737, 4294901760
  %v4739 = vsub.f32 %v4737, %v4738
  %v4740 = vand.u32 %v4739, 4294901760
  %4741 = vmatpush.msra.mxu0 %v4740
  %v4742 = vand.u32 %v225, 4294901760
  %v4743 = vsub.f32 %v225, %v4742
  %v4744 = vand.u32 %v4743, 4294901760
  %v4745 = vsub.f32 %v4743, %v4744
  %v4746 = vand.u32 %v4745, 4294901760
  %4747 = vmatpush.msra.mxu0 %v4746
  %v4748 = vand.u32 %v218, 4294901760
  %v4749 = vsub.f32 %v218, %v4748
  %v4750 = vand.u32 %v4749, 4294901760
  %v4751 = vsub.f32 %v4749, %v4750
  %v4752 = vand.u32 %v4751, 4294901760
  %4753 = vmatpush.msra.mxu0 %v4752
  %v4754 = vand.u32 %v211, 4294901760
  %v4755 = vsub.f32 %v211, %v4754
  %v4756 = vand.u32 %v4755, 4294901760
  %v4757 = vsub.f32 %v4755, %v4756
  %v4758 = vand.u32 %v4757, 4294901760
  %4759 = vmatpush.msra.mxu0 %v4758
  %v4760 = vand.u32 %v204, 4294901760
  %v4761 = vsub.f32 %v204, %v4760
  %v4762 = vand.u32 %v4761, 4294901760
  %v4763 = vsub.f32 %v4761, %v4762
  %v4764 = vand.u32 %v4763, 4294901760
  %4765 = vmatpush.msra.mxu0 %v4764
  %v4766 = vand.u32 %v197, 4294901760
  %v4767 = vsub.f32 %v197, %v4766
  %v4768 = vand.u32 %v4767, 4294901760
  %v4769 = vsub.f32 %v4767, %v4768
  %v4770 = vand.u32 %v4769, 4294901760
  %4771 = vmatpush.msra.mxu0 %v4770
  %v4772 = vand.u32 %v190, 4294901760
  %v4773 = vsub.f32 %v190, %v4772
  %v4774 = vand.u32 %v4773, 4294901760
  %v4775 = vsub.f32 %v4773, %v4774
  %v4776 = vand.u32 %v4775, 4294901760
  %4777 = vmatpush.msra.mxu0 %v4776
  %v4778 = vand.u32 %v183, 4294901760
  %v4779 = vsub.f32 %v183, %v4778
  %v4780 = vand.u32 %v4779, 4294901760
  %v4781 = vsub.f32 %v4779, %v4780
  %v4782 = vand.u32 %v4781, 4294901760
  %4783 = vmatpush.msra.mxu0 %v4782
  %v4784 = vand.u32 %v176, 4294901760
  %v4785 = vsub.f32 %v176, %v4784
  %v4786 = vand.u32 %v4785, 4294901760
  %v4787 = vsub.f32 %v4785, %v4786
  %v4788 = vand.u32 %v4787, 4294901760
  %4789 = vmatpush.msra.mxu0 %v4788
  %v4790 = vand.u32 %v169, 4294901760
  %v4791 = vsub.f32 %v169, %v4790
  %v4792 = vand.u32 %v4791, 4294901760
  %v4793 = vsub.f32 %v4791, %v4792
  %v4794 = vand.u32 %v4793, 4294901760
  %4795 = vmatpush.msra.mxu0 %v4794
  %v4796 = vand.u32 %v162, 4294901760
  %v4797 = vsub.f32 %v162, %v4796
  %v4798 = vand.u32 %v4797, 4294901760
  %v4799 = vsub.f32 %v4797, %v4798
  %v4800 = vand.u32 %v4799, 4294901760
  %4801 = vmatpush.msra.mxu0 %v4800
  %v4802 = vand.u32 %v155, 4294901760
  %v4803 = vsub.f32 %v155, %v4802
  %v4804 = vand.u32 %v4803, 4294901760
  %v4805 = vsub.f32 %v4803, %v4804
  %v4806 = vand.u32 %v4805, 4294901760
  %4807 = vmatpush.msra.mxu0 %v4806
  %v4808 = vand.u32 %v148, 4294901760
  %v4809 = vsub.f32 %v148, %v4808
  %v4810 = vand.u32 %v4809, 4294901760
  %v4811 = vsub.f32 %v4809, %v4810
  %v4812 = vand.u32 %v4811, 4294901760
  %4813 = vmatpush.msra.mxu0 %v4812
  %v4814 = vand.u32 %v141, 4294901760
  %v4815 = vsub.f32 %v141, %v4814
  %v4816 = vand.u32 %v4815, 4294901760
  %v4817 = vsub.f32 %v4815, %v4816
  %v4818 = vand.u32 %v4817, 4294901760
  %4819 = vmatpush.msra.mxu0 %v4818
  %v4820 = vand.u32 %v134, 4294901760
  %v4821 = vsub.f32 %v134, %v4820
  %v4822 = vand.u32 %v4821, 4294901760
  %v4823 = vsub.f32 %v4821, %v4822
  %v4824 = vand.u32 %v4823, 4294901760
  %4825 = vmatpush.msra.mxu0 %v4824
  %v4826 = vand.u32 %v15, 4294901760
  %4827 = vmatmul.f32.gmra.mxu0 %v4826
  %v4828 = vpop.f32.mrf.mxu0
  %v4829 = vadd.f32 %v4728, %v4828
  %4830 = vdwg.mxu0
  %v4831 = vand.u32 %v239, 4294901760
  %v4832 = vsub.f32 %v239, %v4831
  %4833 = vmatpush.msra.mxu0 %v4832
  %v4834 = vand.u32 %v232, 4294901760
  %v4835 = vsub.f32 %v232, %v4834
  %4836 = vmatpush.msra.mxu0 %v4835
  %v4837 = vand.u32 %v225, 4294901760
  %v4838 = vsub.f32 %v225, %v4837
  %4839 = vmatpush.msra.mxu0 %v4838
  %v4840 = vand.u32 %v218, 4294901760
  %v4841 = vsub.f32 %v218, %v4840
  %4842 = vmatpush.msra.mxu0 %v4841
  %v4843 = vand.u32 %v211, 4294901760
  %v4844 = vsub.f32 %v211, %v4843
  %4845 = vmatpush.msra.mxu0 %v4844
  %v4846 = vand.u32 %v204, 4294901760
  %v4847 = vsub.f32 %v204, %v4846
  %4848 = vmatpush.msra.mxu0 %v4847
  %v4849 = vand.u32 %v197, 4294901760
  %v4850 = vsub.f32 %v197, %v4849
  %4851 = vmatpush.msra.mxu0 %v4850
  %v4852 = vand.u32 %v190, 4294901760
  %v4853 = vsub.f32 %v190, %v4852
  %4854 = vmatpush.msra.mxu0 %v4853
  %v4855 = vand.u32 %v183, 4294901760
  %v4856 = vsub.f32 %v183, %v4855
  %4857 = vmatpush.msra.mxu0 %v4856
  %v4858 = vand.u32 %v176, 4294901760
  %v4859 = vsub.f32 %v176, %v4858
  %4860 = vmatpush.msra.mxu0 %v4859
  %v4861 = vand.u32 %v169, 4294901760
  %v4862 = vsub.f32 %v169, %v4861
  %4863 = vmatpush.msra.mxu0 %v4862
  %v4864 = vand.u32 %v162, 4294901760
  %v4865 = vsub.f32 %v162, %v4864
  %4866 = vmatpush.msra.mxu0 %v4865
  %v4867 = vand.u32 %v155, 4294901760
  %v4868 = vsub.f32 %v155, %v4867
  %4869 = vmatpush.msra.mxu0 %v4868
  %v4870 = vand.u32 %v148, 4294901760
  %v4871 = vsub.f32 %v148, %v4870
  %4872 = vmatpush.msra.mxu0 %v4871
  %v4873 = vand.u32 %v141, 4294901760
  %v4874 = vsub.f32 %v141, %v4873
  %4875 = vmatpush.msra.mxu0 %v4874
  %v4876 = vand.u32 %v134, 4294901760
  %v4877 = vsub.f32 %v134, %v4876
  %4878 = vmatpush.msra.mxu0 %v4877
  %v4879 = vand.u32 %v15, 4294901760
  %v4880 = vsub.f32 %v15, %v4879
  %4881 = vmatmul.f32.gmra.mxu0 %v4880
  %v4882 = vpop.f32.mrf.mxu0
  %v4883 = vadd.f32 %v4829, %v4882
  %4884 = vdwg.mxu0
  %v4885 = vand.u32 %v239, 4294901760
  %4886 = vmatpush.msra.mxu0 %v4885
  %v4887 = vand.u32 %v232, 4294901760
  %4888 = vmatpush.msra.mxu0 %v4887
  %v4889 = vand.u32 %v225, 4294901760
  %4890 = vmatpush.msra.mxu0 %v4889
  %v4891 = vand.u32 %v218, 4294901760
  %4892 = vmatpush.msra.mxu0 %v4891
  %v4893 = vand.u32 %v211, 4294901760
  %4894 = vmatpush.msra.mxu0 %v4893
  %v4895 = vand.u32 %v204, 4294901760
  %4896 = vmatpush.msra.mxu0 %v4895
  %v4897 = vand.u32 %v197, 4294901760
  %4898 = vmatpush.msra.mxu0 %v4897
  %v4899 = vand.u32 %v190, 4294901760
  %4900 = vmatpush.msra.mxu0 %v4899
  %v4901 = vand.u32 %v183, 4294901760
  %4902 = vmatpush.msra.mxu0 %v4901
  %v4903 = vand.u32 %v176, 4294901760
  %4904 = vmatpush.msra.mxu0 %v4903
  %v4905 = vand.u32 %v169, 4294901760
  %4906 = vmatpush.msra.mxu0 %v4905
  %v4907 = vand.u32 %v162, 4294901760
  %4908 = vmatpush.msra.mxu0 %v4907
  %v4909 = vand.u32 %v155, 4294901760
  %4910 = vmatpush.msra.mxu0 %v4909
  %v4911 = vand.u32 %v148, 4294901760
  %4912 = vmatpush.msra.mxu0 %v4911
  %v4913 = vand.u32 %v141, 4294901760
  %4914 = vmatpush.msra.mxu0 %v4913
  %v4915 = vand.u32 %v134, 4294901760
  %4916 = vmatpush.msra.mxu0 %v4915
  %v4917 = vand.u32 %v15, 4294901760
  %v4918 = vsub.f32 %v15, %v4917
  %v4919 = vand.u32 %v4918, 4294901760
  %4920 = vmatmul.f32.gmra.mxu0 %v4919
  %v4921 = vpop.f32.mrf.mxu0
  %v4922 = vadd.f32 %v4883, %v4921
  %4923 = vdwg.mxu0
  %v4924 = vand.u32 %v239, 4294901760
  %v4925 = vsub.f32 %v239, %v4924
  %v4926 = vand.u32 %v4925, 4294901760
  %4927 = vmatpush.msra.mxu0 %v4926
  %v4928 = vand.u32 %v232, 4294901760
  %v4929 = vsub.f32 %v232, %v4928
  %v4930 = vand.u32 %v4929, 4294901760
  %4931 = vmatpush.msra.mxu0 %v4930
  %v4932 = vand.u32 %v225, 4294901760
  %v4933 = vsub.f32 %v225, %v4932
  %v4934 = vand.u32 %v4933, 4294901760
  %4935 = vmatpush.msra.mxu0 %v4934
  %v4936 = vand.u32 %v218, 4294901760
  %v4937 = vsub.f32 %v218, %v4936
  %v4938 = vand.u32 %v4937, 4294901760
  %4939 = vmatpush.msra.mxu0 %v4938
  %v4940 = vand.u32 %v211, 4294901760
  %v4941 = vsub.f32 %v211, %v4940
  %v4942 = vand.u32 %v4941, 4294901760
  %4943 = vmatpush.msra.mxu0 %v4942
  %v4944 = vand.u32 %v204, 4294901760
  %v4945 = vsub.f32 %v204, %v4944
  %v4946 = vand.u32 %v4945, 4294901760
  %4947 = vmatpush.msra.mxu0 %v4946
  %v4948 = vand.u32 %v197, 4294901760
  %v4949 = vsub.f32 %v197, %v4948
  %v4950 = vand.u32 %v4949, 4294901760
  %4951 = vmatpush.msra.mxu0 %v4950
  %v4952 = vand.u32 %v190, 4294901760
  %v4953 = vsub.f32 %v190, %v4952
  %v4954 = vand.u32 %v4953, 4294901760
  %4955 = vmatpush.msra.mxu0 %v4954
  %v4956 = vand.u32 %v183, 4294901760
  %v4957 = vsub.f32 %v183, %v4956
  %v4958 = vand.u32 %v4957, 4294901760
  %4959 = vmatpush.msra.mxu0 %v4958
  %v4960 = vand.u32 %v176, 4294901760
  %v4961 = vsub.f32 %v176, %v4960
  %v4962 = vand.u32 %v4961, 4294901760
  %4963 = vmatpush.msra.mxu0 %v4962
  %v4964 = vand.u32 %v169, 4294901760
  %v4965 = vsub.f32 %v169, %v4964
  %v4966 = vand.u32 %v4965, 4294901760
  %4967 = vmatpush.msra.mxu0 %v4966
  %v4968 = vand.u32 %v162, 4294901760
  %v4969 = vsub.f32 %v162, %v4968
  %v4970 = vand.u32 %v4969, 4294901760
  %4971 = vmatpush.msra.mxu0 %v4970
  %v4972 = vand.u32 %v155, 4294901760
  %v4973 = vsub.f32 %v155, %v4972
  %v4974 = vand.u32 %v4973, 4294901760
  %4975 = vmatpush.msra.mxu0 %v4974
  %v4976 = vand.u32 %v148, 4294901760
  %v4977 = vsub.f32 %v148, %v4976
  %v4978 = vand.u32 %v4977, 4294901760
  %4979 = vmatpush.msra.mxu0 %v4978
  %v4980 = vand.u32 %v141, 4294901760
  %v4981 = vsub.f32 %v141, %v4980
  %v4982 = vand.u32 %v4981, 4294901760
  %4983 = vmatpush.msra.mxu0 %v4982
  %v4984 = vand.u32 %v134, 4294901760
  %v4985 = vsub.f32 %v134, %v4984
  %v4986 = vand.u32 %v4985, 4294901760
  %4987 = vmatpush.msra.mxu0 %v4986
  %v4988 = vand.u32 %v15, 4294901760
  %4989 = vmatmul.f32.gmra.mxu0 %v4988
  %v4990 = vpop.f32.mrf.mxu0
  %v4991 = vadd.f32 %v4922, %v4990
  %4992 = vdwg.mxu0
  %v4993 = vand.u32 %v239, 4294901760
  %4994 = vmatpush.msra.mxu0 %v4993
  %v4995 = vand.u32 %v232, 4294901760
  %4996 = vmatpush.msra.mxu0 %v4995
  %v4997 = vand.u32 %v225, 4294901760
  %4998 = vmatpush.msra.mxu0 %v4997
  %v4999 = vand.u32 %v218, 4294901760
  %5000 = vmatpush.msra.mxu0 %v4999
  %v5001 = vand.u32 %v211, 4294901760
  %5002 = vmatpush.msra.mxu0 %v5001
  %v5003 = vand.u32 %v204, 4294901760
  %5004 = vmatpush.msra.mxu0 %v5003
  %v5005 = vand.u32 %v197, 4294901760
  %5006 = vmatpush.msra.mxu0 %v5005
  %v5007 = vand.u32 %v190, 4294901760
  %5008 = vmatpush.msra.mxu0 %v5007
  %v5009 = vand.u32 %v183, 4294901760
  %5010 = vmatpush.msra.mxu0 %v5009
  %v5011 = vand.u32 %v176, 4294901760
  %5012 = vmatpush.msra.mxu0 %v5011
  %v5013 = vand.u32 %v169, 4294901760
  %5014 = vmatpush.msra.mxu0 %v5013
  %v5015 = vand.u32 %v162, 4294901760
  %5016 = vmatpush.msra.mxu0 %v5015
  %v5017 = vand.u32 %v155, 4294901760
  %5018 = vmatpush.msra.mxu0 %v5017
  %v5019 = vand.u32 %v148, 4294901760
  %5020 = vmatpush.msra.mxu0 %v5019
  %v5021 = vand.u32 %v141, 4294901760
  %5022 = vmatpush.msra.mxu0 %v5021
  %v5023 = vand.u32 %v134, 4294901760
  %5024 = vmatpush.msra.mxu0 %v5023
  %v5025 = vand.u32 %v15, 4294901760
  %5026 = vmatmul.f32.gmra.mxu0 %v5025
  %v5027 = vpop.f32.mrf.mxu0
  %v5028 = vadd.f32 %v4991, %v5027
  %5029 = vdwg.mxu0
  %5030 = vst [vmem:[%s3] sm:$0xff] %v936
  %5031 = vst [vmem:[%s3 + $0x8] sm:$0xff] %v1618
  %5032 = vst [vmem:[%s3 + $0x10] sm:$0xff] %v2300
  %5033 = vst [vmem:[%s3 + $0x18] sm:$0xff] %v2982
  %5034 = vst [vmem:[%s3 + $0x20] sm:$0xff] %v3664
  %5035 = vst [vmem:[%s3 + $0x28] sm:$0xff] %v4346
  %vm5036 = vcmask 785408
  %5037 = vst.msk [vmem:[%s3 + $0x30] sm:$0xff] %vm5036, %v5028
  // Predicated region
  $region14: #{layer_c1_forward.1} parent=0 // pred_check
    _
  $region15: #{layer_c1_forward.1} parent=0 // pred_check_branch
    %5039 = sbr.rel (0) target = $region17
  $region16: #{layer_c1_forward.1} parent=0 // pred_region
    _
  $region17: #{layer_c1_forward.1} parent=0 // pred_fallthru
    _
  // Predicated region
  $region18: #{layer_c1_forward.1} parent=0 // pred_check
    _
  $region19: #{layer_c1_forward.1} parent=0 // pred_check_branch
    %5041 = sbr.rel (0) target = $region21
  $region20: #{layer_c1_forward.1} parent=0 // pred_region
    _
  $region21: #{layer_c1_forward.1} parent=0 // pred_fallthru
    _

</llo_original>
